<compile_context>
chip_gen: v7x
topology: tpu7x:2x2x1
jax: 0.10.0
libtpu: 0.0.40
codegen_flags: <defaults>
</compile_context>

<pallas_src>
import functools

import jax
import jax.numpy as jnp
from jax.experimental import pallas as pl
from jax.experimental.pallas import tpu as pltpu


# ----------------------------- Pallas kernel -----------------------------

def _make_hmm_kernel(T, TS, B):
    """Build the HMM backward-recursion kernel with static T, TS, B."""

    def kernel(ids_ref, betaT_ref, alphaT_ref, gamma_ref, out_ref, y_ref):
        # ids_ref    : (B, T)  int32 SMEM (scalar prefetch) -- token ids
        # betaT_ref  : (V, H)  f32 VMEM  -- beta transposed (rows = vocab entries)
        # alphaT_ref : (H, H)  f32 VMEM  -- alpha_exp transposed
        # gamma_ref  : (1, H)  f32 VMEM  -- gamma_exp
        # out_ref    : (B, 1)  f32       -- final per-batch log value
        # y_ref      : (B, H)  f32 VMEM scratch -- carried log-space state
        ci = pl.program_id(0)

        for j in range(TS):                       # static unroll over the chunk
            s = ci * TS + j                       # reversed step index: 0 .. T-1
            t = T - 1 - s                         # actual time index

            @pl.when(s < T)                       # guard padded tail of last chunk
            def _():
                # Emission gather: e[b, :] = beta[:, input_ids[b, t]]
                rows = [betaT_ref[pl.ds(ids_ref[b, t], 1), :] for b in range(B)]
                e = rows[0] if B == 1 else jnp.concatenate(rows, axis=0)  # (B, H)

                @pl.when(s == 0)                  # t == T-1: y = 0 + emission
                def _():
                    y_ref[...] = e

                @pl.when(s != 0)                  # y = matmul_a_logb(alpha, y) + emission
                def _():
                    y = y_ref[...]
                    y_max = jnp.max(y, axis=1, keepdims=True)              # (B, 1)
                    y_exp = jnp.exp(y - y_max)                             # (B, H)
                    c = jnp.dot(y_exp, alphaT_ref[...],
                                preferred_element_type=jnp.float32)        # (B, H) MXU
                    y_ref[...] = jnp.log(c) + y_max + e

                @pl.when(s == T - 1)              # final gamma projection -> (B, 1)
                def _():
                    y = y_ref[...]
                    y_max = jnp.max(y, axis=1, keepdims=True)
                    y_exp = jnp.exp(y - y_max)
                    c = jnp.sum(y_exp * gamma_ref[...], axis=1, keepdims=True)
                    out_ref[...] = jnp.log(c) + y_max

    return kernel


@jax.jit
def hmm_forward_pallas(alpha_exp, beta, gamma_exp, input_ids):
    """Pallas implementation of HMM.forward.  Returns (1, B) float32."""
    H = alpha_exp.shape[0]
    V = beta.shape[1]
    B, T = input_ids.shape

    TS = max(1, min(T, 16))                     # timesteps per grid step
    num_chunks = (T + TS - 1) // TS

    betaT = jnp.asarray(beta, jnp.float32).T        # (V, H) -- hidden on lanes
    alphaT = jnp.asarray(alpha_exp, jnp.float32).T  # (H, H)
    gamma = jnp.asarray(gamma_exp, jnp.float32)     # (1, H)
    ids = input_ids.astype(jnp.int32)               # (B, T)

    kernel = _make_hmm_kernel(T, TS, B)

    out = pl.pallas_call(
        kernel,
        out_shape=jax.ShapeDtypeStruct((B, 1), jnp.float32),
        grid_spec=pltpu.PrefetchScalarGridSpec(
            num_scalar_prefetch=1,               # input_ids -> SMEM
            grid=(num_chunks,),
            in_specs=[
                pl.BlockSpec((V, H), lambda ci, ids_r: (0, 0)),   # beta^T (resident)
                pl.BlockSpec((H, H), lambda ci, ids_r: (0, 0)),   # alpha^T (resident)
                pl.BlockSpec((1, H), lambda ci, ids_r: (0, 0)),   # gamma   (resident)
            ],
            out_specs=pl.BlockSpec((B, 1), lambda ci, ids_r: (0, 0)),
            scratch_shapes=[pltpu.VMEM((B, H), jnp.float32)],     # carried y
        ),
        compiler_params=pltpu.CompilerParams(
            dimension_semantics=("arbitrary",),   # sequential time recursion
        ),
    )(ids, betaT, alphaT, gamma)

    return out.T                                  # (1, B), matches PyTorch


# ----------------------------- pure-JAX reference -----------------------------

def _matmul_a_logb(A, Bm):
    b_max = jnp.max(Bm, axis=0, keepdims=True)
    return jnp.log(A @ jnp.exp(Bm - b_max)) + b_max


def hmm_forward_ref(alpha_exp, beta, gamma_exp, input_ids):
    H = alpha_exp.shape[0]
    B, T = input_ids.shape
    y = jnp.zeros((H, B), jnp.float32)
    for t in range(T - 1, -1, -1):
        if t != T - 1:
            y = _matmul_a_logb(alpha_exp, y)
        y = beta[:, input_ids[:, t]] + y
    return _matmul_a_logb(gamma_exp, y)


# ----------------------------- parameter init (mirrors __init__) -----------------------------

def init_hmm_params(key, hidden_size, vocab_size, eos_token_id):
    k1, k2, k3 = jax.random.split(key, 3)
    alpha_exp = jax.nn.softmax(
        jax.random.normal(k1, (hidden_size, hidden_size), jnp.float32), axis=-1)
    beta = jax.nn.log_softmax(
        jax.random.normal(k2, (hidden_size, vocab_size), jnp.float32), axis=-1)
    gamma_exp = jax.nn.softmax(
        jax.random.normal(k3, (1, hidden_size), jnp.float32), axis=-1)

    # sep_token_id is None branch:
    beta = beta.at[-1, eos_token_id].set(1e10)
    beta = beta.at[:-1, eos_token_id].set(-1e10)
    beta = jax.nn.log_softmax(beta, axis=-1)
    alpha_exp = alpha_exp.at[-1, :].set(1e-10)
    alpha_exp = alpha_exp.at[-1, -1].set(1.0)
    return alpha_exp, beta, gamma_exp


# ----------------------------- main -----------------------------

if __name__ == "__main__":
    HIDDEN, VOCAB, BATCH, SEQ = 32, 64, 8, 20   # SEQ > 16 exercises the chunk-tail guard
    EOS = 1

    key = jax.random.PRNGKey(0)
    pkey, ikey = jax.random.split(key)
    alpha_exp, beta, gamma_exp = init_hmm_params(pkey, HIDDEN, VOCAB, EOS)
    input_ids = jax.random.randint(ikey, (BATCH, SEQ), 0, VOCAB, dtype=jnp.int32)

    out = hmm_forward_pallas(alpha_exp, beta, gamma_exp, input_ids)
    out = jax.block_until_ready(out)

    ref = hmm_forward_ref(alpha_exp, beta, gamma_exp, input_ids)
    assert out.shape == (1, BATCH) and out.dtype == jnp.float32
    assert jnp.allclose(out, ref, rtol=1e-4, atol=1e-4), (out, ref)

    print("KERNEL_OK")
</pallas_src>

<mosaic_0001>
module attributes {stable_mosaic.version = 11 : i64} {
  func.func @kernel(%arg0: i32, %arg1: memref<8x20xi32, #tpu.memory_space<smem>>, %arg2: memref<64x32xf32, #tpu.memory_space<vmem>>, %arg3: memref<32x32xf32, #tpu.memory_space<vmem>>, %arg4: memref<1x32xf32, #tpu.memory_space<vmem>>, %arg5: memref<8x1xf32, #tpu.memory_space<vmem>>, %arg6: memref<8x32xf32, #tpu.memory_space<vmem>>) attributes {dimension_semantics = [#tpu.dimension_semantics<arbitrary>], iteration_bounds = array<i64: 2>, scalar_prefetch = 1 : i64, scratch_operands = 1 : i64, tpu.core_type = #tpu.core_type<tc>, window_params = [{pipeline_mode = #tpu.pipeline_mode<synchronous>, transform_indices = @transform_0, window_bounds = array<i64: 64, 32>}, {pipeline_mode = #tpu.pipeline_mode<synchronous>, transform_indices = @transform_1, window_bounds = array<i64: 32, 32>}, {pipeline_mode = #tpu.pipeline_mode<synchronous>, transform_indices = @transform_2, window_bounds = array<i64: 1, 32>}, {pipeline_mode = #tpu.pipeline_mode<synchronous>, transform_indices = @transform_3, window_bounds = array<i64: 8, 1>}]} {
    %c16_i32 = arith.constant 16 : i32
    %0 = arith.muli %arg0, %c16_i32 : i32
    %c0_i32 = arith.constant 0 : i32
    %1 = arith.addi %0, %c0_i32 : i32
    %c19_i32 = arith.constant 19 : i32
    %2 = arith.subi %c19_i32, %1 : i32
    %c20_i32 = arith.constant 20 : i32
    %3 = arith.cmpi slt, %1, %c20_i32 : i32
    %4 = arith.extui %3 : i1 to i32
    %c0_i32_0 = arith.constant 0 : i32
    %5 = arith.cmpi ne, %4, %c0_i32_0 : i32
    scf.if %5 {
      %c0 = arith.constant 0 : index
      %96 = arith.index_cast %2 : i32 to index
      %97 = memref.load %arg1[%c0, %96] : memref<8x20xi32, #tpu.memory_space<smem>>
      %98 = arith.index_cast %97 : i32 to index
      %c0_61 = arith.constant 0 : index
      %99 = vector.load %arg2[%98, %c0_61] : memref<64x32xf32, #tpu.memory_space<vmem>>, vector<1x32xf32>
      %c1 = arith.constant 1 : index
      %100 = arith.index_cast %2 : i32 to index
      %101 = memref.load %arg1[%c1, %100] : memref<8x20xi32, #tpu.memory_space<smem>>
      %102 = arith.index_cast %101 : i32 to index
      %c0_62 = arith.constant 0 : index
      %103 = vector.load %arg2[%102, %c0_62] : memref<64x32xf32, #tpu.memory_space<vmem>>, vector<1x32xf32>
      %c2 = arith.constant 2 : index
      %104 = arith.index_cast %2 : i32 to index
      %105 = memref.load %arg1[%c2, %104] : memref<8x20xi32, #tpu.memory_space<smem>>
      %106 = arith.index_cast %105 : i32 to index
      %c0_63 = arith.constant 0 : index
      %107 = vector.load %arg2[%106, %c0_63] : memref<64x32xf32, #tpu.memory_space<vmem>>, vector<1x32xf32>
      %c3 = arith.constant 3 : index
      %108 = arith.index_cast %2 : i32 to index
      %109 = memref.load %arg1[%c3, %108] : memref<8x20xi32, #tpu.memory_space<smem>>
      %110 = arith.index_cast %109 : i32 to index
      %c0_64 = arith.constant 0 : index
      %111 = vector.load %arg2[%110, %c0_64] : memref<64x32xf32, #tpu.memory_space<vmem>>, vector<1x32xf32>
      %c4 = arith.constant 4 : index
      %112 = arith.index_cast %2 : i32 to index
      %113 = memref.load %arg1[%c4, %112] : memref<8x20xi32, #tpu.memory_space<smem>>
      %114 = arith.index_cast %113 : i32 to index
      %c0_65 = arith.constant 0 : index
      %115 = vector.load %arg2[%114, %c0_65] : memref<64x32xf32, #tpu.memory_space<vmem>>, vector<1x32xf32>
      %c5 = arith.constant 5 : index
      %116 = arith.index_cast %2 : i32 to index
      %117 = memref.load %arg1[%c5, %116] : memref<8x20xi32, #tpu.memory_space<smem>>
      %118 = arith.index_cast %117 : i32 to index
      %c0_66 = arith.constant 0 : index
      %119 = vector.load %arg2[%118, %c0_66] : memref<64x32xf32, #tpu.memory_space<vmem>>, vector<1x32xf32>
      %c6 = arith.constant 6 : index
      %120 = arith.index_cast %2 : i32 to index
      %121 = memref.load %arg1[%c6, %120] : memref<8x20xi32, #tpu.memory_space<smem>>
      %122 = arith.index_cast %121 : i32 to index
      %c0_67 = arith.constant 0 : index
      %123 = vector.load %arg2[%122, %c0_67] : memref<64x32xf32, #tpu.memory_space<vmem>>, vector<1x32xf32>
      %c7 = arith.constant 7 : index
      %124 = arith.index_cast %2 : i32 to index
      %125 = memref.load %arg1[%c7, %124] : memref<8x20xi32, #tpu.memory_space<smem>>
      %126 = arith.index_cast %125 : i32 to index
      %c0_68 = arith.constant 0 : index
      %127 = vector.load %arg2[%126, %c0_68] : memref<64x32xf32, #tpu.memory_space<vmem>>, vector<1x32xf32>
      %128 = tpu.concatenate %99, %103, %107, %111, %115, %119, %123, %127 in 0 : vector<1x32xf32>, vector<1x32xf32>, vector<1x32xf32>, vector<1x32xf32>, vector<1x32xf32>, vector<1x32xf32>, vector<1x32xf32>, vector<1x32xf32> -> vector<8x32xf32>
      %c0_i32_69 = arith.constant 0 : i32
      %129 = arith.cmpi eq, %1, %c0_i32_69 : i32
      %130 = arith.extui %129 : i1 to i32
      %c0_i32_70 = arith.constant 0 : i32
      %131 = arith.cmpi ne, %130, %c0_i32_70 : i32
      scf.if %131 {
        %c0_75 = arith.constant 0 : index
        %c0_76 = arith.constant 0 : index
        %138 = vector.load %arg6[%c0_75, %c0_76] : memref<8x32xf32, #tpu.memory_space<vmem>>, vector<8x32xf32>
        tpu.vector_store %arg6[%c0_75, %c0_76], %128 {strides = array<i32>} : memref<8x32xf32, #tpu.memory_space<vmem>>, vector<8x32xf32>,
      } else {
      }
      %c0_i32_71 = arith.constant 0 : i32
      %132 = arith.cmpi ne, %1, %c0_i32_71 : i32
      %133 = arith.extui %132 : i1 to i32
      %c0_i32_72 = arith.constant 0 : i32
      %134 = arith.cmpi ne, %133, %c0_i32_72 : i32
      scf.if %134 {
        %c0_75 = arith.constant 0 : index
        %c0_76 = arith.constant 0 : index
        %138 = vector.load %arg6[%c0_75, %c0_76] : memref<8x32xf32, #tpu.memory_space<vmem>>, vector<8x32xf32>
        %cst = arith.constant dense<0xFF800000> : vector<8xf32>
        %139 = vector.multi_reduction <maximumf>, %138, %cst [1] : vector<8x32xf32> to vector<8xf32>
        %140 = vector.shape_cast %139 : vector<8xf32> to vector<8x1xf32>
        %141 = vector.broadcast %140 : vector<8x1xf32> to vector<8x32xf32>
        %142 = arith.subf %138, %141 : vector<8x32xf32>
        %143 = math.exp %142 : vector<8x32xf32>
        %c0_77 = arith.constant 0 : index
        %c0_78 = arith.constant 0 : index
        %144 = vector.load %arg3[%c0_77, %c0_78] : memref<32x32xf32, #tpu.memory_space<vmem>>, vector<32x32xf32>
        %cst_79 = arith.constant dense<0.000000e+00> : vector<8x32xf32>
        %145 = tpu.matmul %143, %144, %cst_79 {dimension_numbers = #tpu.dot_dimension_numbers<[1], [0], [0], [1], [0, 0, 1, 1], [], []>} : vector<8x32xf32>, vector<32x32xf32>, vector<8x32xf32> -> vector<8x32xf32>
        %146 = math.log %145 : vector<8x32xf32>
        %147 = vector.broadcast %140 : vector<8x1xf32> to vector<8x32xf32>
        %148 = arith.addf %146, %147 : vector<8x32xf32>
        %149 = arith.addf %148, %128 : vector<8x32xf32>
        %c0_80 = arith.constant 0 : index
        %c0_81 = arith.constant 0 : index
        %150 = vector.load %arg6[%c0_80, %c0_81] : memref<8x32xf32, #tpu.memory_space<vmem>>, vector<8x32xf32>
        tpu.vector_store %arg6[%c0_80, %c0_81], %149 {strides = array<i32>} : memref<8x32xf32, #tpu.memory_space<vmem>>, vector<8x32xf32>,
      } else {
      }
      %c19_i32_73 = arith.constant 19 : i32
      %135 = arith.cmpi eq, %1, %c19_i32_73 : i32
      %136 = arith.extui %135 : i1 to i32
      %c0_i32_74 = arith.constant 0 : i32
      %137 = arith.cmpi ne, %136, %c0_i32_74 : i32
      scf.if %137 {
        %c0_75 = arith.constant 0 : index
        %c0_76 = arith.constant 0 : index
        %138 = vector.load %arg6[%c0_75, %c0_76] : memref<8x32xf32, #tpu.memory_space<vmem>>, vector<8x32xf32>
        %cst = arith.constant dense<0xFF800000> : vector<8xf32>
        %139 = vector.multi_reduction <maximumf>, %138, %cst [1] : vector<8x32xf32> to vector<8xf32>
        %140 = vector.shape_cast %139 : vector<8xf32> to vector<8x1xf32>
        %141 = vector.broadcast %140 : vector<8x1xf32> to vector<8x32xf32>
        %142 = arith.subf %138, %141 : vector<8x32xf32>
        %143 = math.exp %142 : vector<8x32xf32>
        %c0_77 = arith.constant 0 : index
        %c0_78 = arith.constant 0 : index
        %144 = vector.load %arg4[%c0_77, %c0_78] : memref<1x32xf32, #tpu.memory_space<vmem>>, vector<1x32xf32>
        %145 = vector.broadcast %144 : vector<1x32xf32> to vector<8x32xf32>
        %146 = arith.mulf %143, %145 : vector<8x32xf32>
        %cst_79 = arith.constant dense<0.000000e+00> : vector<8xf32>
        %147 = vector.multi_reduction <add>, %146, %cst_79 [1] : vector<8x32xf32> to vector<8xf32>
        %148 = vector.shape_cast %147 : vector<8xf32> to vector<8x1xf32>
        %149 = math.log %148 : vector<8x1xf32>
        %150 = arith.addf %149, %140 : vector<8x1xf32>
        %c0_80 = arith.constant 0 : index
        %c0_81 = arith.constant 0 : index
        %151 = vector.load %arg5[%c0_80, %c0_81] : memref<8x1xf32, #tpu.memory_space<vmem>>, vector<8x1xf32>
        tpu.vector_store %arg5[%c0_80, %c0_81], %150 {strides = array<i32>} : memref<8x1xf32, #tpu.memory_space<vmem>>, vector<8x1xf32>,
      } else {
      }
    } else {
    }
    %c16_i32_1 = arith.constant 16 : i32
    %6 = arith.muli %arg0, %c16_i32_1 : i32
    %c1_i32 = arith.constant 1 : i32
    %7 = arith.addi %6, %c1_i32 : i32
    %c19_i32_2 = arith.constant 19 : i32
    %8 = arith.subi %c19_i32_2, %7 : i32
    %c20_i32_3 = arith.constant 20 : i32
    %9 = arith.cmpi slt, %7, %c20_i32_3 : i32
    %10 = arith.extui %9 : i1 to i32
    %c0_i32_4 = arith.constant 0 : i32
    %11 = arith.cmpi ne, %10, %c0_i32_4 : i32
    scf.if %11 {
      %c0 = arith.constant 0 : index
      %96 = arith.index_cast %8 : i32 to index
      %97 = memref.load %arg1[%c0, %96] : memref<8x20xi32, #tpu.memory_space<smem>>
      %98 = arith.index_cast %97 : i32 to index
      %c0_61 = arith.constant 0 : index
      %99 = vector.load %arg2[%98, %c0_61] : memref<64x32xf32, #tpu.memory_space<vmem>>, vector<1x32xf32>
      %c1 = arith.constant 1 : index
      %100 = arith.index_cast %8 : i32 to index
      %101 = memref.load %arg1[%c1, %100] : memref<8x20xi32, #tpu.memory_space<smem>>
      %102 = arith.index_cast %101 : i32 to index
      %c0_62 = arith.constant 0 : index
      %103 = vector.load %arg2[%102, %c0_62] : memref<64x32xf32, #tpu.memory_space<vmem>>, vector<1x32xf32>
      %c2 = arith.constant 2 : index
      %104 = arith.index_cast %8 : i32 to index
      %105 = memref.load %arg1[%c2, %104] : memref<8x20xi32, #tpu.memory_space<smem>>
      %106 = arith.index_cast %105 : i32 to index
      %c0_63 = arith.constant 0 : index
      %107 = vector.load %arg2[%106, %c0_63] : memref<64x32xf32, #tpu.memory_space<vmem>>, vector<1x32xf32>
      %c3 = arith.constant 3 : index
      %108 = arith.index_cast %8 : i32 to index
      %109 = memref.load %arg1[%c3, %108] : memref<8x20xi32, #tpu.memory_space<smem>>
      %110 = arith.index_cast %109 : i32 to index
      %c0_64 = arith.constant 0 : index
      %111 = vector.load %arg2[%110, %c0_64] : memref<64x32xf32, #tpu.memory_space<vmem>>, vector<1x32xf32>
      %c4 = arith.constant 4 : index
      %112 = arith.index_cast %8 : i32 to index
      %113 = memref.load %arg1[%c4, %112] : memref<8x20xi32, #tpu.memory_space<smem>>
      %114 = arith.index_cast %113 : i32 to index
      %c0_65 = arith.constant 0 : index
      %115 = vector.load %arg2[%114, %c0_65] : memref<64x32xf32, #tpu.memory_space<vmem>>, vector<1x32xf32>
      %c5 = arith.constant 5 : index
      %116 = arith.index_cast %8 : i32 to index
      %117 = memref.load %arg1[%c5, %116] : memref<8x20xi32, #tpu.memory_space<smem>>
      %118 = arith.index_cast %117 : i32 to index
      %c0_66 = arith.constant 0 : index
      %119 = vector.load %arg2[%118, %c0_66] : memref<64x32xf32, #tpu.memory_space<vmem>>, vector<1x32xf32>
      %c6 = arith.constant 6 : index
      %120 = arith.index_cast %8 : i32 to index
      %121 = memref.load %arg1[%c6, %120] : memref<8x20xi32, #tpu.memory_space<smem>>
      %122 = arith.index_cast %121 : i32 to index
      %c0_67 = arith.constant 0 : index
      %123 = vector.load %arg2[%122, %c0_67] : memref<64x32xf32, #tpu.memory_space<vmem>>, vector<1x32xf32>
      %c7 = arith.constant 7 : index
      %124 = arith.index_cast %8 : i32 to index
      %125 = memref.load %arg1[%c7, %124] : memref<8x20xi32, #tpu.memory_space<smem>>
      %126 = arith.index_cast %125 : i32 to index
      %c0_68 = arith.constant 0 : index
      %127 = vector.load %arg2[%126, %c0_68] : memref<64x32xf32, #tpu.memory_space<vmem>>, vector<1x32xf32>
      %128 = tpu.concatenate %99, %103, %107, %111, %115, %119, %123, %127 in 0 : vector<1x32xf32>, vector<1x32xf32>, vector<1x32xf32>, vector<1x32xf32>, vector<1x32xf32>, vector<1x32xf32>, vector<1x32xf32>, vector<1x32xf32> -> vector<8x32xf32>
      %c0_i32_69 = arith.constant 0 : i32
      %129 = arith.cmpi eq, %7, %c0_i32_69 : i32
      %130 = arith.extui %129 : i1 to i32
      %c0_i32_70 = arith.constant 0 : i32
      %131 = arith.cmpi ne, %130, %c0_i32_70 : i32
      scf.if %131 {
        %c0_75 = arith.constant 0 : index
        %c0_76 = arith.constant 0 : index
        %138 = vector.load %arg6[%c0_75, %c0_76] : memref<8x32xf32, #tpu.memory_space<vmem>>, vector<8x32xf32>
        tpu.vector_store %arg6[%c0_75, %c0_76], %128 {strides = array<i32>} : memref<8x32xf32, #tpu.memory_space<vmem>>, vector<8x32xf32>,
      } else {
      }
      %c0_i32_71 = arith.constant 0 : i32
      %132 = arith.cmpi ne, %7, %c0_i32_71 : i32
      %133 = arith.extui %132 : i1 to i32
      %c0_i32_72 = arith.constant 0 : i32
      %134 = arith.cmpi ne, %133, %c0_i32_72 : i32
      scf.if %134 {
        %c0_75 = arith.constant 0 : index
        %c0_76 = arith.constant 0 : index
        %138 = vector.load %arg6[%c0_75, %c0_76] : memref<8x32xf32, #tpu.memory_space<vmem>>, vector<8x32xf32>
        %cst = arith.constant dense<0xFF800000> : vector<8xf32>
        %139 = vector.multi_reduction <maximumf>, %138, %cst [1] : vector<8x32xf32> to vector<8xf32>
        %140 = vector.shape_cast %139 : vector<8xf32> to vector<8x1xf32>
        %141 = vector.broadcast %140 : vector<8x1xf32> to vector<8x32xf32>
        %142 = arith.subf %138, %141 : vector<8x32xf32>
        %143 = math.exp %142 : vector<8x32xf32>
        %c0_77 = arith.constant 0 : index
        %c0_78 = arith.constant 0 : index
        %144 = vector.load %arg3[%c0_77, %c0_78] : memref<32x32xf32, #tpu.memory_space<vmem>>, vector<32x32xf32>
        %cst_79 = arith.constant dense<0.000000e+00> : vector<8x32xf32>
        %145 = tpu.matmul %143, %144, %cst_79 {dimension_numbers = #tpu.dot_dimension_numbers<[1], [0], [0], [1], [0, 0, 1, 1], [], []>} : vector<8x32xf32>, vector<32x32xf32>, vector<8x32xf32> -> vector<8x32xf32>
        %146 = math.log %145 : vector<8x32xf32>
        %147 = vector.broadcast %140 : vector<8x1xf32> to vector<8x32xf32>
        %148 = arith.addf %146, %147 : vector<8x32xf32>
        %149 = arith.addf %148, %128 : vector<8x32xf32>
        %c0_80 = arith.constant 0 : index
        %c0_81 = arith.constant 0 : index
        %150 = vector.load %arg6[%c0_80, %c0_81] : memref<8x32xf32, #tpu.memory_space<vmem>>, vector<8x32xf32>
        tpu.vector_store %arg6[%c0_80, %c0_81], %149 {strides = array<i32>} : memref<8x32xf32, #tpu.memory_space<vmem>>, vector<8x32xf32>,
      } else {
      }
      %c19_i32_73 = arith.constant 19 : i32
      %135 = arith.cmpi eq, %7, %c19_i32_73 : i32
      %136 = arith.extui %135 : i1 to i32
      %c0_i32_74 = arith.constant 0 : i32
      %137 = arith.cmpi ne, %136, %c0_i32_74 : i32
      scf.if %137 {
        %c0_75 = arith.constant 0 : index
        %c0_76 = arith.constant 0 : index
        %138 = vector.load %arg6[%c0_75, %c0_76] : memref<8x32xf32, #tpu.memory_space<vmem>>, vector<8x32xf32>
        %cst = arith.constant dense<0xFF800000> : vector<8xf32>
        %139 = vector.multi_reduction <maximumf>, %138, %cst [1] : vector<8x32xf32> to vector<8xf32>
        %140 = vector.shape_cast %139 : vector<8xf32> to vector<8x1xf32>
        %141 = vector.broadcast %140 : vector<8x1xf32> to vector<8x32xf32>
        %142 = arith.subf %138, %141 : vector<8x32xf32>
        %143 = math.exp %142 : vector<8x32xf32>
        %c0_77 = arith.constant 0 : index
        %c0_78 = arith.constant 0 : index
        %144 = vector.load %arg4[%c0_77, %c0_78] : memref<1x32xf32, #tpu.memory_space<vmem>>, vector<1x32xf32>
        %145 = vector.broadcast %144 : vector<1x32xf32> to vector<8x32xf32>
        %146 = arith.mulf %143, %145 : vector<8x32xf32>
        %cst_79 = arith.constant dense<0.000000e+00> : vector<8xf32>
        %147 = vector.multi_reduction <add>, %146, %cst_79 [1] : vector<8x32xf32> to vector<8xf32>
        %148 = vector.shape_cast %147 : vector<8xf32> to vector<8x1xf32>
        %149 = math.log %148 : vector<8x1xf32>
        %150 = arith.addf %149, %140 : vector<8x1xf32>
        %c0_80 = arith.constant 0 : index
        %c0_81 = arith.constant 0 : index
        %151 = vector.load %arg5[%c0_80, %c0_81] : memref<8x1xf32, #tpu.memory_space<vmem>>, vector<8x1xf32>
        tpu.vector_store %arg5[%c0_80, %c0_81], %150 {strides = array<i32>} : memref<8x1xf32, #tpu.memory_space<vmem>>, vector<8x1xf32>,
      } else {
      }
    } else {
    }
    %c16_i32_5 = arith.constant 16 : i32
    %12 = arith.muli %arg0, %c16_i32_5 : i32
    %c2_i32 = arith.constant 2 : i32
    %13 = arith.addi %12, %c2_i32 : i32
    %c19_i32_6 = arith.constant 19 : i32
    %14 = arith.subi %c19_i32_6, %13 : i32
    %c20_i32_7 = arith.constant 20 : i32
    %15 = arith.cmpi slt, %13, %c20_i32_7 : i32
    %16 = arith.extui %15 : i1 to i32
    %c0_i32_8 = arith.constant 0 : i32
    %17 = arith.cmpi ne, %16, %c0_i32_8 : i32
    scf.if %17 {
      %c0 = arith.constant 0 : index
      %96 = arith.index_cast %14 : i32 to index
      %97 = memref.load %arg1[%c0, %96] : memref<8x20xi32, #tpu.memory_space<smem>>
      %98 = arith.index_cast %97 : i32 to index
      %c0_61 = arith.constant 0 : index
      %99 = vector.load %arg2[%98, %c0_61] : memref<64x32xf32, #tpu.memory_space<vmem>>, vector<1x32xf32>
      %c1 = arith.constant 1 : index
      %100 = arith.index_cast %14 : i32 to index
      %101 = memref.load %arg1[%c1, %100] : memref<8x20xi32, #tpu.memory_space<smem>>
      %102 = arith.index_cast %101 : i32 to index
      %c0_62 = arith.constant 0 : index
      %103 = vector.load %arg2[%102, %c0_62] : memref<64x32xf32, #tpu.memory_space<vmem>>, vector<1x32xf32>
      %c2 = arith.constant 2 : index
      %104 = arith.index_cast %14 : i32 to index
      %105 = memref.load %arg1[%c2, %104] : memref<8x20xi32, #tpu.memory_space<smem>>
      %106 = arith.index_cast %105 : i32 to index
      %c0_63 = arith.constant 0 : index
      %107 = vector.load %arg2[%106, %c0_63] : memref<64x32xf32, #tpu.memory_space<vmem>>, vector<1x32xf32>
      %c3 = arith.constant 3 : index
      %108 = arith.index_cast %14 : i32 to index
      %109 = memref.load %arg1[%c3, %108] : memref<8x20xi32, #tpu.memory_space<smem>>
      %110 = arith.index_cast %109 : i32 to index
      %c0_64 = arith.constant 0 : index
      %111 = vector.load %arg2[%110, %c0_64] : memref<64x32xf32, #tpu.memory_space<vmem>>, vector<1x32xf32>
      %c4 = arith.constant 4 : index
      %112 = arith.index_cast %14 : i32 to index
      %113 = memref.load %arg1[%c4, %112] : memref<8x20xi32, #tpu.memory_space<smem>>
      %114 = arith.index_cast %113 : i32 to index
      %c0_65 = arith.constant 0 : index
      %115 = vector.load %arg2[%114, %c0_65] : memref<64x32xf32, #tpu.memory_space<vmem>>, vector<1x32xf32>
      %c5 = arith.constant 5 : index
      %116 = arith.index_cast %14 : i32 to index
      %117 = memref.load %arg1[%c5, %116] : memref<8x20xi32, #tpu.memory_space<smem>>
      %118 = arith.index_cast %117 : i32 to index
      %c0_66 = arith.constant 0 : index
      %119 = vector.load %arg2[%118, %c0_66] : memref<64x32xf32, #tpu.memory_space<vmem>>, vector<1x32xf32>
      %c6 = arith.constant 6 : index
      %120 = arith.index_cast %14 : i32 to index
      %121 = memref.load %arg1[%c6, %120] : memref<8x20xi32, #tpu.memory_space<smem>>
      %122 = arith.index_cast %121 : i32 to index
      %c0_67 = arith.constant 0 : index
      %123 = vector.load %arg2[%122, %c0_67] : memref<64x32xf32, #tpu.memory_space<vmem>>, vector<1x32xf32>
      %c7 = arith.constant 7 : index
      %124 = arith.index_cast %14 : i32 to index
      %125 = memref.load %arg1[%c7, %124] : memref<8x20xi32, #tpu.memory_space<smem>>
      %126 = arith.index_cast %125 : i32 to index
      %c0_68 = arith.constant 0 : index
      %127 = vector.load %arg2[%126, %c0_68] : memref<64x32xf32, #tpu.memory_space<vmem>>, vector<1x32xf32>
      %128 = tpu.concatenate %99, %103, %107, %111, %115, %119, %123, %127 in 0 : vector<1x32xf32>, vector<1x32xf32>, vector<1x32xf32>, vector<1x32xf32>, vector<1x32xf32>, vector<1x32xf32>, vector<1x32xf32>, vector<1x32xf32> -> vector<8x32xf32>
      %c0_i32_69 = arith.constant 0 : i32
      %129 = arith.cmpi eq, %13, %c0_i32_69 : i32
      %130 = arith.extui %129 : i1 to i32
      %c0_i32_70 = arith.constant 0 : i32
      %131 = arith.cmpi ne, %130, %c0_i32_70 : i32
      scf.if %131 {
        %c0_75 = arith.constant 0 : index
        %c0_76 = arith.constant 0 : index
        %138 = vector.load %arg6[%c0_75, %c0_76] : memref<8x32xf32, #tpu.memory_space<vmem>>, vector<8x32xf32>
        tpu.vector_store %arg6[%c0_75, %c0_76], %128 {strides = array<i32>} : memref<8x32xf32, #tpu.memory_space<vmem>>, vector<8x32xf32>,
      } else {
      }
      %c0_i32_71 = arith.constant 0 : i32
      %132 = arith.cmpi ne, %13, %c0_i32_71 : i32
      %133 = arith.extui %132 : i1 to i32
      %c0_i32_72 = arith.constant 0 : i32
      %134 = arith.cmpi ne, %133, %c0_i32_72 : i32
      scf.if %134 {
        %c0_75 = arith.constant 0 : index
        %c0_76 = arith.constant 0 : index
        %138 = vector.load %arg6[%c0_75, %c0_76] : memref<8x32xf32, #tpu.memory_space<vmem>>, vector<8x32xf32>
        %cst = arith.constant dense<0xFF800000> : vector<8xf32>
        %139 = vector.multi_reduction <maximumf>, %138, %cst [1] : vector<8x32xf32> to vector<8xf32>
        %140 = vector.shape_cast %139 : vector<8xf32> to vector<8x1xf32>
        %141 = vector.broadcast %140 : vector<8x1xf32> to vector<8x32xf32>
        %142 = arith.subf %138, %141 : vector<8x32xf32>
        %143 = math.exp %142 : vector<8x32xf32>
        %c0_77 = arith.constant 0 : index
        %c0_78 = arith.constant 0 : index
        %144 = vector.load %arg3[%c0_77, %c0_78] : memref<32x32xf32, #tpu.memory_space<vmem>>, vector<32x32xf32>
        %cst_79 = arith.constant dense<0.000000e+00> : vector<8x32xf32>
        %145 = tpu.matmul %143, %144, %cst_79 {dimension_numbers = #tpu.dot_dimension_numbers<[1], [0], [0], [1], [0, 0, 1, 1], [], []>} : vector<8x32xf32>, vector<32x32xf32>, vector<8x32xf32> -> vector<8x32xf32>
        %146 = math.log %145 : vector<8x32xf32>
        %147 = vector.broadcast %140 : vector<8x1xf32> to vector<8x32xf32>
        %148 = arith.addf %146, %147 : vector<8x32xf32>
        %149 = arith.addf %148, %128 : vector<8x32xf32>
        %c0_80 = arith.constant 0 : index
        %c0_81 = arith.constant 0 : index
        %150 = vector.load %arg6[%c0_80, %c0_81] : memref<8x32xf32, #tpu.memory_space<vmem>>, vector<8x32xf32>
        tpu.vector_store %arg6[%c0_80, %c0_81], %149 {strides = array<i32>} : memref<8x32xf32, #tpu.memory_space<vmem>>, vector<8x32xf32>,
      } else {
      }
      %c19_i32_73 = arith.constant 19 : i32
      %135 = arith.cmpi eq, %13, %c19_i32_73 : i32
      %136 = arith.extui %135 : i1 to i32
      %c0_i32_74 = arith.constant 0 : i32
      %137 = arith.cmpi ne, %136, %c0_i32_74 : i32
      scf.if %137 {
        %c0_75 = arith.constant 0 : index
        %c0_76 = arith.constant 0 : index
        %138 = vector.load %arg6[%c0_75, %c0_76] : memref<8x32xf32, #tpu.memory_space<vmem>>, vector<8x32xf32>
        %cst = arith.constant dense<0xFF800000> : vector<8xf32>
        %139 = vector.multi_reduction <maximumf>, %138, %cst [1] : vector<8x32xf32> to vector<8xf32>
        %140 = vector.shape_cast %139 : vector<8xf32> to vector<8x1xf32>
        %141 = vector.broadcast %140 : vector<8x1xf32> to vector<8x32xf32>
        %142 = arith.subf %138, %141 : vector<8x32xf32>
        %143 = math.exp %142 : vector<8x32xf32>
        %c0_77 = arith.constant 0 : index
        %c0_78 = arith.constant 0 : index
        %144 = vector.load %arg4[%c0_77, %c0_78] : memref<1x32xf32, #tpu.memory_space<vmem>>, vector<1x32xf32>
        %145 = vector.broadcast %144 : vector<1x32xf32> to vector<8x32xf32>
        %146 = arith.mulf %143, %145 : vector<8x32xf32>
        %cst_79 = arith.constant dense<0.000000e+00> : vector<8xf32>
        %147 = vector.multi_reduction <add>, %146, %cst_79 [1] : vector<8x32xf32> to vector<8xf32>
        %148 = vector.shape_cast %147 : vector<8xf32> to vector<8x1xf32>
        %149 = math.log %148 : vector<8x1xf32>
        %150 = arith.addf %149, %140 : vector<8x1xf32>
        %c0_80 = arith.constant 0 : index
        %c0_81 = arith.constant 0 : index
        %151 = vector.load %arg5[%c0_80, %c0_81] : memref<8x1xf32, #tpu.memory_space<vmem>>, vector<8x1xf32>
        tpu.vector_store %arg5[%c0_80, %c0_81], %150 {strides = array<i32>} : memref<8x1xf32, #tpu.memory_space<vmem>>, vector<8x1xf32>,
      } else {
      }
    } else {
    }
    %c16_i32_9 = arith.constant 16 : i32
    %18 = arith.muli %arg0, %c16_i32_9 : i32
    %c3_i32 = arith.constant 3 : i32
    %19 = arith.addi %18, %c3_i32 : i32
    %c19_i32_10 = arith.constant 19 : i32
    %20 = arith.subi %c19_i32_10, %19 : i32
    %c20_i32_11 = arith.constant 20 : i32
    %21 = arith.cmpi slt, %19, %c20_i32_11 : i32
    %22 = arith.extui %21 : i1 to i32
    %c0_i32_12 = arith.constant 0 : i32
    %23 = arith.cmpi ne, %22, %c0_i32_12 : i32
    scf.if %23 {
      %c0 = arith.constant 0 : index
      %96 = arith.index_cast %20 : i32 to index
      %97 = memref.load %arg1[%c0, %96] : memref<8x20xi32, #tpu.memory_space<smem>>
      %98 = arith.index_cast %97 : i32 to index
      %c0_61 = arith.constant 0 : index
      %99 = vector.load %arg2[%98, %c0_61] : memref<64x32xf32, #tpu.memory_space<vmem>>, vector<1x32xf32>
      %c1 = arith.constant 1 : index
      %100 = arith.index_cast %20 : i32 to index
      %101 = memref.load %arg1[%c1, %100] : memref<8x20xi32, #tpu.memory_space<smem>>
      %102 = arith.index_cast %101 : i32 to index
      %c0_62 = arith.constant 0 : index
      %103 = vector.load %arg2[%102, %c0_62] : memref<64x32xf32, #tpu.memory_space<vmem>>, vector<1x32xf32>
      %c2 = arith.constant 2 : index
      %104 = arith.index_cast %20 : i32 to index
      %105 = memref.load %arg1[%c2, %104] : memref<8x20xi32, #tpu.memory_space<smem>>
      %106 = arith.index_cast %105 : i32 to index
      %c0_63 = arith.constant 0 : index
      %107 = vector.load %arg2[%106, %c0_63] : memref<64x32xf32, #tpu.memory_space<vmem>>, vector<1x32xf32>
      %c3 = arith.constant 3 : index
      %108 = arith.index_cast %20 : i32 to index
      %109 = memref.load %arg1[%c3, %108] : memref<8x20xi32, #tpu.memory_space<smem>>
      %110 = arith.index_cast %109 : i32 to index
      %c0_64 = arith.constant 0 : index
      %111 = vector.load %arg2[%110, %c0_64] : memref<64x32xf32, #tpu.memory_space<vmem>>, vector<1x32xf32>
      %c4 = arith.constant 4 : index
      %112 = arith.index_cast %20 : i32 to index
      %113 = memref.load %arg1[%c4, %112] : memref<8x20xi32, #tpu.memory_space<smem>>
      %114 = arith.index_cast %113 : i32 to index
      %c0_65 = arith.constant 0 : index
      %115 = vector.load %arg2[%114, %c0_65] : memref<64x32xf32, #tpu.memory_space<vmem>>, vector<1x32xf32>
      %c5 = arith.constant 5 : index
      %116 = arith.index_cast %20 : i32 to index
      %117 = memref.load %arg1[%c5, %116] : memref<8x20xi32, #tpu.memory_space<smem>>
      %118 = arith.index_cast %117 : i32 to index
      %c0_66 = arith.constant 0 : index
      %119 = vector.load %arg2[%118, %c0_66] : memref<64x32xf32, #tpu.memory_space<vmem>>, vector<1x32xf32>
      %c6 = arith.constant 6 : index
      %120 = arith.index_cast %20 : i32 to index
      %121 = memref.load %arg1[%c6, %120] : memref<8x20xi32, #tpu.memory_space<smem>>
      %122 = arith.index_cast %121 : i32 to index
      %c0_67 = arith.constant 0 : index
      %123 = vector.load %arg2[%122, %c0_67] : memref<64x32xf32, #tpu.memory_space<vmem>>, vector<1x32xf32>
      %c7 = arith.constant 7 : index
      %124 = arith.index_cast %20 : i32 to index
      %125 = memref.load %arg1[%c7, %124] : memref<8x20xi32, #tpu.memory_space<smem>>
      %126 = arith.index_cast %125 : i32 to index
      %c0_68 = arith.constant 0 : index
      %127 = vector.load %arg2[%126, %c0_68] : memref<64x32xf32, #tpu.memory_space<vmem>>, vector<1x32xf32>
      %128 = tpu.concatenate %99, %103, %107, %111, %115, %119, %123, %127 in 0 : vector<1x32xf32>, vector<1x32xf32>, vector<1x32xf32>, vector<1x32xf32>, vector<1x32xf32>, vector<1x32xf32>, vector<1x32xf32>, vector<1x32xf32> -> vector<8x32xf32>
      %c0_i32_69 = arith.constant 0 : i32
      %129 = arith.cmpi eq, %19, %c0_i32_69 : i32
      %130 = arith.extui %129 : i1 to i32
      %c0_i32_70 = arith.constant 0 : i32
      %131 = arith.cmpi ne, %130, %c0_i32_70 : i32
      scf.if %131 {
        %c0_75 = arith.constant 0 : index
        %c0_76 = arith.constant 0 : index
        %138 = vector.load %arg6[%c0_75, %c0_76] : memref<8x32xf32, #tpu.memory_space<vmem>>, vector<8x32xf32>
        tpu.vector_store %arg6[%c0_75, %c0_76], %128 {strides = array<i32>} : memref<8x32xf32, #tpu.memory_space<vmem>>, vector<8x32xf32>,
      } else {
      }
      %c0_i32_71 = arith.constant 0 : i32
      %132 = arith.cmpi ne, %19, %c0_i32_71 : i32
      %133 = arith.extui %132 : i1 to i32
      %c0_i32_72 = arith.constant 0 : i32
      %134 = arith.cmpi ne, %133, %c0_i32_72 : i32
      scf.if %134 {
        %c0_75 = arith.constant 0 : index
        %c0_76 = arith.constant 0 : index
        %138 = vector.load %arg6[%c0_75, %c0_76] : memref<8x32xf32, #tpu.memory_space<vmem>>, vector<8x32xf32>
        %cst = arith.constant dense<0xFF800000> : vector<8xf32>
        %139 = vector.multi_reduction <maximumf>, %138, %cst [1] : vector<8x32xf32> to vector<8xf32>
        %140 = vector.shape_cast %139 : vector<8xf32> to vector<8x1xf32>
        %141 = vector.broadcast %140 : vector<8x1xf32> to vector<8x32xf32>
        %142 = arith.subf %138, %141 : vector<8x32xf32>
        %143 = math.exp %142 : vector<8x32xf32>
        %c0_77 = arith.constant 0 : index
        %c0_78 = arith.constant 0 : index
        %144 = vector.load %arg3[%c0_77, %c0_78] : memref<32x32xf32, #tpu.memory_space<vmem>>, vector<32x32xf32>
        %cst_79 = arith.constant dense<0.000000e+00> : vector<8x32xf32>
        %145 = tpu.matmul %143, %144, %cst_79 {dimension_numbers = #tpu.dot_dimension_numbers<[1], [0], [0], [1], [0, 0, 1, 1], [], []>} : vector<8x32xf32>, vector<32x32xf32>, vector<8x32xf32> -> vector<8x32xf32>
        %146 = math.log %145 : vector<8x32xf32>
        %147 = vector.broadcast %140 : vector<8x1xf32> to vector<8x32xf32>
        %148 = arith.addf %146, %147 : vector<8x32xf32>
        %149 = arith.addf %148, %128 : vector<8x32xf32>
        %c0_80 = arith.constant 0 : index
        %c0_81 = arith.constant 0 : index
        %150 = vector.load %arg6[%c0_80, %c0_81] : memref<8x32xf32, #tpu.memory_space<vmem>>, vector<8x32xf32>
        tpu.vector_store %arg6[%c0_80, %c0_81], %149 {strides = array<i32>} : memref<8x32xf32, #tpu.memory_space<vmem>>, vector<8x32xf32>,
      } else {
      }
      %c19_i32_73 = arith.constant 19 : i32
      %135 = arith.cmpi eq, %19, %c19_i32_73 : i32
      %136 = arith.extui %135 : i1 to i32
      %c0_i32_74 = arith.constant 0 : i32
      %137 = arith.cmpi ne, %136, %c0_i32_74 : i32
      scf.if %137 {
        %c0_75 = arith.constant 0 : index
        %c0_76 = arith.constant 0 : index
        %138 = vector.load %arg6[%c0_75, %c0_76] : memref<8x32xf32, #tpu.memory_space<vmem>>, vector<8x32xf32>
        %cst = arith.constant dense<0xFF800000> : vector<8xf32>
        %139 = vector.multi_reduction <maximumf>, %138, %cst [1] : vector<8x32xf32> to vector<8xf32>
        %140 = vector.shape_cast %139 : vector<8xf32> to vector<8x1xf32>
        %141 = vector.broadcast %140 : vector<8x1xf32> to vector<8x32xf32>
        %142 = arith.subf %138, %141 : vector<8x32xf32>
        %143 = math.exp %142 : vector<8x32xf32>
        %c0_77 = arith.constant 0 : index
        %c0_78 = arith.constant 0 : index
        %144 = vector.load %arg4[%c0_77, %c0_78] : memref<1x32xf32, #tpu.memory_space<vmem>>, vector<1x32xf32>
        %145 = vector.broadcast %144 : vector<1x32xf32> to vector<8x32xf32>
        %146 = arith.mulf %143, %145 : vector<8x32xf32>
        %cst_79 = arith.constant dense<0.000000e+00> : vector<8xf32>
        %147 = vector.multi_reduction <add>, %146, %cst_79 [1] : vector<8x32xf32> to vector<8xf32>
        %148 = vector.shape_cast %147 : vector<8xf32> to vector<8x1xf32>
        %149 = math.log %148 : vector<8x1xf32>
        %150 = arith.addf %149, %140 : vector<8x1xf32>
        %c0_80 = arith.constant 0 : index
        %c0_81 = arith.constant 0 : index
        %151 = vector.load %arg5[%c0_80, %c0_81] : memref<8x1xf32, #tpu.memory_space<vmem>>, vector<8x1xf32>
        tpu.vector_store %arg5[%c0_80, %c0_81], %150 {strides = array<i32>} : memref<8x1xf32, #tpu.memory_space<vmem>>, vector<8x1xf32>,
      } else {
      }
    } else {
    }
    %c16_i32_13 = arith.constant 16 : i32
    %24 = arith.muli %arg0, %c16_i32_13 : i32
    %c4_i32 = arith.constant 4 : i32
    %25 = arith.addi %24, %c4_i32 : i32
    %c19_i32_14 = arith.constant 19 : i32
    %26 = arith.subi %c19_i32_14, %25 : i32
    %c20_i32_15 = arith.constant 20 : i32
    %27 = arith.cmpi slt, %25, %c20_i32_15 : i32
    %28 = arith.extui %27 : i1 to i32
    %c0_i32_16 = arith.constant 0 : i32
    %29 = arith.cmpi ne, %28, %c0_i32_16 : i32
    scf.if %29 {
      %c0 = arith.constant 0 : index
      %96 = arith.index_cast %26 : i32 to index
      %97 = memref.load %arg1[%c0, %96] : memref<8x20xi32, #tpu.memory_space<smem>>
      %98 = arith.index_cast %97 : i32 to index
      %c0_61 = arith.constant 0 : index
      %99 = vector.load %arg2[%98, %c0_61] : memref<64x32xf32, #tpu.memory_space<vmem>>, vector<1x32xf32>
      %c1 = arith.constant 1 : index
      %100 = arith.index_cast %26 : i32 to index
      %101 = memref.load %arg1[%c1, %100] : memref<8x20xi32, #tpu.memory_space<smem>>
      %102 = arith.index_cast %101 : i32 to index
      %c0_62 = arith.constant 0 : index
      %103 = vector.load %arg2[%102, %c0_62] : memref<64x32xf32, #tpu.memory_space<vmem>>, vector<1x32xf32>
      %c2 = arith.constant 2 : index
      %104 = arith.index_cast %26 : i32 to index
      %105 = memref.load %arg1[%c2, %104] : memref<8x20xi32, #tpu.memory_space<smem>>
      %106 = arith.index_cast %105 : i32 to index
      %c0_63 = arith.constant 0 : index
      %107 = vector.load %arg2[%106, %c0_63] : memref<64x32xf32, #tpu.memory_space<vmem>>, vector<1x32xf32>
      %c3 = arith.constant 3 : index
      %108 = arith.index_cast %26 : i32 to index
      %109 = memref.load %arg1[%c3, %108] : memref<8x20xi32, #tpu.memory_space<smem>>
      %110 = arith.index_cast %109 : i32 to index
      %c0_64 = arith.constant 0 : index
      %111 = vector.load %arg2[%110, %c0_64] : memref<64x32xf32, #tpu.memory_space<vmem>>, vector<1x32xf32>
      %c4 = arith.constant 4 : index
      %112 = arith.index_cast %26 : i32 to index
      %113 = memref.load %arg1[%c4, %112] : memref<8x20xi32, #tpu.memory_space<smem>>
      %114 = arith.index_cast %113 : i32 to index
      %c0_65 = arith.constant 0 : index
      %115 = vector.load %arg2[%114, %c0_65] : memref<64x32xf32, #tpu.memory_space<vmem>>, vector<1x32xf32>
      %c5 = arith.constant 5 : index
      %116 = arith.index_cast %26 : i32 to index
      %117 = memref.load %arg1[%c5, %116] : memref<8x20xi32, #tpu.memory_space<smem>>
      %118 = arith.index_cast %117 : i32 to index
      %c0_66 = arith.constant 0 : index
      %119 = vector.load %arg2[%118, %c0_66] : memref<64x32xf32, #tpu.memory_space<vmem>>, vector<1x32xf32>
      %c6 = arith.constant 6 : index
      %120 = arith.index_cast %26 : i32 to index
      %121 = memref.load %arg1[%c6, %120] : memref<8x20xi32, #tpu.memory_space<smem>>
      %122 = arith.index_cast %121 : i32 to index
      %c0_67 = arith.constant 0 : index
      %123 = vector.load %arg2[%122, %c0_67] : memref<64x32xf32, #tpu.memory_space<vmem>>, vector<1x32xf32>
      %c7 = arith.constant 7 : index
      %124 = arith.index_cast %26 : i32 to index
      %125 = memref.load %arg1[%c7, %124] : memref<8x20xi32, #tpu.memory_space<smem>>
      %126 = arith.index_cast %125 : i32 to index
      %c0_68 = arith.constant 0 : index
      %127 = vector.load %arg2[%126, %c0_68] : memref<64x32xf32, #tpu.memory_space<vmem>>, vector<1x32xf32>
      %128 = tpu.concatenate %99, %103, %107, %111, %115, %119, %123, %127 in 0 : vector<1x32xf32>, vector<1x32xf32>, vector<1x32xf32>, vector<1x32xf32>, vector<1x32xf32>, vector<1x32xf32>, vector<1x32xf32>, vector<1x32xf32> -> vector<8x32xf32>
      %c0_i32_69 = arith.constant 0 : i32
      %129 = arith.cmpi eq, %25, %c0_i32_69 : i32
      %130 = arith.extui %129 : i1 to i32
      %c0_i32_70 = arith.constant 0 : i32
      %131 = arith.cmpi ne, %130, %c0_i32_70 : i32
      scf.if %131 {
        %c0_75 = arith.constant 0 : index
        %c0_76 = arith.constant 0 : index
        %138 = vector.load %arg6[%c0_75, %c0_76] : memref<8x32xf32, #tpu.memory_space<vmem>>, vector<8x32xf32>
        tpu.vector_store %arg6[%c0_75, %c0_76], %128 {strides = array<i32>} : memref<8x32xf32, #tpu.memory_space<vmem>>, vector<8x32xf32>,
      } else {
      }
      %c0_i32_71 = arith.constant 0 : i32
      %132 = arith.cmpi ne, %25, %c0_i32_71 : i32
      %133 = arith.extui %132 : i1 to i32
      %c0_i32_72 = arith.constant 0 : i32
      %134 = arith.cmpi ne, %133, %c0_i32_72 : i32
      scf.if %134 {
        %c0_75 = arith.constant 0 : index
        %c0_76 = arith.constant 0 : index
        %138 = vector.load %arg6[%c0_75, %c0_76] : memref<8x32xf32, #tpu.memory_space<vmem>>, vector<8x32xf32>
        %cst = arith.constant dense<0xFF800000> : vector<8xf32>
        %139 = vector.multi_reduction <maximumf>, %138, %cst [1] : vector<8x32xf32> to vector<8xf32>
        %140 = vector.shape_cast %139 : vector<8xf32> to vector<8x1xf32>
        %141 = vector.broadcast %140 : vector<8x1xf32> to vector<8x32xf32>
        %142 = arith.subf %138, %141 : vector<8x32xf32>
        %143 = math.exp %142 : vector<8x32xf32>
        %c0_77 = arith.constant 0 : index
        %c0_78 = arith.constant 0 : index
        %144 = vector.load %arg3[%c0_77, %c0_78] : memref<32x32xf32, #tpu.memory_space<vmem>>, vector<32x32xf32>
        %cst_79 = arith.constant dense<0.000000e+00> : vector<8x32xf32>
        %145 = tpu.matmul %143, %144, %cst_79 {dimension_numbers = #tpu.dot_dimension_numbers<[1], [0], [0], [1], [0, 0, 1, 1], [], []>} : vector<8x32xf32>, vector<32x32xf32>, vector<8x32xf32> -> vector<8x32xf32>
        %146 = math.log %145 : vector<8x32xf32>
        %147 = vector.broadcast %140 : vector<8x1xf32> to vector<8x32xf32>
        %148 = arith.addf %146, %147 : vector<8x32xf32>
        %149 = arith.addf %148, %128 : vector<8x32xf32>
        %c0_80 = arith.constant 0 : index
        %c0_81 = arith.constant 0 : index
        %150 = vector.load %arg6[%c0_80, %c0_81] : memref<8x32xf32, #tpu.memory_space<vmem>>, vector<8x32xf32>
        tpu.vector_store %arg6[%c0_80, %c0_81], %149 {strides = array<i32>} : memref<8x32xf32, #tpu.memory_space<vmem>>, vector<8x32xf32>,
      } else {
      }
      %c19_i32_73 = arith.constant 19 : i32
      %135 = arith.cmpi eq, %25, %c19_i32_73 : i32
      %136 = arith.extui %135 : i1 to i32
      %c0_i32_74 = arith.constant 0 : i32
      %137 = arith.cmpi ne, %136, %c0_i32_74 : i32
      scf.if %137 {
        %c0_75 = arith.constant 0 : index
        %c0_76 = arith.constant 0 : index
        %138 = vector.load %arg6[%c0_75, %c0_76] : memref<8x32xf32, #tpu.memory_space<vmem>>, vector<8x32xf32>
        %cst = arith.constant dense<0xFF800000> : vector<8xf32>
        %139 = vector.multi_reduction <maximumf>, %138, %cst [1] : vector<8x32xf32> to vector<8xf32>
        %140 = vector.shape_cast %139 : vector<8xf32> to vector<8x1xf32>
        %141 = vector.broadcast %140 : vector<8x1xf32> to vector<8x32xf32>
        %142 = arith.subf %138, %141 : vector<8x32xf32>
        %143 = math.exp %142 : vector<8x32xf32>
        %c0_77 = arith.constant 0 : index
        %c0_78 = arith.constant 0 : index
        %144 = vector.load %arg4[%c0_77, %c0_78] : memref<1x32xf32, #tpu.memory_space<vmem>>, vector<1x32xf32>
        %145 = vector.broadcast %144 : vector<1x32xf32> to vector<8x32xf32>
        %146 = arith.mulf %143, %145 : vector<8x32xf32>
        %cst_79 = arith.constant dense<0.000000e+00> : vector<8xf32>
        %147 = vector.multi_reduction <add>, %146, %cst_79 [1] : vector<8x32xf32> to vector<8xf32>
        %148 = vector.shape_cast %147 : vector<8xf32> to vector<8x1xf32>
        %149 = math.log %148 : vector<8x1xf32>
        %150 = arith.addf %149, %140 : vector<8x1xf32>
        %c0_80 = arith.constant 0 : index
        %c0_81 = arith.constant 0 : index
        %151 = vector.load %arg5[%c0_80, %c0_81] : memref<8x1xf32, #tpu.memory_space<vmem>>, vector<8x1xf32>
        tpu.vector_store %arg5[%c0_80, %c0_81], %150 {strides = array<i32>} : memref<8x1xf32, #tpu.memory_space<vmem>>, vector<8x1xf32>,
      } else {
      }
    } else {
    }
    %c16_i32_17 = arith.constant 16 : i32
    %30 = arith.muli %arg0, %c16_i32_17 : i32
    %c5_i32 = arith.constant 5 : i32
    %31 = arith.addi %30, %c5_i32 : i32
    %c19_i32_18 = arith.constant 19 : i32
    %32 = arith.subi %c19_i32_18, %31 : i32
    %c20_i32_19 = arith.constant 20 : i32
    %33 = arith.cmpi slt, %31, %c20_i32_19 : i32
    %34 = arith.extui %33 : i1 to i32
    %c0_i32_20 = arith.constant 0 : i32
    %35 = arith.cmpi ne, %34, %c0_i32_20 : i32
    scf.if %35 {
      %c0 = arith.constant 0 : index
      %96 = arith.index_cast %32 : i32 to index
      %97 = memref.load %arg1[%c0, %96] : memref<8x20xi32, #tpu.memory_space<smem>>
      %98 = arith.index_cast %97 : i32 to index
      %c0_61 = arith.constant 0 : index
      %99 = vector.load %arg2[%98, %c0_61] : memref<64x32xf32, #tpu.memory_space<vmem>>, vector<1x32xf32>
      %c1 = arith.constant 1 : index
      %100 = arith.index_cast %32 : i32 to index
      %101 = memref.load %arg1[%c1, %100] : memref<8x20xi32, #tpu.memory_space<smem>>
      %102 = arith.index_cast %101 : i32 to index
      %c0_62 = arith.constant 0 : index
      %103 = vector.load %arg2[%102, %c0_62] : memref<64x32xf32, #tpu.memory_space<vmem>>, vector<1x32xf32>
      %c2 = arith.constant 2 : index
      %104 = arith.index_cast %32 : i32 to index
      %105 = memref.load %arg1[%c2, %104] : memref<8x20xi32, #tpu.memory_space<smem>>
      %106 = arith.index_cast %105 : i32 to index
      %c0_63 = arith.constant 0 : index
      %107 = vector.load %arg2[%106, %c0_63] : memref<64x32xf32, #tpu.memory_space<vmem>>, vector<1x32xf32>
      %c3 = arith.constant 3 : index
      %108 = arith.index_cast %32 : i32 to index
      %109 = memref.load %arg1[%c3, %108] : memref<8x20xi32, #tpu.memory_space<smem>>
      %110 = arith.index_cast %109 : i32 to index
      %c0_64 = arith.constant 0 : index
      %111 = vector.load %arg2[%110, %c0_64] : memref<64x32xf32, #tpu.memory_space<vmem>>, vector<1x32xf32>
      %c4 = arith.constant 4 : index
      %112 = arith.index_cast %32 : i32 to index
      %113 = memref.load %arg1[%c4, %112] : memref<8x20xi32, #tpu.memory_space<smem>>
      %114 = arith.index_cast %113 : i32 to index
      %c0_65 = arith.constant 0 : index
      %115 = vector.load %arg2[%114, %c0_65] : memref<64x32xf32, #tpu.memory_space<vmem>>, vector<1x32xf32>
      %c5 = arith.constant 5 : index
      %116 = arith.index_cast %32 : i32 to index
      %117 = memref.load %arg1[%c5, %116] : memref<8x20xi32, #tpu.memory_space<smem>>
      %118 = arith.index_cast %117 : i32 to index
      %c0_66 = arith.constant 0 : index
      %119 = vector.load %arg2[%118, %c0_66] : memref<64x32xf32, #tpu.memory_space<vmem>>, vector<1x32xf32>
      %c6 = arith.constant 6 : index
      %120 = arith.index_cast %32 : i32 to index
      %121 = memref.load %arg1[%c6, %120] : memref<8x20xi32, #tpu.memory_space<smem>>
      %122 = arith.index_cast %121 : i32 to index
      %c0_67 = arith.constant 0 : index
      %123 = vector.load %arg2[%122, %c0_67] : memref<64x32xf32, #tpu.memory_space<vmem>>, vector<1x32xf32>
      %c7 = arith.constant 7 : index
      %124 = arith.index_cast %32 : i32 to index
      %125 = memref.load %arg1[%c7, %124] : memref<8x20xi32, #tpu.memory_space<smem>>
      %126 = arith.index_cast %125 : i32 to index
      %c0_68 = arith.constant 0 : index
      %127 = vector.load %arg2[%126, %c0_68] : memref<64x32xf32, #tpu.memory_space<vmem>>, vector<1x32xf32>
      %128 = tpu.concatenate %99, %103, %107, %111, %115, %119, %123, %127 in 0 : vector<1x32xf32>, vector<1x32xf32>, vector<1x32xf32>, vector<1x32xf32>, vector<1x32xf32>, vector<1x32xf32>, vector<1x32xf32>, vector<1x32xf32> -> vector<8x32xf32>
      %c0_i32_69 = arith.constant 0 : i32
      %129 = arith.cmpi eq, %31, %c0_i32_69 : i32
      %130 = arith.extui %129 : i1 to i32
      %c0_i32_70 = arith.constant 0 : i32
      %131 = arith.cmpi ne, %130, %c0_i32_70 : i32
      scf.if %131 {
        %c0_75 = arith.constant 0 : index
        %c0_76 = arith.constant 0 : index
        %138 = vector.load %arg6[%c0_75, %c0_76] : memref<8x32xf32, #tpu.memory_space<vmem>>, vector<8x32xf32>
        tpu.vector_store %arg6[%c0_75, %c0_76], %128 {strides = array<i32>} : memref<8x32xf32, #tpu.memory_space<vmem>>, vector<8x32xf32>,
      } else {
      }
      %c0_i32_71 = arith.constant 0 : i32
      %132 = arith.cmpi ne, %31, %c0_i32_71 : i32
      %133 = arith.extui %132 : i1 to i32
      %c0_i32_72 = arith.constant 0 : i32
      %134 = arith.cmpi ne, %133, %c0_i32_72 : i32
      scf.if %134 {
        %c0_75 = arith.constant 0 : index
        %c0_76 = arith.constant 0 : index
        %138 = vector.load %arg6[%c0_75, %c0_76] : memref<8x32xf32, #tpu.memory_space<vmem>>, vector<8x32xf32>
        %cst = arith.constant dense<0xFF800000> : vector<8xf32>
        %139 = vector.multi_reduction <maximumf>, %138, %cst [1] : vector<8x32xf32> to vector<8xf32>
        %140 = vector.shape_cast %139 : vector<8xf32> to vector<8x1xf32>
        %141 = vector.broadcast %140 : vector<8x1xf32> to vector<8x32xf32>
        %142 = arith.subf %138, %141 : vector<8x32xf32>
        %143 = math.exp %142 : vector<8x32xf32>
        %c0_77 = arith.constant 0 : index
        %c0_78 = arith.constant 0 : index
        %144 = vector.load %arg3[%c0_77, %c0_78] : memref<32x32xf32, #tpu.memory_space<vmem>>, vector<32x32xf32>
        %cst_79 = arith.constant dense<0.000000e+00> : vector<8x32xf32>
        %145 = tpu.matmul %143, %144, %cst_79 {dimension_numbers = #tpu.dot_dimension_numbers<[1], [0], [0], [1], [0, 0, 1, 1], [], []>} : vector<8x32xf32>, vector<32x32xf32>, vector<8x32xf32> -> vector<8x32xf32>
        %146 = math.log %145 : vector<8x32xf32>
        %147 = vector.broadcast %140 : vector<8x1xf32> to vector<8x32xf32>
        %148 = arith.addf %146, %147 : vector<8x32xf32>
        %149 = arith.addf %148, %128 : vector<8x32xf32>
        %c0_80 = arith.constant 0 : index
        %c0_81 = arith.constant 0 : index
        %150 = vector.load %arg6[%c0_80, %c0_81] : memref<8x32xf32, #tpu.memory_space<vmem>>, vector<8x32xf32>
        tpu.vector_store %arg6[%c0_80, %c0_81], %149 {strides = array<i32>} : memref<8x32xf32, #tpu.memory_space<vmem>>, vector<8x32xf32>,
      } else {
      }
      %c19_i32_73 = arith.constant 19 : i32
      %135 = arith.cmpi eq, %31, %c19_i32_73 : i32
      %136 = arith.extui %135 : i1 to i32
      %c0_i32_74 = arith.constant 0 : i32
      %137 = arith.cmpi ne, %136, %c0_i32_74 : i32
      scf.if %137 {
        %c0_75 = arith.constant 0 : index
        %c0_76 = arith.constant 0 : index
        %138 = vector.load %arg6[%c0_75, %c0_76] : memref<8x32xf32, #tpu.memory_space<vmem>>, vector<8x32xf32>
        %cst = arith.constant dense<0xFF800000> : vector<8xf32>
        %139 = vector.multi_reduction <maximumf>, %138, %cst [1] : vector<8x32xf32> to vector<8xf32>
        %140 = vector.shape_cast %139 : vector<8xf32> to vector<8x1xf32>
        %141 = vector.broadcast %140 : vector<8x1xf32> to vector<8x32xf32>
        %142 = arith.subf %138, %141 : vector<8x32xf32>
        %143 = math.exp %142 : vector<8x32xf32>
        %c0_77 = arith.constant 0 : index
        %c0_78 = arith.constant 0 : index
        %144 = vector.load %arg4[%c0_77, %c0_78] : memref<1x32xf32, #tpu.memory_space<vmem>>, vector<1x32xf32>
        %145 = vector.broadcast %144 : vector<1x32xf32> to vector<8x32xf32>
        %146 = arith.mulf %143, %145 : vector<8x32xf32>
        %cst_79 = arith.constant dense<0.000000e+00> : vector<8xf32>
        %147 = vector.multi_reduction <add>, %146, %cst_79 [1] : vector<8x32xf32> to vector<8xf32>
        %148 = vector.shape_cast %147 : vector<8xf32> to vector<8x1xf32>
        %149 = math.log %148 : vector<8x1xf32>
        %150 = arith.addf %149, %140 : vector<8x1xf32>
        %c0_80 = arith.constant 0 : index
        %c0_81 = arith.constant 0 : index
        %151 = vector.load %arg5[%c0_80, %c0_81] : memref<8x1xf32, #tpu.memory_space<vmem>>, vector<8x1xf32>
        tpu.vector_store %arg5[%c0_80, %c0_81], %150 {strides = array<i32>} : memref<8x1xf32, #tpu.memory_space<vmem>>, vector<8x1xf32>,
      } else {
      }
    } else {
    }
    %c16_i32_21 = arith.constant 16 : i32
    %36 = arith.muli %arg0, %c16_i32_21 : i32
    %c6_i32 = arith.constant 6 : i32
    %37 = arith.addi %36, %c6_i32 : i32
    %c19_i32_22 = arith.constant 19 : i32
    %38 = arith.subi %c19_i32_22, %37 : i32
    %c20_i32_23 = arith.constant 20 : i32
    %39 = arith.cmpi slt, %37, %c20_i32_23 : i32
    %40 = arith.extui %39 : i1 to i32
    %c0_i32_24 = arith.constant 0 : i32
    %41 = arith.cmpi ne, %40, %c0_i32_24 : i32
    scf.if %41 {
      %c0 = arith.constant 0 : index
      %96 = arith.index_cast %38 : i32 to index
      %97 = memref.load %arg1[%c0, %96] : memref<8x20xi32, #tpu.memory_space<smem>>
      %98 = arith.index_cast %97 : i32 to index
      %c0_61 = arith.constant 0 : index
      %99 = vector.load %arg2[%98, %c0_61] : memref<64x32xf32, #tpu.memory_space<vmem>>, vector<1x32xf32>
      %c1 = arith.constant 1 : index
      %100 = arith.index_cast %38 : i32 to index
      %101 = memref.load %arg1[%c1, %100] : memref<8x20xi32, #tpu.memory_space<smem>>
      %102 = arith.index_cast %101 : i32 to index
      %c0_62 = arith.constant 0 : index
      %103 = vector.load %arg2[%102, %c0_62] : memref<64x32xf32, #tpu.memory_space<vmem>>, vector<1x32xf32>
      %c2 = arith.constant 2 : index
      %104 = arith.index_cast %38 : i32 to index
      %105 = memref.load %arg1[%c2, %104] : memref<8x20xi32, #tpu.memory_space<smem>>
      %106 = arith.index_cast %105 : i32 to index
      %c0_63 = arith.constant 0 : index
      %107 = vector.load %arg2[%106, %c0_63] : memref<64x32xf32, #tpu.memory_space<vmem>>, vector<1x32xf32>
      %c3 = arith.constant 3 : index
      %108 = arith.index_cast %38 : i32 to index
      %109 = memref.load %arg1[%c3, %108] : memref<8x20xi32, #tpu.memory_space<smem>>
      %110 = arith.index_cast %109 : i32 to index
      %c0_64 = arith.constant 0 : index
      %111 = vector.load %arg2[%110, %c0_64] : memref<64x32xf32, #tpu.memory_space<vmem>>, vector<1x32xf32>
      %c4 = arith.constant 4 : index
      %112 = arith.index_cast %38 : i32 to index
      %113 = memref.load %arg1[%c4, %112] : memref<8x20xi32, #tpu.memory_space<smem>>
      %114 = arith.index_cast %113 : i32 to index
      %c0_65 = arith.constant 0 : index
      %115 = vector.load %arg2[%114, %c0_65] : memref<64x32xf32, #tpu.memory_space<vmem>>, vector<1x32xf32>
      %c5 = arith.constant 5 : index
      %116 = arith.index_cast %38 : i32 to index
      %117 = memref.load %arg1[%c5, %116] : memref<8x20xi32, #tpu.memory_space<smem>>
      %118 = arith.index_cast %117 : i32 to index
      %c0_66 = arith.constant 0 : index
      %119 = vector.load %arg2[%118, %c0_66] : memref<64x32xf32, #tpu.memory_space<vmem>>, vector<1x32xf32>
      %c6 = arith.constant 6 : index
      %120 = arith.index_cast %38 : i32 to index
      %121 = memref.load %arg1[%c6, %120] : memref<8x20xi32, #tpu.memory_space<smem>>
      %122 = arith.index_cast %121 : i32 to index
      %c0_67 = arith.constant 0 : index
      %123 = vector.load %arg2[%122, %c0_67] : memref<64x32xf32, #tpu.memory_space<vmem>>, vector<1x32xf32>
      %c7 = arith.constant 7 : index
      %124 = arith.index_cast %38 : i32 to index
      %125 = memref.load %arg1[%c7, %124] : memref<8x20xi32, #tpu.memory_space<smem>>
      %126 = arith.index_cast %125 : i32 to index
      %c0_68 = arith.constant 0 : index
      %127 = vector.load %arg2[%126, %c0_68] : memref<64x32xf32, #tpu.memory_space<vmem>>, vector<1x32xf32>
      %128 = tpu.concatenate %99, %103, %107, %111, %115, %119, %123, %127 in 0 : vector<1x32xf32>, vector<1x32xf32>, vector<1x32xf32>, vector<1x32xf32>, vector<1x32xf32>, vector<1x32xf32>, vector<1x32xf32>, vector<1x32xf32> -> vector<8x32xf32>
      %c0_i32_69 = arith.constant 0 : i32
      %129 = arith.cmpi eq, %37, %c0_i32_69 : i32
      %130 = arith.extui %129 : i1 to i32
      %c0_i32_70 = arith.constant 0 : i32
      %131 = arith.cmpi ne, %130, %c0_i32_70 : i32
      scf.if %131 {
        %c0_75 = arith.constant 0 : index
        %c0_76 = arith.constant 0 : index
        %138 = vector.load %arg6[%c0_75, %c0_76] : memref<8x32xf32, #tpu.memory_space<vmem>>, vector<8x32xf32>
        tpu.vector_store %arg6[%c0_75, %c0_76], %128 {strides = array<i32>} : memref<8x32xf32, #tpu.memory_space<vmem>>, vector<8x32xf32>,
      } else {
      }
      %c0_i32_71 = arith.constant 0 : i32
      %132 = arith.cmpi ne, %37, %c0_i32_71 : i32
      %133 = arith.extui %132 : i1 to i32
      %c0_i32_72 = arith.constant 0 : i32
      %134 = arith.cmpi ne, %133, %c0_i32_72 : i32
      scf.if %134 {
        %c0_75 = arith.constant 0 : index
        %c0_76 = arith.constant 0 : index
        %138 = vector.load %arg6[%c0_75, %c0_76] : memref<8x32xf32, #tpu.memory_space<vmem>>, vector<8x32xf32>
        %cst = arith.constant dense<0xFF800000> : vector<8xf32>
        %139 = vector.multi_reduction <maximumf>, %138, %cst [1] : vector<8x32xf32> to vector<8xf32>
        %140 = vector.shape_cast %139 : vector<8xf32> to vector<8x1xf32>
        %141 = vector.broadcast %140 : vector<8x1xf32> to vector<8x32xf32>
        %142 = arith.subf %138, %141 : vector<8x32xf32>
        %143 = math.exp %142 : vector<8x32xf32>
        %c0_77 = arith.constant 0 : index
        %c0_78 = arith.constant 0 : index
        %144 = vector.load %arg3[%c0_77, %c0_78] : memref<32x32xf32, #tpu.memory_space<vmem>>, vector<32x32xf32>
        %cst_79 = arith.constant dense<0.000000e+00> : vector<8x32xf32>
        %145 = tpu.matmul %143, %144, %cst_79 {dimension_numbers = #tpu.dot_dimension_numbers<[1], [0], [0], [1], [0, 0, 1, 1], [], []>} : vector<8x32xf32>, vector<32x32xf32>, vector<8x32xf32> -> vector<8x32xf32>
        %146 = math.log %145 : vector<8x32xf32>
        %147 = vector.broadcast %140 : vector<8x1xf32> to vector<8x32xf32>
        %148 = arith.addf %146, %147 : vector<8x32xf32>
        %149 = arith.addf %148, %128 : vector<8x32xf32>
        %c0_80 = arith.constant 0 : index
        %c0_81 = arith.constant 0 : index
        %150 = vector.load %arg6[%c0_80, %c0_81] : memref<8x32xf32, #tpu.memory_space<vmem>>, vector<8x32xf32>
        tpu.vector_store %arg6[%c0_80, %c0_81], %149 {strides = array<i32>} : memref<8x32xf32, #tpu.memory_space<vmem>>, vector<8x32xf32>,
      } else {
      }
      %c19_i32_73 = arith.constant 19 : i32
      %135 = arith.cmpi eq, %37, %c19_i32_73 : i32
      %136 = arith.extui %135 : i1 to i32
      %c0_i32_74 = arith.constant 0 : i32
      %137 = arith.cmpi ne, %136, %c0_i32_74 : i32
      scf.if %137 {
        %c0_75 = arith.constant 0 : index
        %c0_76 = arith.constant 0 : index
        %138 = vector.load %arg6[%c0_75, %c0_76] : memref<8x32xf32, #tpu.memory_space<vmem>>, vector<8x32xf32>
        %cst = arith.constant dense<0xFF800000> : vector<8xf32>
        %139 = vector.multi_reduction <maximumf>, %138, %cst [1] : vector<8x32xf32> to vector<8xf32>
        %140 = vector.shape_cast %139 : vector<8xf32> to vector<8x1xf32>
        %141 = vector.broadcast %140 : vector<8x1xf32> to vector<8x32xf32>
        %142 = arith.subf %138, %141 : vector<8x32xf32>
        %143 = math.exp %142 : vector<8x32xf32>
        %c0_77 = arith.constant 0 : index
        %c0_78 = arith.constant 0 : index
        %144 = vector.load %arg4[%c0_77, %c0_78] : memref<1x32xf32, #tpu.memory_space<vmem>>, vector<1x32xf32>
        %145 = vector.broadcast %144 : vector<1x32xf32> to vector<8x32xf32>
        %146 = arith.mulf %143, %145 : vector<8x32xf32>
        %cst_79 = arith.constant dense<0.000000e+00> : vector<8xf32>
        %147 = vector.multi_reduction <add>, %146, %cst_79 [1] : vector<8x32xf32> to vector<8xf32>
        %148 = vector.shape_cast %147 : vector<8xf32> to vector<8x1xf32>
        %149 = math.log %148 : vector<8x1xf32>
        %150 = arith.addf %149, %140 : vector<8x1xf32>
        %c0_80 = arith.constant 0 : index
        %c0_81 = arith.constant 0 : index
        %151 = vector.load %arg5[%c0_80, %c0_81] : memref<8x1xf32, #tpu.memory_space<vmem>>, vector<8x1xf32>
        tpu.vector_store %arg5[%c0_80, %c0_81], %150 {strides = array<i32>} : memref<8x1xf32, #tpu.memory_space<vmem>>, vector<8x1xf32>,
      } else {
      }
    } else {
    }
    %c16_i32_25 = arith.constant 16 : i32
    %42 = arith.muli %arg0, %c16_i32_25 : i32
    %c7_i32 = arith.constant 7 : i32
    %43 = arith.addi %42, %c7_i32 : i32
    %c19_i32_26 = arith.constant 19 : i32
    %44 = arith.subi %c19_i32_26, %43 : i32
    %c20_i32_27 = arith.constant 20 : i32
    %45 = arith.cmpi slt, %43, %c20_i32_27 : i32
    %46 = arith.extui %45 : i1 to i32
    %c0_i32_28 = arith.constant 0 : i32
    %47 = arith.cmpi ne, %46, %c0_i32_28 : i32
    scf.if %47 {
      %c0 = arith.constant 0 : index
      %96 = arith.index_cast %44 : i32 to index
      %97 = memref.load %arg1[%c0, %96] : memref<8x20xi32, #tpu.memory_space<smem>>
      %98 = arith.index_cast %97 : i32 to index
      %c0_61 = arith.constant 0 : index
      %99 = vector.load %arg2[%98, %c0_61] : memref<64x32xf32, #tpu.memory_space<vmem>>, vector<1x32xf32>
      %c1 = arith.constant 1 : index
      %100 = arith.index_cast %44 : i32 to index
      %101 = memref.load %arg1[%c1, %100] : memref<8x20xi32, #tpu.memory_space<smem>>
      %102 = arith.index_cast %101 : i32 to index
      %c0_62 = arith.constant 0 : index
      %103 = vector.load %arg2[%102, %c0_62] : memref<64x32xf32, #tpu.memory_space<vmem>>, vector<1x32xf32>
      %c2 = arith.constant 2 : index
      %104 = arith.index_cast %44 : i32 to index
      %105 = memref.load %arg1[%c2, %104] : memref<8x20xi32, #tpu.memory_space<smem>>
      %106 = arith.index_cast %105 : i32 to index
      %c0_63 = arith.constant 0 : index
      %107 = vector.load %arg2[%106, %c0_63] : memref<64x32xf32, #tpu.memory_space<vmem>>, vector<1x32xf32>
      %c3 = arith.constant 3 : index
      %108 = arith.index_cast %44 : i32 to index
      %109 = memref.load %arg1[%c3, %108] : memref<8x20xi32, #tpu.memory_space<smem>>
      %110 = arith.index_cast %109 : i32 to index
      %c0_64 = arith.constant 0 : index
      %111 = vector.load %arg2[%110, %c0_64] : memref<64x32xf32, #tpu.memory_space<vmem>>, vector<1x32xf32>
      %c4 = arith.constant 4 : index
      %112 = arith.index_cast %44 : i32 to index
      %113 = memref.load %arg1[%c4, %112] : memref<8x20xi32, #tpu.memory_space<smem>>
      %114 = arith.index_cast %113 : i32 to index
      %c0_65 = arith.constant 0 : index
      %115 = vector.load %arg2[%114, %c0_65] : memref<64x32xf32, #tpu.memory_space<vmem>>, vector<1x32xf32>
      %c5 = arith.constant 5 : index
      %116 = arith.index_cast %44 : i32 to index
      %117 = memref.load %arg1[%c5, %116] : memref<8x20xi32, #tpu.memory_space<smem>>
      %118 = arith.index_cast %117 : i32 to index
      %c0_66 = arith.constant 0 : index
      %119 = vector.load %arg2[%118, %c0_66] : memref<64x32xf32, #tpu.memory_space<vmem>>, vector<1x32xf32>
      %c6 = arith.constant 6 : index
      %120 = arith.index_cast %44 : i32 to index
      %121 = memref.load %arg1[%c6, %120] : memref<8x20xi32, #tpu.memory_space<smem>>
      %122 = arith.index_cast %121 : i32 to index
      %c0_67 = arith.constant 0 : index
      %123 = vector.load %arg2[%122, %c0_67] : memref<64x32xf32, #tpu.memory_space<vmem>>, vector<1x32xf32>
      %c7 = arith.constant 7 : index
      %124 = arith.index_cast %44 : i32 to index
      %125 = memref.load %arg1[%c7, %124] : memref<8x20xi32, #tpu.memory_space<smem>>
      %126 = arith.index_cast %125 : i32 to index
      %c0_68 = arith.constant 0 : index
      %127 = vector.load %arg2[%126, %c0_68] : memref<64x32xf32, #tpu.memory_space<vmem>>, vector<1x32xf32>
      %128 = tpu.concatenate %99, %103, %107, %111, %115, %119, %123, %127 in 0 : vector<1x32xf32>, vector<1x32xf32>, vector<1x32xf32>, vector<1x32xf32>, vector<1x32xf32>, vector<1x32xf32>, vector<1x32xf32>, vector<1x32xf32> -> vector<8x32xf32>
      %c0_i32_69 = arith.constant 0 : i32
      %129 = arith.cmpi eq, %43, %c0_i32_69 : i32
      %130 = arith.extui %129 : i1 to i32
      %c0_i32_70 = arith.constant 0 : i32
      %131 = arith.cmpi ne, %130, %c0_i32_70 : i32
      scf.if %131 {
        %c0_75 = arith.constant 0 : index
        %c0_76 = arith.constant 0 : index
        %138 = vector.load %arg6[%c0_75, %c0_76] : memref<8x32xf32, #tpu.memory_space<vmem>>, vector<8x32xf32>
        tpu.vector_store %arg6[%c0_75, %c0_76], %128 {strides = array<i32>} : memref<8x32xf32, #tpu.memory_space<vmem>>, vector<8x32xf32>,
      } else {
      }
      %c0_i32_71 = arith.constant 0 : i32
      %132 = arith.cmpi ne, %43, %c0_i32_71 : i32
      %133 = arith.extui %132 : i1 to i32
      %c0_i32_72 = arith.constant 0 : i32
      %134 = arith.cmpi ne, %133, %c0_i32_72 : i32
      scf.if %134 {
        %c0_75 = arith.constant 0 : index
        %c0_76 = arith.constant 0 : index
        %138 = vector.load %arg6[%c0_75, %c0_76] : memref<8x32xf32, #tpu.memory_space<vmem>>, vector<8x32xf32>
        %cst = arith.constant dense<0xFF800000> : vector<8xf32>
        %139 = vector.multi_reduction <maximumf>, %138, %cst [1] : vector<8x32xf32> to vector<8xf32>
        %140 = vector.shape_cast %139 : vector<8xf32> to vector<8x1xf32>
        %141 = vector.broadcast %140 : vector<8x1xf32> to vector<8x32xf32>
        %142 = arith.subf %138, %141 : vector<8x32xf32>
        %143 = math.exp %142 : vector<8x32xf32>
        %c0_77 = arith.constant 0 : index
        %c0_78 = arith.constant 0 : index
        %144 = vector.load %arg3[%c0_77, %c0_78] : memref<32x32xf32, #tpu.memory_space<vmem>>, vector<32x32xf32>
        %cst_79 = arith.constant dense<0.000000e+00> : vector<8x32xf32>
        %145 = tpu.matmul %143, %144, %cst_79 {dimension_numbers = #tpu.dot_dimension_numbers<[1], [0], [0], [1], [0, 0, 1, 1], [], []>} : vector<8x32xf32>, vector<32x32xf32>, vector<8x32xf32> -> vector<8x32xf32>
        %146 = math.log %145 : vector<8x32xf32>
        %147 = vector.broadcast %140 : vector<8x1xf32> to vector<8x32xf32>
        %148 = arith.addf %146, %147 : vector<8x32xf32>
        %149 = arith.addf %148, %128 : vector<8x32xf32>
        %c0_80 = arith.constant 0 : index
        %c0_81 = arith.constant 0 : index
        %150 = vector.load %arg6[%c0_80, %c0_81] : memref<8x32xf32, #tpu.memory_space<vmem>>, vector<8x32xf32>
        tpu.vector_store %arg6[%c0_80, %c0_81], %149 {strides = array<i32>} : memref<8x32xf32, #tpu.memory_space<vmem>>, vector<8x32xf32>,
      } else {
      }
      %c19_i32_73 = arith.constant 19 : i32
      %135 = arith.cmpi eq, %43, %c19_i32_73 : i32
      %136 = arith.extui %135 : i1 to i32
      %c0_i32_74 = arith.constant 0 : i32
      %137 = arith.cmpi ne, %136, %c0_i32_74 : i32
      scf.if %137 {
        %c0_75 = arith.constant 0 : index
        %c0_76 = arith.constant 0 : index
        %138 = vector.load %arg6[%c0_75, %c0_76] : memref<8x32xf32, #tpu.memory_space<vmem>>, vector<8x32xf32>
        %cst = arith.constant dense<0xFF800000> : vector<8xf32>
        %139 = vector.multi_reduction <maximumf>, %138, %cst [1] : vector<8x32xf32> to vector<8xf32>
        %140 = vector.shape_cast %139 : vector<8xf32> to vector<8x1xf32>
        %141 = vector.broadcast %140 : vector<8x1xf32> to vector<8x32xf32>
        %142 = arith.subf %138, %141 : vector<8x32xf32>
        %143 = math.exp %142 : vector<8x32xf32>
        %c0_77 = arith.constant 0 : index
        %c0_78 = arith.constant 0 : index
        %144 = vector.load %arg4[%c0_77, %c0_78] : memref<1x32xf32, #tpu.memory_space<vmem>>, vector<1x32xf32>
        %145 = vector.broadcast %144 : vector<1x32xf32> to vector<8x32xf32>
        %146 = arith.mulf %143, %145 : vector<8x32xf32>
        %cst_79 = arith.constant dense<0.000000e+00> : vector<8xf32>
        %147 = vector.multi_reduction <add>, %146, %cst_79 [1] : vector<8x32xf32> to vector<8xf32>
        %148 = vector.shape_cast %147 : vector<8xf32> to vector<8x1xf32>
        %149 = math.log %148 : vector<8x1xf32>
        %150 = arith.addf %149, %140 : vector<8x1xf32>
        %c0_80 = arith.constant 0 : index
        %c0_81 = arith.constant 0 : index
        %151 = vector.load %arg5[%c0_80, %c0_81] : memref<8x1xf32, #tpu.memory_space<vmem>>, vector<8x1xf32>
        tpu.vector_store %arg5[%c0_80, %c0_81], %150 {strides = array<i32>} : memref<8x1xf32, #tpu.memory_space<vmem>>, vector<8x1xf32>,
      } else {
      }
    } else {
    }
    %c16_i32_29 = arith.constant 16 : i32
    %48 = arith.muli %arg0, %c16_i32_29 : i32
    %c8_i32 = arith.constant 8 : i32
    %49 = arith.addi %48, %c8_i32 : i32
    %c19_i32_30 = arith.constant 19 : i32
    %50 = arith.subi %c19_i32_30, %49 : i32
    %c20_i32_31 = arith.constant 20 : i32
    %51 = arith.cmpi slt, %49, %c20_i32_31 : i32
    %52 = arith.extui %51 : i1 to i32
    %c0_i32_32 = arith.constant 0 : i32
    %53 = arith.cmpi ne, %52, %c0_i32_32 : i32
    scf.if %53 {
      %c0 = arith.constant 0 : index
      %96 = arith.index_cast %50 : i32 to index
      %97 = memref.load %arg1[%c0, %96] : memref<8x20xi32, #tpu.memory_space<smem>>
      %98 = arith.index_cast %97 : i32 to index
      %c0_61 = arith.constant 0 : index
      %99 = vector.load %arg2[%98, %c0_61] : memref<64x32xf32, #tpu.memory_space<vmem>>, vector<1x32xf32>
      %c1 = arith.constant 1 : index
      %100 = arith.index_cast %50 : i32 to index
      %101 = memref.load %arg1[%c1, %100] : memref<8x20xi32, #tpu.memory_space<smem>>
      %102 = arith.index_cast %101 : i32 to index
      %c0_62 = arith.constant 0 : index
      %103 = vector.load %arg2[%102, %c0_62] : memref<64x32xf32, #tpu.memory_space<vmem>>, vector<1x32xf32>
      %c2 = arith.constant 2 : index
      %104 = arith.index_cast %50 : i32 to index
      %105 = memref.load %arg1[%c2, %104] : memref<8x20xi32, #tpu.memory_space<smem>>
      %106 = arith.index_cast %105 : i32 to index
      %c0_63 = arith.constant 0 : index
      %107 = vector.load %arg2[%106, %c0_63] : memref<64x32xf32, #tpu.memory_space<vmem>>, vector<1x32xf32>
      %c3 = arith.constant 3 : index
      %108 = arith.index_cast %50 : i32 to index
      %109 = memref.load %arg1[%c3, %108] : memref<8x20xi32, #tpu.memory_space<smem>>
      %110 = arith.index_cast %109 : i32 to index
      %c0_64 = arith.constant 0 : index
      %111 = vector.load %arg2[%110, %c0_64] : memref<64x32xf32, #tpu.memory_space<vmem>>, vector<1x32xf32>
      %c4 = arith.constant 4 : index
      %112 = arith.index_cast %50 : i32 to index
      %113 = memref.load %arg1[%c4, %112] : memref<8x20xi32, #tpu.memory_space<smem>>
      %114 = arith.index_cast %113 : i32 to index
      %c0_65 = arith.constant 0 : index
      %115 = vector.load %arg2[%114, %c0_65] : memref<64x32xf32, #tpu.memory_space<vmem>>, vector<1x32xf32>
      %c5 = arith.constant 5 : index
      %116 = arith.index_cast %50 : i32 to index
      %117 = memref.load %arg1[%c5, %116] : memref<8x20xi32, #tpu.memory_space<smem>>
      %118 = arith.index_cast %117 : i32 to index
      %c0_66 = arith.constant 0 : index
      %119 = vector.load %arg2[%118, %c0_66] : memref<64x32xf32, #tpu.memory_space<vmem>>, vector<1x32xf32>
      %c6 = arith.constant 6 : index
      %120 = arith.index_cast %50 : i32 to index
      %121 = memref.load %arg1[%c6, %120] : memref<8x20xi32, #tpu.memory_space<smem>>
      %122 = arith.index_cast %121 : i32 to index
      %c0_67 = arith.constant 0 : index
      %123 = vector.load %arg2[%122, %c0_67] : memref<64x32xf32, #tpu.memory_space<vmem>>, vector<1x32xf32>
      %c7 = arith.constant 7 : index
      %124 = arith.index_cast %50 : i32 to index
      %125 = memref.load %arg1[%c7, %124] : memref<8x20xi32, #tpu.memory_space<smem>>
      %126 = arith.index_cast %125 : i32 to index
      %c0_68 = arith.constant 0 : index
      %127 = vector.load %arg2[%126, %c0_68] : memref<64x32xf32, #tpu.memory_space<vmem>>, vector<1x32xf32>
      %128 = tpu.concatenate %99, %103, %107, %111, %115, %119, %123, %127 in 0 : vector<1x32xf32>, vector<1x32xf32>, vector<1x32xf32>, vector<1x32xf32>, vector<1x32xf32>, vector<1x32xf32>, vector<1x32xf32>, vector<1x32xf32> -> vector<8x32xf32>
      %c0_i32_69 = arith.constant 0 : i32
      %129 = arith.cmpi eq, %49, %c0_i32_69 : i32
      %130 = arith.extui %129 : i1 to i32
      %c0_i32_70 = arith.constant 0 : i32
      %131 = arith.cmpi ne, %130, %c0_i32_70 : i32
      scf.if %131 {
        %c0_75 = arith.constant 0 : index
        %c0_76 = arith.constant 0 : index
        %138 = vector.load %arg6[%c0_75, %c0_76] : memref<8x32xf32, #tpu.memory_space<vmem>>, vector<8x32xf32>
        tpu.vector_store %arg6[%c0_75, %c0_76], %128 {strides = array<i32>} : memref<8x32xf32, #tpu.memory_space<vmem>>, vector<8x32xf32>,
      } else {
      }
      %c0_i32_71 = arith.constant 0 : i32
      %132 = arith.cmpi ne, %49, %c0_i32_71 : i32
      %133 = arith.extui %132 : i1 to i32
      %c0_i32_72 = arith.constant 0 : i32
      %134 = arith.cmpi ne, %133, %c0_i32_72 : i32
      scf.if %134 {
        %c0_75 = arith.constant 0 : index
        %c0_76 = arith.constant 0 : index
        %138 = vector.load %arg6[%c0_75, %c0_76] : memref<8x32xf32, #tpu.memory_space<vmem>>, vector<8x32xf32>
        %cst = arith.constant dense<0xFF800000> : vector<8xf32>
        %139 = vector.multi_reduction <maximumf>, %138, %cst [1] : vector<8x32xf32> to vector<8xf32>
        %140 = vector.shape_cast %139 : vector<8xf32> to vector<8x1xf32>
        %141 = vector.broadcast %140 : vector<8x1xf32> to vector<8x32xf32>
        %142 = arith.subf %138, %141 : vector<8x32xf32>
        %143 = math.exp %142 : vector<8x32xf32>
        %c0_77 = arith.constant 0 : index
        %c0_78 = arith.constant 0 : index
        %144 = vector.load %arg3[%c0_77, %c0_78] : memref<32x32xf32, #tpu.memory_space<vmem>>, vector<32x32xf32>
        %cst_79 = arith.constant dense<0.000000e+00> : vector<8x32xf32>
        %145 = tpu.matmul %143, %144, %cst_79 {dimension_numbers = #tpu.dot_dimension_numbers<[1], [0], [0], [1], [0, 0, 1, 1], [], []>} : vector<8x32xf32>, vector<32x32xf32>, vector<8x32xf32> -> vector<8x32xf32>
        %146 = math.log %145 : vector<8x32xf32>
        %147 = vector.broadcast %140 : vector<8x1xf32> to vector<8x32xf32>
        %148 = arith.addf %146, %147 : vector<8x32xf32>
        %149 = arith.addf %148, %128 : vector<8x32xf32>
        %c0_80 = arith.constant 0 : index
        %c0_81 = arith.constant 0 : index
        %150 = vector.load %arg6[%c0_80, %c0_81] : memref<8x32xf32, #tpu.memory_space<vmem>>, vector<8x32xf32>
        tpu.vector_store %arg6[%c0_80, %c0_81], %149 {strides = array<i32>} : memref<8x32xf32, #tpu.memory_space<vmem>>, vector<8x32xf32>,
      } else {
      }
      %c19_i32_73 = arith.constant 19 : i32
      %135 = arith.cmpi eq, %49, %c19_i32_73 : i32
      %136 = arith.extui %135 : i1 to i32
      %c0_i32_74 = arith.constant 0 : i32
      %137 = arith.cmpi ne, %136, %c0_i32_74 : i32
      scf.if %137 {
        %c0_75 = arith.constant 0 : index
        %c0_76 = arith.constant 0 : index
        %138 = vector.load %arg6[%c0_75, %c0_76] : memref<8x32xf32, #tpu.memory_space<vmem>>, vector<8x32xf32>
        %cst = arith.constant dense<0xFF800000> : vector<8xf32>
        %139 = vector.multi_reduction <maximumf>, %138, %cst [1] : vector<8x32xf32> to vector<8xf32>
        %140 = vector.shape_cast %139 : vector<8xf32> to vector<8x1xf32>
        %141 = vector.broadcast %140 : vector<8x1xf32> to vector<8x32xf32>
        %142 = arith.subf %138, %141 : vector<8x32xf32>
        %143 = math.exp %142 : vector<8x32xf32>
        %c0_77 = arith.constant 0 : index
        %c0_78 = arith.constant 0 : index
        %144 = vector.load %arg4[%c0_77, %c0_78] : memref<1x32xf32, #tpu.memory_space<vmem>>, vector<1x32xf32>
        %145 = vector.broadcast %144 : vector<1x32xf32> to vector<8x32xf32>
        %146 = arith.mulf %143, %145 : vector<8x32xf32>
        %cst_79 = arith.constant dense<0.000000e+00> : vector<8xf32>
        %147 = vector.multi_reduction <add>, %146, %cst_79 [1] : vector<8x32xf32> to vector<8xf32>
        %148 = vector.shape_cast %147 : vector<8xf32> to vector<8x1xf32>
        %149 = math.log %148 : vector<8x1xf32>
        %150 = arith.addf %149, %140 : vector<8x1xf32>
        %c0_80 = arith.constant 0 : index
        %c0_81 = arith.constant 0 : index
        %151 = vector.load %arg5[%c0_80, %c0_81] : memref<8x1xf32, #tpu.memory_space<vmem>>, vector<8x1xf32>
        tpu.vector_store %arg5[%c0_80, %c0_81], %150 {strides = array<i32>} : memref<8x1xf32, #tpu.memory_space<vmem>>, vector<8x1xf32>,
      } else {
      }
    } else {
    }
    %c16_i32_33 = arith.constant 16 : i32
    %54 = arith.muli %arg0, %c16_i32_33 : i32
    %c9_i32 = arith.constant 9 : i32
    %55 = arith.addi %54, %c9_i32 : i32
    %c19_i32_34 = arith.constant 19 : i32
    %56 = arith.subi %c19_i32_34, %55 : i32
    %c20_i32_35 = arith.constant 20 : i32
    %57 = arith.cmpi slt, %55, %c20_i32_35 : i32
    %58 = arith.extui %57 : i1 to i32
    %c0_i32_36 = arith.constant 0 : i32
    %59 = arith.cmpi ne, %58, %c0_i32_36 : i32
    scf.if %59 {
      %c0 = arith.constant 0 : index
      %96 = arith.index_cast %56 : i32 to index
      %97 = memref.load %arg1[%c0, %96] : memref<8x20xi32, #tpu.memory_space<smem>>
      %98 = arith.index_cast %97 : i32 to index
      %c0_61 = arith.constant 0 : index
      %99 = vector.load %arg2[%98, %c0_61] : memref<64x32xf32, #tpu.memory_space<vmem>>, vector<1x32xf32>
      %c1 = arith.constant 1 : index
      %100 = arith.index_cast %56 : i32 to index
      %101 = memref.load %arg1[%c1, %100] : memref<8x20xi32, #tpu.memory_space<smem>>
      %102 = arith.index_cast %101 : i32 to index
      %c0_62 = arith.constant 0 : index
      %103 = vector.load %arg2[%102, %c0_62] : memref<64x32xf32, #tpu.memory_space<vmem>>, vector<1x32xf32>
      %c2 = arith.constant 2 : index
      %104 = arith.index_cast %56 : i32 to index
      %105 = memref.load %arg1[%c2, %104] : memref<8x20xi32, #tpu.memory_space<smem>>
      %106 = arith.index_cast %105 : i32 to index
      %c0_63 = arith.constant 0 : index
      %107 = vector.load %arg2[%106, %c0_63] : memref<64x32xf32, #tpu.memory_space<vmem>>, vector<1x32xf32>
      %c3 = arith.constant 3 : index
      %108 = arith.index_cast %56 : i32 to index
      %109 = memref.load %arg1[%c3, %108] : memref<8x20xi32, #tpu.memory_space<smem>>
      %110 = arith.index_cast %109 : i32 to index
      %c0_64 = arith.constant 0 : index
      %111 = vector.load %arg2[%110, %c0_64] : memref<64x32xf32, #tpu.memory_space<vmem>>, vector<1x32xf32>
      %c4 = arith.constant 4 : index
      %112 = arith.index_cast %56 : i32 to index
      %113 = memref.load %arg1[%c4, %112] : memref<8x20xi32, #tpu.memory_space<smem>>
      %114 = arith.index_cast %113 : i32 to index
      %c0_65 = arith.constant 0 : index
      %115 = vector.load %arg2[%114, %c0_65] : memref<64x32xf32, #tpu.memory_space<vmem>>, vector<1x32xf32>
      %c5 = arith.constant 5 : index
      %116 = arith.index_cast %56 : i32 to index
      %117 = memref.load %arg1[%c5, %116] : memref<8x20xi32, #tpu.memory_space<smem>>
      %118 = arith.index_cast %117 : i32 to index
      %c0_66 = arith.constant 0 : index
      %119 = vector.load %arg2[%118, %c0_66] : memref<64x32xf32, #tpu.memory_space<vmem>>, vector<1x32xf32>
      %c6 = arith.constant 6 : index
      %120 = arith.index_cast %56 : i32 to index
      %121 = memref.load %arg1[%c6, %120] : memref<8x20xi32, #tpu.memory_space<smem>>
      %122 = arith.index_cast %121 : i32 to index
      %c0_67 = arith.constant 0 : index
      %123 = vector.load %arg2[%122, %c0_67] : memref<64x32xf32, #tpu.memory_space<vmem>>, vector<1x32xf32>
      %c7 = arith.constant 7 : index
      %124 = arith.index_cast %56 : i32 to index
      %125 = memref.load %arg1[%c7, %124] : memref<8x20xi32, #tpu.memory_space<smem>>
      %126 = arith.index_cast %125 : i32 to index
      %c0_68 = arith.constant 0 : index
      %127 = vector.load %arg2[%126, %c0_68] : memref<64x32xf32, #tpu.memory_space<vmem>>, vector<1x32xf32>
      %128 = tpu.concatenate %99, %103, %107, %111, %115, %119, %123, %127 in 0 : vector<1x32xf32>, vector<1x32xf32>, vector<1x32xf32>, vector<1x32xf32>, vector<1x32xf32>, vector<1x32xf32>, vector<1x32xf32>, vector<1x32xf32> -> vector<8x32xf32>
      %c0_i32_69 = arith.constant 0 : i32
      %129 = arith.cmpi eq, %55, %c0_i32_69 : i32
      %130 = arith.extui %129 : i1 to i32
      %c0_i32_70 = arith.constant 0 : i32
      %131 = arith.cmpi ne, %130, %c0_i32_70 : i32
      scf.if %131 {
        %c0_75 = arith.constant 0 : index
        %c0_76 = arith.constant 0 : index
        %138 = vector.load %arg6[%c0_75, %c0_76] : memref<8x32xf32, #tpu.memory_space<vmem>>, vector<8x32xf32>
        tpu.vector_store %arg6[%c0_75, %c0_76], %128 {strides = array<i32>} : memref<8x32xf32, #tpu.memory_space<vmem>>, vector<8x32xf32>,
      } else {
      }
      %c0_i32_71 = arith.constant 0 : i32
      %132 = arith.cmpi ne, %55, %c0_i32_71 : i32
      %133 = arith.extui %132 : i1 to i32
      %c0_i32_72 = arith.constant 0 : i32
      %134 = arith.cmpi ne, %133, %c0_i32_72 : i32
      scf.if %134 {
        %c0_75 = arith.constant 0 : index
        %c0_76 = arith.constant 0 : index
        %138 = vector.load %arg6[%c0_75, %c0_76] : memref<8x32xf32, #tpu.memory_space<vmem>>, vector<8x32xf32>
        %cst = arith.constant dense<0xFF800000> : vector<8xf32>
        %139 = vector.multi_reduction <maximumf>, %138, %cst [1] : vector<8x32xf32> to vector<8xf32>
        %140 = vector.shape_cast %139 : vector<8xf32> to vector<8x1xf32>
        %141 = vector.broadcast %140 : vector<8x1xf32> to vector<8x32xf32>
        %142 = arith.subf %138, %141 : vector<8x32xf32>
        %143 = math.exp %142 : vector<8x32xf32>
        %c0_77 = arith.constant 0 : index
        %c0_78 = arith.constant 0 : index
        %144 = vector.load %arg3[%c0_77, %c0_78] : memref<32x32xf32, #tpu.memory_space<vmem>>, vector<32x32xf32>
        %cst_79 = arith.constant dense<0.000000e+00> : vector<8x32xf32>
        %145 = tpu.matmul %143, %144, %cst_79 {dimension_numbers = #tpu.dot_dimension_numbers<[1], [0], [0], [1], [0, 0, 1, 1], [], []>} : vector<8x32xf32>, vector<32x32xf32>, vector<8x32xf32> -> vector<8x32xf32>
        %146 = math.log %145 : vector<8x32xf32>
        %147 = vector.broadcast %140 : vector<8x1xf32> to vector<8x32xf32>
        %148 = arith.addf %146, %147 : vector<8x32xf32>
        %149 = arith.addf %148, %128 : vector<8x32xf32>
        %c0_80 = arith.constant 0 : index
        %c0_81 = arith.constant 0 : index
        %150 = vector.load %arg6[%c0_80, %c0_81] : memref<8x32xf32, #tpu.memory_space<vmem>>, vector<8x32xf32>
        tpu.vector_store %arg6[%c0_80, %c0_81], %149 {strides = array<i32>} : memref<8x32xf32, #tpu.memory_space<vmem>>, vector<8x32xf32>,
      } else {
      }
      %c19_i32_73 = arith.constant 19 : i32
      %135 = arith.cmpi eq, %55, %c19_i32_73 : i32
      %136 = arith.extui %135 : i1 to i32
      %c0_i32_74 = arith.constant 0 : i32
      %137 = arith.cmpi ne, %136, %c0_i32_74 : i32
      scf.if %137 {
        %c0_75 = arith.constant 0 : index
        %c0_76 = arith.constant 0 : index
        %138 = vector.load %arg6[%c0_75, %c0_76] : memref<8x32xf32, #tpu.memory_space<vmem>>, vector<8x32xf32>
        %cst = arith.constant dense<0xFF800000> : vector<8xf32>
        %139 = vector.multi_reduction <maximumf>, %138, %cst [1] : vector<8x32xf32> to vector<8xf32>
        %140 = vector.shape_cast %139 : vector<8xf32> to vector<8x1xf32>
        %141 = vector.broadcast %140 : vector<8x1xf32> to vector<8x32xf32>
        %142 = arith.subf %138, %141 : vector<8x32xf32>
        %143 = math.exp %142 : vector<8x32xf32>
        %c0_77 = arith.constant 0 : index
        %c0_78 = arith.constant 0 : index
        %144 = vector.load %arg4[%c0_77, %c0_78] : memref<1x32xf32, #tpu.memory_space<vmem>>, vector<1x32xf32>
        %145 = vector.broadcast %144 : vector<1x32xf32> to vector<8x32xf32>
        %146 = arith.mulf %143, %145 : vector<8x32xf32>
        %cst_79 = arith.constant dense<0.000000e+00> : vector<8xf32>
        %147 = vector.multi_reduction <add>, %146, %cst_79 [1] : vector<8x32xf32> to vector<8xf32>
        %148 = vector.shape_cast %147 : vector<8xf32> to vector<8x1xf32>
        %149 = math.log %148 : vector<8x1xf32>
        %150 = arith.addf %149, %140 : vector<8x1xf32>
        %c0_80 = arith.constant 0 : index
        %c0_81 = arith.constant 0 : index
        %151 = vector.load %arg5[%c0_80, %c0_81] : memref<8x1xf32, #tpu.memory_space<vmem>>, vector<8x1xf32>
        tpu.vector_store %arg5[%c0_80, %c0_81], %150 {strides = array<i32>} : memref<8x1xf32, #tpu.memory_space<vmem>>, vector<8x1xf32>,
      } else {
      }
    } else {
    }
    %c16_i32_37 = arith.constant 16 : i32
    %60 = arith.muli %arg0, %c16_i32_37 : i32
    %c10_i32 = arith.constant 10 : i32
    %61 = arith.addi %60, %c10_i32 : i32
    %c19_i32_38 = arith.constant 19 : i32
    %62 = arith.subi %c19_i32_38, %61 : i32
    %c20_i32_39 = arith.constant 20 : i32
    %63 = arith.cmpi slt, %61, %c20_i32_39 : i32
    %64 = arith.extui %63 : i1 to i32
    %c0_i32_40 = arith.constant 0 : i32
    %65 = arith.cmpi ne, %64, %c0_i32_40 : i32
    scf.if %65 {
      %c0 = arith.constant 0 : index
      %96 = arith.index_cast %62 : i32 to index
      %97 = memref.load %arg1[%c0, %96] : memref<8x20xi32, #tpu.memory_space<smem>>
      %98 = arith.index_cast %97 : i32 to index
      %c0_61 = arith.constant 0 : index
      %99 = vector.load %arg2[%98, %c0_61] : memref<64x32xf32, #tpu.memory_space<vmem>>, vector<1x32xf32>
      %c1 = arith.constant 1 : index
      %100 = arith.index_cast %62 : i32 to index
      %101 = memref.load %arg1[%c1, %100] : memref<8x20xi32, #tpu.memory_space<smem>>
      %102 = arith.index_cast %101 : i32 to index
      %c0_62 = arith.constant 0 : index
      %103 = vector.load %arg2[%102, %c0_62] : memref<64x32xf32, #tpu.memory_space<vmem>>, vector<1x32xf32>
      %c2 = arith.constant 2 : index
      %104 = arith.index_cast %62 : i32 to index
      %105 = memref.load %arg1[%c2, %104] : memref<8x20xi32, #tpu.memory_space<smem>>
      %106 = arith.index_cast %105 : i32 to index
      %c0_63 = arith.constant 0 : index
      %107 = vector.load %arg2[%106, %c0_63] : memref<64x32xf32, #tpu.memory_space<vmem>>, vector<1x32xf32>
      %c3 = arith.constant 3 : index
      %108 = arith.index_cast %62 : i32 to index
      %109 = memref.load %arg1[%c3, %108] : memref<8x20xi32, #tpu.memory_space<smem>>
      %110 = arith.index_cast %109 : i32 to index
      %c0_64 = arith.constant 0 : index
      %111 = vector.load %arg2[%110, %c0_64] : memref<64x32xf32, #tpu.memory_space<vmem>>, vector<1x32xf32>
      %c4 = arith.constant 4 : index
      %112 = arith.index_cast %62 : i32 to index
      %113 = memref.load %arg1[%c4, %112] : memref<8x20xi32, #tpu.memory_space<smem>>
      %114 = arith.index_cast %113 : i32 to index
      %c0_65 = arith.constant 0 : index
      %115 = vector.load %arg2[%114, %c0_65] : memref<64x32xf32, #tpu.memory_space<vmem>>, vector<1x32xf32>
      %c5 = arith.constant 5 : index
      %116 = arith.index_cast %62 : i32 to index
      %117 = memref.load %arg1[%c5, %116] : memref<8x20xi32, #tpu.memory_space<smem>>
      %118 = arith.index_cast %117 : i32 to index
      %c0_66 = arith.constant 0 : index
      %119 = vector.load %arg2[%118, %c0_66] : memref<64x32xf32, #tpu.memory_space<vmem>>, vector<1x32xf32>
      %c6 = arith.constant 6 : index
      %120 = arith.index_cast %62 : i32 to index
      %121 = memref.load %arg1[%c6, %120] : memref<8x20xi32, #tpu.memory_space<smem>>
      %122 = arith.index_cast %121 : i32 to index
      %c0_67 = arith.constant 0 : index
      %123 = vector.load %arg2[%122, %c0_67] : memref<64x32xf32, #tpu.memory_space<vmem>>, vector<1x32xf32>
      %c7 = arith.constant 7 : index
      %124 = arith.index_cast %62 : i32 to index
      %125 = memref.load %arg1[%c7, %124] : memref<8x20xi32, #tpu.memory_space<smem>>
      %126 = arith.index_cast %125 : i32 to index
      %c0_68 = arith.constant 0 : index
      %127 = vector.load %arg2[%126, %c0_68] : memref<64x32xf32, #tpu.memory_space<vmem>>, vector<1x32xf32>
      %128 = tpu.concatenate %99, %103, %107, %111, %115, %119, %123, %127 in 0 : vector<1x32xf32>, vector<1x32xf32>, vector<1x32xf32>, vector<1x32xf32>, vector<1x32xf32>, vector<1x32xf32>, vector<1x32xf32>, vector<1x32xf32> -> vector<8x32xf32>
      %c0_i32_69 = arith.constant 0 : i32
      %129 = arith.cmpi eq, %61, %c0_i32_69 : i32
      %130 = arith.extui %129 : i1 to i32
      %c0_i32_70 = arith.constant 0 : i32
      %131 = arith.cmpi ne, %130, %c0_i32_70 : i32
      scf.if %131 {
        %c0_75 = arith.constant 0 : index
        %c0_76 = arith.constant 0 : index
        %138 = vector.load %arg6[%c0_75, %c0_76] : memref<8x32xf32, #tpu.memory_space<vmem>>, vector<8x32xf32>
        tpu.vector_store %arg6[%c0_75, %c0_76], %128 {strides = array<i32>} : memref<8x32xf32, #tpu.memory_space<vmem>>, vector<8x32xf32>,
      } else {
      }
      %c0_i32_71 = arith.constant 0 : i32
      %132 = arith.cmpi ne, %61, %c0_i32_71 : i32
      %133 = arith.extui %132 : i1 to i32
      %c0_i32_72 = arith.constant 0 : i32
      %134 = arith.cmpi ne, %133, %c0_i32_72 : i32
      scf.if %134 {
        %c0_75 = arith.constant 0 : index
        %c0_76 = arith.constant 0 : index
        %138 = vector.load %arg6[%c0_75, %c0_76] : memref<8x32xf32, #tpu.memory_space<vmem>>, vector<8x32xf32>
        %cst = arith.constant dense<0xFF800000> : vector<8xf32>
        %139 = vector.multi_reduction <maximumf>, %138, %cst [1] : vector<8x32xf32> to vector<8xf32>
        %140 = vector.shape_cast %139 : vector<8xf32> to vector<8x1xf32>
        %141 = vector.broadcast %140 : vector<8x1xf32> to vector<8x32xf32>
        %142 = arith.subf %138, %141 : vector<8x32xf32>
        %143 = math.exp %142 : vector<8x32xf32>
        %c0_77 = arith.constant 0 : index
        %c0_78 = arith.constant 0 : index
        %144 = vector.load %arg3[%c0_77, %c0_78] : memref<32x32xf32, #tpu.memory_space<vmem>>, vector<32x32xf32>
        %cst_79 = arith.constant dense<0.000000e+00> : vector<8x32xf32>
        %145 = tpu.matmul %143, %144, %cst_79 {dimension_numbers = #tpu.dot_dimension_numbers<[1], [0], [0], [1], [0, 0, 1, 1], [], []>} : vector<8x32xf32>, vector<32x32xf32>, vector<8x32xf32> -> vector<8x32xf32>
        %146 = math.log %145 : vector<8x32xf32>
        %147 = vector.broadcast %140 : vector<8x1xf32> to vector<8x32xf32>
        %148 = arith.addf %146, %147 : vector<8x32xf32>
        %149 = arith.addf %148, %128 : vector<8x32xf32>
        %c0_80 = arith.constant 0 : index
        %c0_81 = arith.constant 0 : index
        %150 = vector.load %arg6[%c0_80, %c0_81] : memref<8x32xf32, #tpu.memory_space<vmem>>, vector<8x32xf32>
        tpu.vector_store %arg6[%c0_80, %c0_81], %149 {strides = array<i32>} : memref<8x32xf32, #tpu.memory_space<vmem>>, vector<8x32xf32>,
      } else {
      }
      %c19_i32_73 = arith.constant 19 : i32
      %135 = arith.cmpi eq, %61, %c19_i32_73 : i32
      %136 = arith.extui %135 : i1 to i32
      %c0_i32_74 = arith.constant 0 : i32
      %137 = arith.cmpi ne, %136, %c0_i32_74 : i32
      scf.if %137 {
        %c0_75 = arith.constant 0 : index
        %c0_76 = arith.constant 0 : index
        %138 = vector.load %arg6[%c0_75, %c0_76] : memref<8x32xf32, #tpu.memory_space<vmem>>, vector<8x32xf32>
        %cst = arith.constant dense<0xFF800000> : vector<8xf32>
        %139 = vector.multi_reduction <maximumf>, %138, %cst [1] : vector<8x32xf32> to vector<8xf32>
        %140 = vector.shape_cast %139 : vector<8xf32> to vector<8x1xf32>
        %141 = vector.broadcast %140 : vector<8x1xf32> to vector<8x32xf32>
        %142 = arith.subf %138, %141 : vector<8x32xf32>
        %143 = math.exp %142 : vector<8x32xf32>
        %c0_77 = arith.constant 0 : index
        %c0_78 = arith.constant 0 : index
        %144 = vector.load %arg4[%c0_77, %c0_78] : memref<1x32xf32, #tpu.memory_space<vmem>>, vector<1x32xf32>
        %145 = vector.broadcast %144 : vector<1x32xf32> to vector<8x32xf32>
        %146 = arith.mulf %143, %145 : vector<8x32xf32>
        %cst_79 = arith.constant dense<0.000000e+00> : vector<8xf32>
        %147 = vector.multi_reduction <add>, %146, %cst_79 [1] : vector<8x32xf32> to vector<8xf32>
        %148 = vector.shape_cast %147 : vector<8xf32> to vector<8x1xf32>
        %149 = math.log %148 : vector<8x1xf32>
        %150 = arith.addf %149, %140 : vector<8x1xf32>
        %c0_80 = arith.constant 0 : index
        %c0_81 = arith.constant 0 : index
        %151 = vector.load %arg5[%c0_80, %c0_81] : memref<8x1xf32, #tpu.memory_space<vmem>>, vector<8x1xf32>
        tpu.vector_store %arg5[%c0_80, %c0_81], %150 {strides = array<i32>} : memref<8x1xf32, #tpu.memory_space<vmem>>, vector<8x1xf32>,
      } else {
      }
    } else {
    }
    %c16_i32_41 = arith.constant 16 : i32
    %66 = arith.muli %arg0, %c16_i32_41 : i32
    %c11_i32 = arith.constant 11 : i32
    %67 = arith.addi %66, %c11_i32 : i32
    %c19_i32_42 = arith.constant 19 : i32
    %68 = arith.subi %c19_i32_42, %67 : i32
    %c20_i32_43 = arith.constant 20 : i32
    %69 = arith.cmpi slt, %67, %c20_i32_43 : i32
    %70 = arith.extui %69 : i1 to i32
    %c0_i32_44 = arith.constant 0 : i32
    %71 = arith.cmpi ne, %70, %c0_i32_44 : i32
    scf.if %71 {
      %c0 = arith.constant 0 : index
      %96 = arith.index_cast %68 : i32 to index
      %97 = memref.load %arg1[%c0, %96] : memref<8x20xi32, #tpu.memory_space<smem>>
      %98 = arith.index_cast %97 : i32 to index
      %c0_61 = arith.constant 0 : index
      %99 = vector.load %arg2[%98, %c0_61] : memref<64x32xf32, #tpu.memory_space<vmem>>, vector<1x32xf32>
      %c1 = arith.constant 1 : index
      %100 = arith.index_cast %68 : i32 to index
      %101 = memref.load %arg1[%c1, %100] : memref<8x20xi32, #tpu.memory_space<smem>>
      %102 = arith.index_cast %101 : i32 to index
      %c0_62 = arith.constant 0 : index
      %103 = vector.load %arg2[%102, %c0_62] : memref<64x32xf32, #tpu.memory_space<vmem>>, vector<1x32xf32>
      %c2 = arith.constant 2 : index
      %104 = arith.index_cast %68 : i32 to index
      %105 = memref.load %arg1[%c2, %104] : memref<8x20xi32, #tpu.memory_space<smem>>
      %106 = arith.index_cast %105 : i32 to index
      %c0_63 = arith.constant 0 : index
      %107 = vector.load %arg2[%106, %c0_63] : memref<64x32xf32, #tpu.memory_space<vmem>>, vector<1x32xf32>
      %c3 = arith.constant 3 : index
      %108 = arith.index_cast %68 : i32 to index
      %109 = memref.load %arg1[%c3, %108] : memref<8x20xi32, #tpu.memory_space<smem>>
      %110 = arith.index_cast %109 : i32 to index
      %c0_64 = arith.constant 0 : index
      %111 = vector.load %arg2[%110, %c0_64] : memref<64x32xf32, #tpu.memory_space<vmem>>, vector<1x32xf32>
      %c4 = arith.constant 4 : index
      %112 = arith.index_cast %68 : i32 to index
      %113 = memref.load %arg1[%c4, %112] : memref<8x20xi32, #tpu.memory_space<smem>>
      %114 = arith.index_cast %113 : i32 to index
      %c0_65 = arith.constant 0 : index
      %115 = vector.load %arg2[%114, %c0_65] : memref<64x32xf32, #tpu.memory_space<vmem>>, vector<1x32xf32>
      %c5 = arith.constant 5 : index
      %116 = arith.index_cast %68 : i32 to index
      %117 = memref.load %arg1[%c5, %116] : memref<8x20xi32, #tpu.memory_space<smem>>
      %118 = arith.index_cast %117 : i32 to index
      %c0_66 = arith.constant 0 : index
      %119 = vector.load %arg2[%118, %c0_66] : memref<64x32xf32, #tpu.memory_space<vmem>>, vector<1x32xf32>
      %c6 = arith.constant 6 : index
      %120 = arith.index_cast %68 : i32 to index
      %121 = memref.load %arg1[%c6, %120] : memref<8x20xi32, #tpu.memory_space<smem>>
      %122 = arith.index_cast %121 : i32 to index
      %c0_67 = arith.constant 0 : index
      %123 = vector.load %arg2[%122, %c0_67] : memref<64x32xf32, #tpu.memory_space<vmem>>, vector<1x32xf32>
      %c7 = arith.constant 7 : index
      %124 = arith.index_cast %68 : i32 to index
      %125 = memref.load %arg1[%c7, %124] : memref<8x20xi32, #tpu.memory_space<smem>>
      %126 = arith.index_cast %125 : i32 to index
      %c0_68 = arith.constant 0 : index
      %127 = vector.load %arg2[%126, %c0_68] : memref<64x32xf32, #tpu.memory_space<vmem>>, vector<1x32xf32>
      %128 = tpu.concatenate %99, %103, %107, %111, %115, %119, %123, %127 in 0 : vector<1x32xf32>, vector<1x32xf32>, vector<1x32xf32>, vector<1x32xf32>, vector<1x32xf32>, vector<1x32xf32>, vector<1x32xf32>, vector<1x32xf32> -> vector<8x32xf32>
      %c0_i32_69 = arith.constant 0 : i32
      %129 = arith.cmpi eq, %67, %c0_i32_69 : i32
      %130 = arith.extui %129 : i1 to i32
      %c0_i32_70 = arith.constant 0 : i32
      %131 = arith.cmpi ne, %130, %c0_i32_70 : i32
      scf.if %131 {
        %c0_75 = arith.constant 0 : index
        %c0_76 = arith.constant 0 : index
        %138 = vector.load %arg6[%c0_75, %c0_76] : memref<8x32xf32, #tpu.memory_space<vmem>>, vector<8x32xf32>
        tpu.vector_store %arg6[%c0_75, %c0_76], %128 {strides = array<i32>} : memref<8x32xf32, #tpu.memory_space<vmem>>, vector<8x32xf32>,
      } else {
      }
      %c0_i32_71 = arith.constant 0 : i32
      %132 = arith.cmpi ne, %67, %c0_i32_71 : i32
      %133 = arith.extui %132 : i1 to i32
      %c0_i32_72 = arith.constant 0 : i32
      %134 = arith.cmpi ne, %133, %c0_i32_72 : i32
      scf.if %134 {
        %c0_75 = arith.constant 0 : index
        %c0_76 = arith.constant 0 : index
        %138 = vector.load %arg6[%c0_75, %c0_76] : memref<8x32xf32, #tpu.memory_space<vmem>>, vector<8x32xf32>
        %cst = arith.constant dense<0xFF800000> : vector<8xf32>
        %139 = vector.multi_reduction <maximumf>, %138, %cst [1] : vector<8x32xf32> to vector<8xf32>
        %140 = vector.shape_cast %139 : vector<8xf32> to vector<8x1xf32>
        %141 = vector.broadcast %140 : vector<8x1xf32> to vector<8x32xf32>
        %142 = arith.subf %138, %141 : vector<8x32xf32>
        %143 = math.exp %142 : vector<8x32xf32>
        %c0_77 = arith.constant 0 : index
        %c0_78 = arith.constant 0 : index
        %144 = vector.load %arg3[%c0_77, %c0_78] : memref<32x32xf32, #tpu.memory_space<vmem>>, vector<32x32xf32>
        %cst_79 = arith.constant dense<0.000000e+00> : vector<8x32xf32>
        %145 = tpu.matmul %143, %144, %cst_79 {dimension_numbers = #tpu.dot_dimension_numbers<[1], [0], [0], [1], [0, 0, 1, 1], [], []>} : vector<8x32xf32>, vector<32x32xf32>, vector<8x32xf32> -> vector<8x32xf32>
        %146 = math.log %145 : vector<8x32xf32>
        %147 = vector.broadcast %140 : vector<8x1xf32> to vector<8x32xf32>
        %148 = arith.addf %146, %147 : vector<8x32xf32>
        %149 = arith.addf %148, %128 : vector<8x32xf32>
        %c0_80 = arith.constant 0 : index
        %c0_81 = arith.constant 0 : index
        %150 = vector.load %arg6[%c0_80, %c0_81] : memref<8x32xf32, #tpu.memory_space<vmem>>, vector<8x32xf32>
        tpu.vector_store %arg6[%c0_80, %c0_81], %149 {strides = array<i32>} : memref<8x32xf32, #tpu.memory_space<vmem>>, vector<8x32xf32>,
      } else {
      }
      %c19_i32_73 = arith.constant 19 : i32
      %135 = arith.cmpi eq, %67, %c19_i32_73 : i32
      %136 = arith.extui %135 : i1 to i32
      %c0_i32_74 = arith.constant 0 : i32
      %137 = arith.cmpi ne, %136, %c0_i32_74 : i32
      scf.if %137 {
        %c0_75 = arith.constant 0 : index
        %c0_76 = arith.constant 0 : index
        %138 = vector.load %arg6[%c0_75, %c0_76] : memref<8x32xf32, #tpu.memory_space<vmem>>, vector<8x32xf32>
        %cst = arith.constant dense<0xFF800000> : vector<8xf32>
        %139 = vector.multi_reduction <maximumf>, %138, %cst [1] : vector<8x32xf32> to vector<8xf32>
        %140 = vector.shape_cast %139 : vector<8xf32> to vector<8x1xf32>
        %141 = vector.broadcast %140 : vector<8x1xf32> to vector<8x32xf32>
        %142 = arith.subf %138, %141 : vector<8x32xf32>
        %143 = math.exp %142 : vector<8x32xf32>
        %c0_77 = arith.constant 0 : index
        %c0_78 = arith.constant 0 : index
        %144 = vector.load %arg4[%c0_77, %c0_78] : memref<1x32xf32, #tpu.memory_space<vmem>>, vector<1x32xf32>
        %145 = vector.broadcast %144 : vector<1x32xf32> to vector<8x32xf32>
        %146 = arith.mulf %143, %145 : vector<8x32xf32>
        %cst_79 = arith.constant dense<0.000000e+00> : vector<8xf32>
        %147 = vector.multi_reduction <add>, %146, %cst_79 [1] : vector<8x32xf32> to vector<8xf32>
        %148 = vector.shape_cast %147 : vector<8xf32> to vector<8x1xf32>
        %149 = math.log %148 : vector<8x1xf32>
        %150 = arith.addf %149, %140 : vector<8x1xf32>
        %c0_80 = arith.constant 0 : index
        %c0_81 = arith.constant 0 : index
        %151 = vector.load %arg5[%c0_80, %c0_81] : memref<8x1xf32, #tpu.memory_space<vmem>>, vector<8x1xf32>
        tpu.vector_store %arg5[%c0_80, %c0_81], %150 {strides = array<i32>} : memref<8x1xf32, #tpu.memory_space<vmem>>, vector<8x1xf32>,
      } else {
      }
    } else {
    }
    %c16_i32_45 = arith.constant 16 : i32
    %72 = arith.muli %arg0, %c16_i32_45 : i32
    %c12_i32 = arith.constant 12 : i32
    %73 = arith.addi %72, %c12_i32 : i32
    %c19_i32_46 = arith.constant 19 : i32
    %74 = arith.subi %c19_i32_46, %73 : i32
    %c20_i32_47 = arith.constant 20 : i32
    %75 = arith.cmpi slt, %73, %c20_i32_47 : i32
    %76 = arith.extui %75 : i1 to i32
    %c0_i32_48 = arith.constant 0 : i32
    %77 = arith.cmpi ne, %76, %c0_i32_48 : i32
    scf.if %77 {
      %c0 = arith.constant 0 : index
      %96 = arith.index_cast %74 : i32 to index
      %97 = memref.load %arg1[%c0, %96] : memref<8x20xi32, #tpu.memory_space<smem>>
      %98 = arith.index_cast %97 : i32 to index
      %c0_61 = arith.constant 0 : index
      %99 = vector.load %arg2[%98, %c0_61] : memref<64x32xf32, #tpu.memory_space<vmem>>, vector<1x32xf32>
      %c1 = arith.constant 1 : index
      %100 = arith.index_cast %74 : i32 to index
      %101 = memref.load %arg1[%c1, %100] : memref<8x20xi32, #tpu.memory_space<smem>>
      %102 = arith.index_cast %101 : i32 to index
      %c0_62 = arith.constant 0 : index
      %103 = vector.load %arg2[%102, %c0_62] : memref<64x32xf32, #tpu.memory_space<vmem>>, vector<1x32xf32>
      %c2 = arith.constant 2 : index
      %104 = arith.index_cast %74 : i32 to index
      %105 = memref.load %arg1[%c2, %104] : memref<8x20xi32, #tpu.memory_space<smem>>
      %106 = arith.index_cast %105 : i32 to index
      %c0_63 = arith.constant 0 : index
      %107 = vector.load %arg2[%106, %c0_63] : memref<64x32xf32, #tpu.memory_space<vmem>>, vector<1x32xf32>
      %c3 = arith.constant 3 : index
      %108 = arith.index_cast %74 : i32 to index
      %109 = memref.load %arg1[%c3, %108] : memref<8x20xi32, #tpu.memory_space<smem>>
      %110 = arith.index_cast %109 : i32 to index
      %c0_64 = arith.constant 0 : index
      %111 = vector.load %arg2[%110, %c0_64] : memref<64x32xf32, #tpu.memory_space<vmem>>, vector<1x32xf32>
      %c4 = arith.constant 4 : index
      %112 = arith.index_cast %74 : i32 to index
      %113 = memref.load %arg1[%c4, %112] : memref<8x20xi32, #tpu.memory_space<smem>>
      %114 = arith.index_cast %113 : i32 to index
      %c0_65 = arith.constant 0 : index
      %115 = vector.load %arg2[%114, %c0_65] : memref<64x32xf32, #tpu.memory_space<vmem>>, vector<1x32xf32>
      %c5 = arith.constant 5 : index
      %116 = arith.index_cast %74 : i32 to index
      %117 = memref.load %arg1[%c5, %116] : memref<8x20xi32, #tpu.memory_space<smem>>
      %118 = arith.index_cast %117 : i32 to index
      %c0_66 = arith.constant 0 : index
      %119 = vector.load %arg2[%118, %c0_66] : memref<64x32xf32, #tpu.memory_space<vmem>>, vector<1x32xf32>
      %c6 = arith.constant 6 : index
      %120 = arith.index_cast %74 : i32 to index
      %121 = memref.load %arg1[%c6, %120] : memref<8x20xi32, #tpu.memory_space<smem>>
      %122 = arith.index_cast %121 : i32 to index
      %c0_67 = arith.constant 0 : index
      %123 = vector.load %arg2[%122, %c0_67] : memref<64x32xf32, #tpu.memory_space<vmem>>, vector<1x32xf32>
      %c7 = arith.constant 7 : index
      %124 = arith.index_cast %74 : i32 to index
      %125 = memref.load %arg1[%c7, %124] : memref<8x20xi32, #tpu.memory_space<smem>>
      %126 = arith.index_cast %125 : i32 to index
      %c0_68 = arith.constant 0 : index
      %127 = vector.load %arg2[%126, %c0_68] : memref<64x32xf32, #tpu.memory_space<vmem>>, vector<1x32xf32>
      %128 = tpu.concatenate %99, %103, %107, %111, %115, %119, %123, %127 in 0 : vector<1x32xf32>, vector<1x32xf32>, vector<1x32xf32>, vector<1x32xf32>, vector<1x32xf32>, vector<1x32xf32>, vector<1x32xf32>, vector<1x32xf32> -> vector<8x32xf32>
      %c0_i32_69 = arith.constant 0 : i32
      %129 = arith.cmpi eq, %73, %c0_i32_69 : i32
      %130 = arith.extui %129 : i1 to i32
      %c0_i32_70 = arith.constant 0 : i32
      %131 = arith.cmpi ne, %130, %c0_i32_70 : i32
      scf.if %131 {
        %c0_75 = arith.constant 0 : index
        %c0_76 = arith.constant 0 : index
        %138 = vector.load %arg6[%c0_75, %c0_76] : memref<8x32xf32, #tpu.memory_space<vmem>>, vector<8x32xf32>
        tpu.vector_store %arg6[%c0_75, %c0_76], %128 {strides = array<i32>} : memref<8x32xf32, #tpu.memory_space<vmem>>, vector<8x32xf32>,
      } else {
      }
      %c0_i32_71 = arith.constant 0 : i32
      %132 = arith.cmpi ne, %73, %c0_i32_71 : i32
      %133 = arith.extui %132 : i1 to i32
      %c0_i32_72 = arith.constant 0 : i32
      %134 = arith.cmpi ne, %133, %c0_i32_72 : i32
      scf.if %134 {
        %c0_75 = arith.constant 0 : index
        %c0_76 = arith.constant 0 : index
        %138 = vector.load %arg6[%c0_75, %c0_76] : memref<8x32xf32, #tpu.memory_space<vmem>>, vector<8x32xf32>
        %cst = arith.constant dense<0xFF800000> : vector<8xf32>
        %139 = vector.multi_reduction <maximumf>, %138, %cst [1] : vector<8x32xf32> to vector<8xf32>
        %140 = vector.shape_cast %139 : vector<8xf32> to vector<8x1xf32>
        %141 = vector.broadcast %140 : vector<8x1xf32> to vector<8x32xf32>
        %142 = arith.subf %138, %141 : vector<8x32xf32>
        %143 = math.exp %142 : vector<8x32xf32>
        %c0_77 = arith.constant 0 : index
        %c0_78 = arith.constant 0 : index
        %144 = vector.load %arg3[%c0_77, %c0_78] : memref<32x32xf32, #tpu.memory_space<vmem>>, vector<32x32xf32>
        %cst_79 = arith.constant dense<0.000000e+00> : vector<8x32xf32>
        %145 = tpu.matmul %143, %144, %cst_79 {dimension_numbers = #tpu.dot_dimension_numbers<[1], [0], [0], [1], [0, 0, 1, 1], [], []>} : vector<8x32xf32>, vector<32x32xf32>, vector<8x32xf32> -> vector<8x32xf32>
        %146 = math.log %145 : vector<8x32xf32>
        %147 = vector.broadcast %140 : vector<8x1xf32> to vector<8x32xf32>
        %148 = arith.addf %146, %147 : vector<8x32xf32>
        %149 = arith.addf %148, %128 : vector<8x32xf32>
        %c0_80 = arith.constant 0 : index
        %c0_81 = arith.constant 0 : index
        %150 = vector.load %arg6[%c0_80, %c0_81] : memref<8x32xf32, #tpu.memory_space<vmem>>, vector<8x32xf32>
        tpu.vector_store %arg6[%c0_80, %c0_81], %149 {strides = array<i32>} : memref<8x32xf32, #tpu.memory_space<vmem>>, vector<8x32xf32>,
      } else {
      }
      %c19_i32_73 = arith.constant 19 : i32
      %135 = arith.cmpi eq, %73, %c19_i32_73 : i32
      %136 = arith.extui %135 : i1 to i32
      %c0_i32_74 = arith.constant 0 : i32
      %137 = arith.cmpi ne, %136, %c0_i32_74 : i32
      scf.if %137 {
        %c0_75 = arith.constant 0 : index
        %c0_76 = arith.constant 0 : index
        %138 = vector.load %arg6[%c0_75, %c0_76] : memref<8x32xf32, #tpu.memory_space<vmem>>, vector<8x32xf32>
        %cst = arith.constant dense<0xFF800000> : vector<8xf32>
        %139 = vector.multi_reduction <maximumf>, %138, %cst [1] : vector<8x32xf32> to vector<8xf32>
        %140 = vector.shape_cast %139 : vector<8xf32> to vector<8x1xf32>
        %141 = vector.broadcast %140 : vector<8x1xf32> to vector<8x32xf32>
        %142 = arith.subf %138, %141 : vector<8x32xf32>
        %143 = math.exp %142 : vector<8x32xf32>
        %c0_77 = arith.constant 0 : index
        %c0_78 = arith.constant 0 : index
        %144 = vector.load %arg4[%c0_77, %c0_78] : memref<1x32xf32, #tpu.memory_space<vmem>>, vector<1x32xf32>
        %145 = vector.broadcast %144 : vector<1x32xf32> to vector<8x32xf32>
        %146 = arith.mulf %143, %145 : vector<8x32xf32>
        %cst_79 = arith.constant dense<0.000000e+00> : vector<8xf32>
        %147 = vector.multi_reduction <add>, %146, %cst_79 [1] : vector<8x32xf32> to vector<8xf32>
        %148 = vector.shape_cast %147 : vector<8xf32> to vector<8x1xf32>
        %149 = math.log %148 : vector<8x1xf32>
        %150 = arith.addf %149, %140 : vector<8x1xf32>
        %c0_80 = arith.constant 0 : index
        %c0_81 = arith.constant 0 : index
        %151 = vector.load %arg5[%c0_80, %c0_81] : memref<8x1xf32, #tpu.memory_space<vmem>>, vector<8x1xf32>
        tpu.vector_store %arg5[%c0_80, %c0_81], %150 {strides = array<i32>} : memref<8x1xf32, #tpu.memory_space<vmem>>, vector<8x1xf32>,
      } else {
      }
    } else {
    }
    %c16_i32_49 = arith.constant 16 : i32
    %78 = arith.muli %arg0, %c16_i32_49 : i32
    %c13_i32 = arith.constant 13 : i32
    %79 = arith.addi %78, %c13_i32 : i32
    %c19_i32_50 = arith.constant 19 : i32
    %80 = arith.subi %c19_i32_50, %79 : i32
    %c20_i32_51 = arith.constant 20 : i32
    %81 = arith.cmpi slt, %79, %c20_i32_51 : i32
    %82 = arith.extui %81 : i1 to i32
    %c0_i32_52 = arith.constant 0 : i32
    %83 = arith.cmpi ne, %82, %c0_i32_52 : i32
    scf.if %83 {
      %c0 = arith.constant 0 : index
      %96 = arith.index_cast %80 : i32 to index
      %97 = memref.load %arg1[%c0, %96] : memref<8x20xi32, #tpu.memory_space<smem>>
      %98 = arith.index_cast %97 : i32 to index
      %c0_61 = arith.constant 0 : index
      %99 = vector.load %arg2[%98, %c0_61] : memref<64x32xf32, #tpu.memory_space<vmem>>, vector<1x32xf32>
      %c1 = arith.constant 1 : index
      %100 = arith.index_cast %80 : i32 to index
      %101 = memref.load %arg1[%c1, %100] : memref<8x20xi32, #tpu.memory_space<smem>>
      %102 = arith.index_cast %101 : i32 to index
      %c0_62 = arith.constant 0 : index
      %103 = vector.load %arg2[%102, %c0_62] : memref<64x32xf32, #tpu.memory_space<vmem>>, vector<1x32xf32>
      %c2 = arith.constant 2 : index
      %104 = arith.index_cast %80 : i32 to index
      %105 = memref.load %arg1[%c2, %104] : memref<8x20xi32, #tpu.memory_space<smem>>
      %106 = arith.index_cast %105 : i32 to index
      %c0_63 = arith.constant 0 : index
      %107 = vector.load %arg2[%106, %c0_63] : memref<64x32xf32, #tpu.memory_space<vmem>>, vector<1x32xf32>
      %c3 = arith.constant 3 : index
      %108 = arith.index_cast %80 : i32 to index
      %109 = memref.load %arg1[%c3, %108] : memref<8x20xi32, #tpu.memory_space<smem>>
      %110 = arith.index_cast %109 : i32 to index
      %c0_64 = arith.constant 0 : index
      %111 = vector.load %arg2[%110, %c0_64] : memref<64x32xf32, #tpu.memory_space<vmem>>, vector<1x32xf32>
      %c4 = arith.constant 4 : index
      %112 = arith.index_cast %80 : i32 to index
      %113 = memref.load %arg1[%c4, %112] : memref<8x20xi32, #tpu.memory_space<smem>>
      %114 = arith.index_cast %113 : i32 to index
      %c0_65 = arith.constant 0 : index
      %115 = vector.load %arg2[%114, %c0_65] : memref<64x32xf32, #tpu.memory_space<vmem>>, vector<1x32xf32>
      %c5 = arith.constant 5 : index
      %116 = arith.index_cast %80 : i32 to index
      %117 = memref.load %arg1[%c5, %116] : memref<8x20xi32, #tpu.memory_space<smem>>
      %118 = arith.index_cast %117 : i32 to index
      %c0_66 = arith.constant 0 : index
      %119 = vector.load %arg2[%118, %c0_66] : memref<64x32xf32, #tpu.memory_space<vmem>>, vector<1x32xf32>
      %c6 = arith.constant 6 : index
      %120 = arith.index_cast %80 : i32 to index
      %121 = memref.load %arg1[%c6, %120] : memref<8x20xi32, #tpu.memory_space<smem>>
      %122 = arith.index_cast %121 : i32 to index
      %c0_67 = arith.constant 0 : index
      %123 = vector.load %arg2[%122, %c0_67] : memref<64x32xf32, #tpu.memory_space<vmem>>, vector<1x32xf32>
      %c7 = arith.constant 7 : index
      %124 = arith.index_cast %80 : i32 to index
      %125 = memref.load %arg1[%c7, %124] : memref<8x20xi32, #tpu.memory_space<smem>>
      %126 = arith.index_cast %125 : i32 to index
      %c0_68 = arith.constant 0 : index
      %127 = vector.load %arg2[%126, %c0_68] : memref<64x32xf32, #tpu.memory_space<vmem>>, vector<1x32xf32>
      %128 = tpu.concatenate %99, %103, %107, %111, %115, %119, %123, %127 in 0 : vector<1x32xf32>, vector<1x32xf32>, vector<1x32xf32>, vector<1x32xf32>, vector<1x32xf32>, vector<1x32xf32>, vector<1x32xf32>, vector<1x32xf32> -> vector<8x32xf32>
      %c0_i32_69 = arith.constant 0 : i32
      %129 = arith.cmpi eq, %79, %c0_i32_69 : i32
      %130 = arith.extui %129 : i1 to i32
      %c0_i32_70 = arith.constant 0 : i32
      %131 = arith.cmpi ne, %130, %c0_i32_70 : i32
      scf.if %131 {
        %c0_75 = arith.constant 0 : index
        %c0_76 = arith.constant 0 : index
        %138 = vector.load %arg6[%c0_75, %c0_76] : memref<8x32xf32, #tpu.memory_space<vmem>>, vector<8x32xf32>
        tpu.vector_store %arg6[%c0_75, %c0_76], %128 {strides = array<i32>} : memref<8x32xf32, #tpu.memory_space<vmem>>, vector<8x32xf32>,
      } else {
      }
      %c0_i32_71 = arith.constant 0 : i32
      %132 = arith.cmpi ne, %79, %c0_i32_71 : i32
      %133 = arith.extui %132 : i1 to i32
      %c0_i32_72 = arith.constant 0 : i32
      %134 = arith.cmpi ne, %133, %c0_i32_72 : i32
      scf.if %134 {
        %c0_75 = arith.constant 0 : index
        %c0_76 = arith.constant 0 : index
        %138 = vector.load %arg6[%c0_75, %c0_76] : memref<8x32xf32, #tpu.memory_space<vmem>>, vector<8x32xf32>
        %cst = arith.constant dense<0xFF800000> : vector<8xf32>
        %139 = vector.multi_reduction <maximumf>, %138, %cst [1] : vector<8x32xf32> to vector<8xf32>
        %140 = vector.shape_cast %139 : vector<8xf32> to vector<8x1xf32>
        %141 = vector.broadcast %140 : vector<8x1xf32> to vector<8x32xf32>
        %142 = arith.subf %138, %141 : vector<8x32xf32>
        %143 = math.exp %142 : vector<8x32xf32>
        %c0_77 = arith.constant 0 : index
        %c0_78 = arith.constant 0 : index
        %144 = vector.load %arg3[%c0_77, %c0_78] : memref<32x32xf32, #tpu.memory_space<vmem>>, vector<32x32xf32>
        %cst_79 = arith.constant dense<0.000000e+00> : vector<8x32xf32>
        %145 = tpu.matmul %143, %144, %cst_79 {dimension_numbers = #tpu.dot_dimension_numbers<[1], [0], [0], [1], [0, 0, 1, 1], [], []>} : vector<8x32xf32>, vector<32x32xf32>, vector<8x32xf32> -> vector<8x32xf32>
        %146 = math.log %145 : vector<8x32xf32>
        %147 = vector.broadcast %140 : vector<8x1xf32> to vector<8x32xf32>
        %148 = arith.addf %146, %147 : vector<8x32xf32>
        %149 = arith.addf %148, %128 : vector<8x32xf32>
        %c0_80 = arith.constant 0 : index
        %c0_81 = arith.constant 0 : index
        %150 = vector.load %arg6[%c0_80, %c0_81] : memref<8x32xf32, #tpu.memory_space<vmem>>, vector<8x32xf32>
        tpu.vector_store %arg6[%c0_80, %c0_81], %149 {strides = array<i32>} : memref<8x32xf32, #tpu.memory_space<vmem>>, vector<8x32xf32>,
      } else {
      }
      %c19_i32_73 = arith.constant 19 : i32
      %135 = arith.cmpi eq, %79, %c19_i32_73 : i32
      %136 = arith.extui %135 : i1 to i32
      %c0_i32_74 = arith.constant 0 : i32
      %137 = arith.cmpi ne, %136, %c0_i32_74 : i32
      scf.if %137 {
        %c0_75 = arith.constant 0 : index
        %c0_76 = arith.constant 0 : index
        %138 = vector.load %arg6[%c0_75, %c0_76] : memref<8x32xf32, #tpu.memory_space<vmem>>, vector<8x32xf32>
        %cst = arith.constant dense<0xFF800000> : vector<8xf32>
        %139 = vector.multi_reduction <maximumf>, %138, %cst [1] : vector<8x32xf32> to vector<8xf32>
        %140 = vector.shape_cast %139 : vector<8xf32> to vector<8x1xf32>
        %141 = vector.broadcast %140 : vector<8x1xf32> to vector<8x32xf32>
        %142 = arith.subf %138, %141 : vector<8x32xf32>
        %143 = math.exp %142 : vector<8x32xf32>
        %c0_77 = arith.constant 0 : index
        %c0_78 = arith.constant 0 : index
        %144 = vector.load %arg4[%c0_77, %c0_78] : memref<1x32xf32, #tpu.memory_space<vmem>>, vector<1x32xf32>
        %145 = vector.broadcast %144 : vector<1x32xf32> to vector<8x32xf32>
        %146 = arith.mulf %143, %145 : vector<8x32xf32>
        %cst_79 = arith.constant dense<0.000000e+00> : vector<8xf32>
        %147 = vector.multi_reduction <add>, %146, %cst_79 [1] : vector<8x32xf32> to vector<8xf32>
        %148 = vector.shape_cast %147 : vector<8xf32> to vector<8x1xf32>
        %149 = math.log %148 : vector<8x1xf32>
        %150 = arith.addf %149, %140 : vector<8x1xf32>
        %c0_80 = arith.constant 0 : index
        %c0_81 = arith.constant 0 : index
        %151 = vector.load %arg5[%c0_80, %c0_81] : memref<8x1xf32, #tpu.memory_space<vmem>>, vector<8x1xf32>
        tpu.vector_store %arg5[%c0_80, %c0_81], %150 {strides = array<i32>} : memref<8x1xf32, #tpu.memory_space<vmem>>, vector<8x1xf32>,
      } else {
      }
    } else {
    }
    %c16_i32_53 = arith.constant 16 : i32
    %84 = arith.muli %arg0, %c16_i32_53 : i32
    %c14_i32 = arith.constant 14 : i32
    %85 = arith.addi %84, %c14_i32 : i32
    %c19_i32_54 = arith.constant 19 : i32
    %86 = arith.subi %c19_i32_54, %85 : i32
    %c20_i32_55 = arith.constant 20 : i32
    %87 = arith.cmpi slt, %85, %c20_i32_55 : i32
    %88 = arith.extui %87 : i1 to i32
    %c0_i32_56 = arith.constant 0 : i32
    %89 = arith.cmpi ne, %88, %c0_i32_56 : i32
    scf.if %89 {
      %c0 = arith.constant 0 : index
      %96 = arith.index_cast %86 : i32 to index
      %97 = memref.load %arg1[%c0, %96] : memref<8x20xi32, #tpu.memory_space<smem>>
      %98 = arith.index_cast %97 : i32 to index
      %c0_61 = arith.constant 0 : index
      %99 = vector.load %arg2[%98, %c0_61] : memref<64x32xf32, #tpu.memory_space<vmem>>, vector<1x32xf32>
      %c1 = arith.constant 1 : index
      %100 = arith.index_cast %86 : i32 to index
      %101 = memref.load %arg1[%c1, %100] : memref<8x20xi32, #tpu.memory_space<smem>>
      %102 = arith.index_cast %101 : i32 to index
      %c0_62 = arith.constant 0 : index
      %103 = vector.load %arg2[%102, %c0_62] : memref<64x32xf32, #tpu.memory_space<vmem>>, vector<1x32xf32>
      %c2 = arith.constant 2 : index
      %104 = arith.index_cast %86 : i32 to index
      %105 = memref.load %arg1[%c2, %104] : memref<8x20xi32, #tpu.memory_space<smem>>
      %106 = arith.index_cast %105 : i32 to index
      %c0_63 = arith.constant 0 : index
      %107 = vector.load %arg2[%106, %c0_63] : memref<64x32xf32, #tpu.memory_space<vmem>>, vector<1x32xf32>
      %c3 = arith.constant 3 : index
      %108 = arith.index_cast %86 : i32 to index
      %109 = memref.load %arg1[%c3, %108] : memref<8x20xi32, #tpu.memory_space<smem>>
      %110 = arith.index_cast %109 : i32 to index
      %c0_64 = arith.constant 0 : index
      %111 = vector.load %arg2[%110, %c0_64] : memref<64x32xf32, #tpu.memory_space<vmem>>, vector<1x32xf32>
      %c4 = arith.constant 4 : index
      %112 = arith.index_cast %86 : i32 to index
      %113 = memref.load %arg1[%c4, %112] : memref<8x20xi32, #tpu.memory_space<smem>>
      %114 = arith.index_cast %113 : i32 to index
      %c0_65 = arith.constant 0 : index
      %115 = vector.load %arg2[%114, %c0_65] : memref<64x32xf32, #tpu.memory_space<vmem>>, vector<1x32xf32>
      %c5 = arith.constant 5 : index
      %116 = arith.index_cast %86 : i32 to index
      %117 = memref.load %arg1[%c5, %116] : memref<8x20xi32, #tpu.memory_space<smem>>
      %118 = arith.index_cast %117 : i32 to index
      %c0_66 = arith.constant 0 : index
      %119 = vector.load %arg2[%118, %c0_66] : memref<64x32xf32, #tpu.memory_space<vmem>>, vector<1x32xf32>
      %c6 = arith.constant 6 : index
      %120 = arith.index_cast %86 : i32 to index
      %121 = memref.load %arg1[%c6, %120] : memref<8x20xi32, #tpu.memory_space<smem>>
      %122 = arith.index_cast %121 : i32 to index
      %c0_67 = arith.constant 0 : index
      %123 = vector.load %arg2[%122, %c0_67] : memref<64x32xf32, #tpu.memory_space<vmem>>, vector<1x32xf32>
      %c7 = arith.constant 7 : index
      %124 = arith.index_cast %86 : i32 to index
      %125 = memref.load %arg1[%c7, %124] : memref<8x20xi32, #tpu.memory_space<smem>>
      %126 = arith.index_cast %125 : i32 to index
      %c0_68 = arith.constant 0 : index
      %127 = vector.load %arg2[%126, %c0_68] : memref<64x32xf32, #tpu.memory_space<vmem>>, vector<1x32xf32>
      %128 = tpu.concatenate %99, %103, %107, %111, %115, %119, %123, %127 in 0 : vector<1x32xf32>, vector<1x32xf32>, vector<1x32xf32>, vector<1x32xf32>, vector<1x32xf32>, vector<1x32xf32>, vector<1x32xf32>, vector<1x32xf32> -> vector<8x32xf32>
      %c0_i32_69 = arith.constant 0 : i32
      %129 = arith.cmpi eq, %85, %c0_i32_69 : i32
      %130 = arith.extui %129 : i1 to i32
      %c0_i32_70 = arith.constant 0 : i32
      %131 = arith.cmpi ne, %130, %c0_i32_70 : i32
      scf.if %131 {
        %c0_75 = arith.constant 0 : index
        %c0_76 = arith.constant 0 : index
        %138 = vector.load %arg6[%c0_75, %c0_76] : memref<8x32xf32, #tpu.memory_space<vmem>>, vector<8x32xf32>
        tpu.vector_store %arg6[%c0_75, %c0_76], %128 {strides = array<i32>} : memref<8x32xf32, #tpu.memory_space<vmem>>, vector<8x32xf32>,
      } else {
      }
      %c0_i32_71 = arith.constant 0 : i32
      %132 = arith.cmpi ne, %85, %c0_i32_71 : i32
      %133 = arith.extui %132 : i1 to i32
      %c0_i32_72 = arith.constant 0 : i32
      %134 = arith.cmpi ne, %133, %c0_i32_72 : i32
      scf.if %134 {
        %c0_75 = arith.constant 0 : index
        %c0_76 = arith.constant 0 : index
        %138 = vector.load %arg6[%c0_75, %c0_76] : memref<8x32xf32, #tpu.memory_space<vmem>>, vector<8x32xf32>
        %cst = arith.constant dense<0xFF800000> : vector<8xf32>
        %139 = vector.multi_reduction <maximumf>, %138, %cst [1] : vector<8x32xf32> to vector<8xf32>
        %140 = vector.shape_cast %139 : vector<8xf32> to vector<8x1xf32>
        %141 = vector.broadcast %140 : vector<8x1xf32> to vector<8x32xf32>
        %142 = arith.subf %138, %141 : vector<8x32xf32>
        %143 = math.exp %142 : vector<8x32xf32>
        %c0_77 = arith.constant 0 : index
        %c0_78 = arith.constant 0 : index
        %144 = vector.load %arg3[%c0_77, %c0_78] : memref<32x32xf32, #tpu.memory_space<vmem>>, vector<32x32xf32>
        %cst_79 = arith.constant dense<0.000000e+00> : vector<8x32xf32>
        %145 = tpu.matmul %143, %144, %cst_79 {dimension_numbers = #tpu.dot_dimension_numbers<[1], [0], [0], [1], [0, 0, 1, 1], [], []>} : vector<8x32xf32>, vector<32x32xf32>, vector<8x32xf32> -> vector<8x32xf32>
        %146 = math.log %145 : vector<8x32xf32>
        %147 = vector.broadcast %140 : vector<8x1xf32> to vector<8x32xf32>
        %148 = arith.addf %146, %147 : vector<8x32xf32>
        %149 = arith.addf %148, %128 : vector<8x32xf32>
        %c0_80 = arith.constant 0 : index
        %c0_81 = arith.constant 0 : index
        %150 = vector.load %arg6[%c0_80, %c0_81] : memref<8x32xf32, #tpu.memory_space<vmem>>, vector<8x32xf32>
        tpu.vector_store %arg6[%c0_80, %c0_81], %149 {strides = array<i32>} : memref<8x32xf32, #tpu.memory_space<vmem>>, vector<8x32xf32>,
      } else {
      }
      %c19_i32_73 = arith.constant 19 : i32
      %135 = arith.cmpi eq, %85, %c19_i32_73 : i32
      %136 = arith.extui %135 : i1 to i32
      %c0_i32_74 = arith.constant 0 : i32
      %137 = arith.cmpi ne, %136, %c0_i32_74 : i32
      scf.if %137 {
        %c0_75 = arith.constant 0 : index
        %c0_76 = arith.constant 0 : index
        %138 = vector.load %arg6[%c0_75, %c0_76] : memref<8x32xf32, #tpu.memory_space<vmem>>, vector<8x32xf32>
        %cst = arith.constant dense<0xFF800000> : vector<8xf32>
        %139 = vector.multi_reduction <maximumf>, %138, %cst [1] : vector<8x32xf32> to vector<8xf32>
        %140 = vector.shape_cast %139 : vector<8xf32> to vector<8x1xf32>
        %141 = vector.broadcast %140 : vector<8x1xf32> to vector<8x32xf32>
        %142 = arith.subf %138, %141 : vector<8x32xf32>
        %143 = math.exp %142 : vector<8x32xf32>
        %c0_77 = arith.constant 0 : index
        %c0_78 = arith.constant 0 : index
        %144 = vector.load %arg4[%c0_77, %c0_78] : memref<1x32xf32, #tpu.memory_space<vmem>>, vector<1x32xf32>
        %145 = vector.broadcast %144 : vector<1x32xf32> to vector<8x32xf32>
        %146 = arith.mulf %143, %145 : vector<8x32xf32>
        %cst_79 = arith.constant dense<0.000000e+00> : vector<8xf32>
        %147 = vector.multi_reduction <add>, %146, %cst_79 [1] : vector<8x32xf32> to vector<8xf32>
        %148 = vector.shape_cast %147 : vector<8xf32> to vector<8x1xf32>
        %149 = math.log %148 : vector<8x1xf32>
        %150 = arith.addf %149, %140 : vector<8x1xf32>
        %c0_80 = arith.constant 0 : index
        %c0_81 = arith.constant 0 : index
        %151 = vector.load %arg5[%c0_80, %c0_81] : memref<8x1xf32, #tpu.memory_space<vmem>>, vector<8x1xf32>
        tpu.vector_store %arg5[%c0_80, %c0_81], %150 {strides = array<i32>} : memref<8x1xf32, #tpu.memory_space<vmem>>, vector<8x1xf32>,
      } else {
      }
    } else {
    }
    %c16_i32_57 = arith.constant 16 : i32
    %90 = arith.muli %arg0, %c16_i32_57 : i32
    %c15_i32 = arith.constant 15 : i32
    %91 = arith.addi %90, %c15_i32 : i32
    %c19_i32_58 = arith.constant 19 : i32
    %92 = arith.subi %c19_i32_58, %91 : i32
    %c20_i32_59 = arith.constant 20 : i32
    %93 = arith.cmpi slt, %91, %c20_i32_59 : i32
    %94 = arith.extui %93 : i1 to i32
    %c0_i32_60 = arith.constant 0 : i32
    %95 = arith.cmpi ne, %94, %c0_i32_60 : i32
    scf.if %95 {
      %c0 = arith.constant 0 : index
      %96 = arith.index_cast %92 : i32 to index
      %97 = memref.load %arg1[%c0, %96] : memref<8x20xi32, #tpu.memory_space<smem>>
      %98 = arith.index_cast %97 : i32 to index
      %c0_61 = arith.constant 0 : index
      %99 = vector.load %arg2[%98, %c0_61] : memref<64x32xf32, #tpu.memory_space<vmem>>, vector<1x32xf32>
      %c1 = arith.constant 1 : index
      %100 = arith.index_cast %92 : i32 to index
      %101 = memref.load %arg1[%c1, %100] : memref<8x20xi32, #tpu.memory_space<smem>>
      %102 = arith.index_cast %101 : i32 to index
      %c0_62 = arith.constant 0 : index
      %103 = vector.load %arg2[%102, %c0_62] : memref<64x32xf32, #tpu.memory_space<vmem>>, vector<1x32xf32>
      %c2 = arith.constant 2 : index
      %104 = arith.index_cast %92 : i32 to index
      %105 = memref.load %arg1[%c2, %104] : memref<8x20xi32, #tpu.memory_space<smem>>
      %106 = arith.index_cast %105 : i32 to index
      %c0_63 = arith.constant 0 : index
      %107 = vector.load %arg2[%106, %c0_63] : memref<64x32xf32, #tpu.memory_space<vmem>>, vector<1x32xf32>
      %c3 = arith.constant 3 : index
      %108 = arith.index_cast %92 : i32 to index
      %109 = memref.load %arg1[%c3, %108] : memref<8x20xi32, #tpu.memory_space<smem>>
      %110 = arith.index_cast %109 : i32 to index
      %c0_64 = arith.constant 0 : index
      %111 = vector.load %arg2[%110, %c0_64] : memref<64x32xf32, #tpu.memory_space<vmem>>, vector<1x32xf32>
      %c4 = arith.constant 4 : index
      %112 = arith.index_cast %92 : i32 to index
      %113 = memref.load %arg1[%c4, %112] : memref<8x20xi32, #tpu.memory_space<smem>>
      %114 = arith.index_cast %113 : i32 to index
      %c0_65 = arith.constant 0 : index
      %115 = vector.load %arg2[%114, %c0_65] : memref<64x32xf32, #tpu.memory_space<vmem>>, vector<1x32xf32>
      %c5 = arith.constant 5 : index
      %116 = arith.index_cast %92 : i32 to index
      %117 = memref.load %arg1[%c5, %116] : memref<8x20xi32, #tpu.memory_space<smem>>
      %118 = arith.index_cast %117 : i32 to index
      %c0_66 = arith.constant 0 : index
      %119 = vector.load %arg2[%118, %c0_66] : memref<64x32xf32, #tpu.memory_space<vmem>>, vector<1x32xf32>
      %c6 = arith.constant 6 : index
      %120 = arith.index_cast %92 : i32 to index
      %121 = memref.load %arg1[%c6, %120] : memref<8x20xi32, #tpu.memory_space<smem>>
      %122 = arith.index_cast %121 : i32 to index
      %c0_67 = arith.constant 0 : index
      %123 = vector.load %arg2[%122, %c0_67] : memref<64x32xf32, #tpu.memory_space<vmem>>, vector<1x32xf32>
      %c7 = arith.constant 7 : index
      %124 = arith.index_cast %92 : i32 to index
      %125 = memref.load %arg1[%c7, %124] : memref<8x20xi32, #tpu.memory_space<smem>>
      %126 = arith.index_cast %125 : i32 to index
      %c0_68 = arith.constant 0 : index
      %127 = vector.load %arg2[%126, %c0_68] : memref<64x32xf32, #tpu.memory_space<vmem>>, vector<1x32xf32>
      %128 = tpu.concatenate %99, %103, %107, %111, %115, %119, %123, %127 in 0 : vector<1x32xf32>, vector<1x32xf32>, vector<1x32xf32>, vector<1x32xf32>, vector<1x32xf32>, vector<1x32xf32>, vector<1x32xf32>, vector<1x32xf32> -> vector<8x32xf32>
      %c0_i32_69 = arith.constant 0 : i32
      %129 = arith.cmpi eq, %91, %c0_i32_69 : i32
      %130 = arith.extui %129 : i1 to i32
      %c0_i32_70 = arith.constant 0 : i32
      %131 = arith.cmpi ne, %130, %c0_i32_70 : i32
      scf.if %131 {
        %c0_75 = arith.constant 0 : index
        %c0_76 = arith.constant 0 : index
        %138 = vector.load %arg6[%c0_75, %c0_76] : memref<8x32xf32, #tpu.memory_space<vmem>>, vector<8x32xf32>
        tpu.vector_store %arg6[%c0_75, %c0_76], %128 {strides = array<i32>} : memref<8x32xf32, #tpu.memory_space<vmem>>, vector<8x32xf32>,
      } else {
      }
      %c0_i32_71 = arith.constant 0 : i32
      %132 = arith.cmpi ne, %91, %c0_i32_71 : i32
      %133 = arith.extui %132 : i1 to i32
      %c0_i32_72 = arith.constant 0 : i32
      %134 = arith.cmpi ne, %133, %c0_i32_72 : i32
      scf.if %134 {
        %c0_75 = arith.constant 0 : index
        %c0_76 = arith.constant 0 : index
        %138 = vector.load %arg6[%c0_75, %c0_76] : memref<8x32xf32, #tpu.memory_space<vmem>>, vector<8x32xf32>
        %cst = arith.constant dense<0xFF800000> : vector<8xf32>
        %139 = vector.multi_reduction <maximumf>, %138, %cst [1] : vector<8x32xf32> to vector<8xf32>
        %140 = vector.shape_cast %139 : vector<8xf32> to vector<8x1xf32>
        %141 = vector.broadcast %140 : vector<8x1xf32> to vector<8x32xf32>
        %142 = arith.subf %138, %141 : vector<8x32xf32>
        %143 = math.exp %142 : vector<8x32xf32>
        %c0_77 = arith.constant 0 : index
        %c0_78 = arith.constant 0 : index
        %144 = vector.load %arg3[%c0_77, %c0_78] : memref<32x32xf32, #tpu.memory_space<vmem>>, vector<32x32xf32>
        %cst_79 = arith.constant dense<0.000000e+00> : vector<8x32xf32>
        %145 = tpu.matmul %143, %144, %cst_79 {dimension_numbers = #tpu.dot_dimension_numbers<[1], [0], [0], [1], [0, 0, 1, 1], [], []>} : vector<8x32xf32>, vector<32x32xf32>, vector<8x32xf32> -> vector<8x32xf32>
        %146 = math.log %145 : vector<8x32xf32>
        %147 = vector.broadcast %140 : vector<8x1xf32> to vector<8x32xf32>
        %148 = arith.addf %146, %147 : vector<8x32xf32>
        %149 = arith.addf %148, %128 : vector<8x32xf32>
        %c0_80 = arith.constant 0 : index
        %c0_81 = arith.constant 0 : index
        %150 = vector.load %arg6[%c0_80, %c0_81] : memref<8x32xf32, #tpu.memory_space<vmem>>, vector<8x32xf32>
        tpu.vector_store %arg6[%c0_80, %c0_81], %149 {strides = array<i32>} : memref<8x32xf32, #tpu.memory_space<vmem>>, vector<8x32xf32>,
      } else {
      }
      %c19_i32_73 = arith.constant 19 : i32
      %135 = arith.cmpi eq, %91, %c19_i32_73 : i32
      %136 = arith.extui %135 : i1 to i32
      %c0_i32_74 = arith.constant 0 : i32
      %137 = arith.cmpi ne, %136, %c0_i32_74 : i32
      scf.if %137 {
        %c0_75 = arith.constant 0 : index
        %c0_76 = arith.constant 0 : index
        %138 = vector.load %arg6[%c0_75, %c0_76] : memref<8x32xf32, #tpu.memory_space<vmem>>, vector<8x32xf32>
        %cst = arith.constant dense<0xFF800000> : vector<8xf32>
        %139 = vector.multi_reduction <maximumf>, %138, %cst [1] : vector<8x32xf32> to vector<8xf32>
        %140 = vector.shape_cast %139 : vector<8xf32> to vector<8x1xf32>
        %141 = vector.broadcast %140 : vector<8x1xf32> to vector<8x32xf32>
        %142 = arith.subf %138, %141 : vector<8x32xf32>
        %143 = math.exp %142 : vector<8x32xf32>
        %c0_77 = arith.constant 0 : index
        %c0_78 = arith.constant 0 : index
        %144 = vector.load %arg4[%c0_77, %c0_78] : memref<1x32xf32, #tpu.memory_space<vmem>>, vector<1x32xf32>
        %145 = vector.broadcast %144 : vector<1x32xf32> to vector<8x32xf32>
        %146 = arith.mulf %143, %145 : vector<8x32xf32>
        %cst_79 = arith.constant dense<0.000000e+00> : vector<8xf32>
        %147 = vector.multi_reduction <add>, %146, %cst_79 [1] : vector<8x32xf32> to vector<8xf32>
        %148 = vector.shape_cast %147 : vector<8xf32> to vector<8x1xf32>
        %149 = math.log %148 : vector<8x1xf32>
        %150 = arith.addf %149, %140 : vector<8x1xf32>
        %c0_80 = arith.constant 0 : index
        %c0_81 = arith.constant 0 : index
        %151 = vector.load %arg5[%c0_80, %c0_81] : memref<8x1xf32, #tpu.memory_space<vmem>>, vector<8x1xf32>
        tpu.vector_store %arg5[%c0_80, %c0_81], %150 {strides = array<i32>} : memref<8x1xf32, #tpu.memory_space<vmem>>, vector<8x1xf32>,
      } else {
      }
    } else {
    }
    return
  }
  func.func @transform_0(%arg0: i32, %arg1: memref<8x20xi32, #tpu.memory_space<smem>>) -> (i32, i32) {
    %c0_i32 = arith.constant 0 : i32
    %c0_i32_0 = arith.constant 0 : i32
    %c0_i32_1 = arith.constant 0 : i32
    return %c0_i32, %c0_i32_0 : i32, i32
  }
  func.func @transform_1(%arg0: i32, %arg1: memref<8x20xi32, #tpu.memory_space<smem>>) -> (i32, i32) {
    %c0_i32 = arith.constant 0 : i32
    %c0_i32_0 = arith.constant 0 : i32
    %c0_i32_1 = arith.constant 0 : i32
    return %c0_i32, %c0_i32_0 : i32, i32
  }
  func.func @transform_2(%arg0: i32, %arg1: memref<8x20xi32, #tpu.memory_space<smem>>) -> (i32, i32) {
    %c0_i32 = arith.constant 0 : i32
    %c0_i32_0 = arith.constant 0 : i32
    %c0_i32_1 = arith.constant 0 : i32
    return %c0_i32, %c0_i32_0 : i32, i32
  }
  func.func @transform_3(%arg0: i32, %arg1: memref<8x20xi32, #tpu.memory_space<smem>>) -> (i32, i32) {
    %c0_i32 = arith.constant 0 : i32
    %c0_i32_0 = arith.constant 0 : i32
    %c0_i32_1 = arith.constant 0 : i32
    return %c0_i32, %c0_i32_0 : i32, i32
  }
}

</mosaic_0001>

<llo_original>
// kernel: hmm_forward_pallas.1
$region0: #{hmm_forward_pallas.1}
  #allocation0 [shape = 'u32[]', space=smem, size = 0x4, offset = 0x4, fixed_abs, tag = 'smem constant byte address 0x4 - core index']
  #allocation1 [shape = 'u32[144,128]{1,0:T(1,128)}', space=vmem, size = 0x12000, scoped, tag = 'internal scratch']
  #allocation2 [shape = 'f32[8,32]{1,0:T(8,128)}', space=vmem, size = 0x1000, scoped, tag = 'scratch operand']
  #allocation3 [shape = 's32[1]{0}', space=sflag, size = 0x4, scoped, tag = 'scoped memory for hmm_forward_pallas.1']
  #allocation4 [shape = 'u8[4096]{0}', space=smem, size = 0x1000, scoped, tag = 'prefetched SMEM operand 0']
  %s0 = inlined_call_operand.vmem [shape: s32[8,20], index: 0, kind: input, shape index: {}]
  %s1 = inlined_call_operand.vmem [shape: f32[64,32], index: 1, kind: input, shape index: {}]
  %s2 = inlined_call_operand.vmem [shape: f32[32,32], index: 2, kind: input, shape index: {}]
  %s3 = inlined_call_operand.vmem [shape: f32[1,32], index: 3, kind: input, shape index: {}]
  %s4 = inlined_call_operand.vmem [shape: f32[8,1], index: 4, kind: output, shape index: {}]
  %s5 = sld [smem:[#allocation0]]
  $region301: #{hmm_forward_pallas.1} parent=0
    _
  %s7 = ssub.s32 1, %s5
  %s8 = scalar_select 0, %s7, %s5
  %s9 = sshll.u32 %s0, 4
  %s10 = int_to_ptr.vmem [resolvable:$true] %s9
  %12 = dma.vmem_to_smem %s10, 128, [#allocation4], [#allocation3]
  %13 = dma.done [#allocation3], 128
  %14 = sfence
  loop: start=0, step=1, limit=4
  $region2: #{hmm_forward_pallas.1} parent=0 // loop_pre_header
    _
  $region3: #{hmm_forward_pallas.1} parent=0 // loop_header
    %s16 = sphi 0, %s20
    %p17 = scmp.ge.s32.totalorder %s16, 4
    %s24 = sphi 0, %s24
    %s26 = sphi 0, %s24
    %s27 = sphi 0, %s26
    %s41 = sphi 0, %s27
    %s45 = sphi 0, %s45
    %s47 = sphi 0, %s45
    %s48 = sphi 0, %s47
    %s62 = sphi 0, %s48
    %s66 = sphi 0, %s66
    %s68 = sphi 0, %s66
    %s69 = sphi 0, %s68
    %s83 = sphi 0, %s69
    %s87 = sphi 0, %s87
    %s89 = sphi 0, %s87
    %s90 = sphi 0, %s89
    %s104 = sphi 0, %s90
  $region4: #{hmm_forward_pallas.1} parent=0 // loop_header_branch
    %19 = sbr.rel (%p17) target = $region8
  $region5: #{hmm_forward_pallas.1} parent=0 // loop_body
    %s21 = ssub.s32 %s16, 1
    %s22 = ssub.s32 %s16, 2
    %s23 = sadd.s32 %s16, 1
    %s25 = sadd.s32 %s24, 1
    %p28 = scmp.eq.s32.totalorder %s16, 1
    %p29 = scmp.ne.s32.totalorder %s24, %s26
    %p30 = scmp.eq.s32.totalorder %s16, 0
    %p31 = por %p29, %p30
    %p32 = scmp.ne.s32.totalorder %s24, %s26
    %p33 = scmp.eq.s32.totalorder %s21, 1
    %p34 = por %p32, %p33
    %p35 = scmp.ne.s32.totalorder %s26, %s27
    %p36 = scmp.eq.s32.totalorder %s21, 0
    %p37 = por %p35, %p36
    %p38 = scmp.ne.s32.totalorder %s26, %s27
    %p39 = scmp.eq.s32.totalorder %s22, 1
    %p40 = por %p38, %p39
    %p42 = scmp.ne.s32.totalorder %s27, %s41
    %p43 = scmp.eq.s32.totalorder %s22, 0
    %p44 = por %p42, %p43
    %s46 = sadd.s32 %s45, 1
    %p49 = scmp.eq.s32.totalorder %s16, 1
    %p50 = scmp.ne.s32.totalorder %s45, %s47
    %p51 = scmp.eq.s32.totalorder %s16, 0
    %p52 = por %p50, %p51
    %p53 = scmp.ne.s32.totalorder %s45, %s47
    %p54 = scmp.eq.s32.totalorder %s21, 1
    %p55 = por %p53, %p54
    %p56 = scmp.ne.s32.totalorder %s47, %s48
    %p57 = scmp.eq.s32.totalorder %s21, 0
    %p58 = por %p56, %p57
    %p59 = scmp.ne.s32.totalorder %s47, %s48
    %p60 = scmp.eq.s32.totalorder %s22, 1
    %p61 = por %p59, %p60
    %p63 = scmp.ne.s32.totalorder %s48, %s62
    %p64 = scmp.eq.s32.totalorder %s22, 0
    %p65 = por %p63, %p64
    %s67 = sadd.s32 %s66, 1
    %p70 = scmp.eq.s32.totalorder %s16, 1
    %p71 = scmp.ne.s32.totalorder %s66, %s68
    %p72 = scmp.eq.s32.totalorder %s16, 0
    %p73 = por %p71, %p72
    %p74 = scmp.ne.s32.totalorder %s66, %s68
    %p75 = scmp.eq.s32.totalorder %s21, 1
    %p76 = por %p74, %p75
    %p77 = scmp.ne.s32.totalorder %s68, %s69
    %p78 = scmp.eq.s32.totalorder %s21, 0
    %p79 = por %p77, %p78
    %p80 = scmp.ne.s32.totalorder %s68, %s69
    %p81 = scmp.eq.s32.totalorder %s22, 1
    %p82 = por %p80, %p81
    %p84 = scmp.ne.s32.totalorder %s69, %s83
    %p85 = scmp.eq.s32.totalorder %s22, 0
    %p86 = por %p84, %p85
    %s88 = sadd.s32 %s87, 1
    %p91 = scmp.eq.s32.totalorder %s16, 1
    %p92 = scmp.ne.s32.totalorder %s87, %s89
    %p93 = scmp.eq.s32.totalorder %s16, 0
    %p94 = por %p92, %p93
    %p95 = scmp.ne.s32.totalorder %s87, %s89
    %p96 = scmp.eq.s32.totalorder %s21, 1
    %p97 = por %p95, %p96
    %p98 = scmp.ne.s32.totalorder %s89, %s90
    %p99 = scmp.eq.s32.totalorder %s21, 0
    %p100 = por %p98, %p99
    %p101 = scmp.ne.s32.totalorder %s89, %s90
    %p102 = scmp.eq.s32.totalorder %s22, 1
    %p103 = por %p101, %p102
    %p105 = scmp.ne.s32.totalorder %s90, %s104
    %p106 = scmp.eq.s32.totalorder %s22, 0
    %p107 = por %p105, %p106
    %p108 = scmp.le.s32.totalorder 1, %s16
    %p109 = scmp.lt.s32.totalorder %s16, 3
    %p110 = pnand %p108, %p109
    %p111 = pneg %p110
    // Predicated region
    $region9: #{hmm_forward_pallas.1} parent=5 // pred_check
      _
    $region10: #{hmm_forward_pallas.1} parent=5 // pred_check_branch
      %113 = sbr.rel (%p110) target = $region12
    $region11: #{hmm_forward_pallas.1} parent=5 // pred_region
      %s114 = ssub.s32 %s16, 1
      // Predicated region
      $region13: #{hmm_forward_pallas.1} parent=11 // pred_check
        %p115 = pneg %p37
      $region14: #{hmm_forward_pallas.1} parent=11 // pred_check_branch
        %117 = sbr.rel (%p115) target = $region16
      $region15: #{hmm_forward_pallas.1} parent=11 // pred_region
        _
      $region16: #{hmm_forward_pallas.1} parent=11 // pred_fallthru
        _
      // Predicated region
      $region17: #{hmm_forward_pallas.1} parent=11 // pred_check
        %p118 = pneg %p58
      $region18: #{hmm_forward_pallas.1} parent=11 // pred_check_branch
        %120 = sbr.rel (%p118) target = $region20
      $region19: #{hmm_forward_pallas.1} parent=11 // pred_region
        _
      $region20: #{hmm_forward_pallas.1} parent=11 // pred_fallthru
        _
      // Predicated region
      $region21: #{hmm_forward_pallas.1} parent=11 // pred_check
        %p121 = pneg %p79
      $region22: #{hmm_forward_pallas.1} parent=11 // pred_check_branch
        %123 = sbr.rel (%p121) target = $region24
      $region23: #{hmm_forward_pallas.1} parent=11 // pred_region
        _
      $region24: #{hmm_forward_pallas.1} parent=11 // pred_fallthru
        _
    $region12: #{hmm_forward_pallas.1} parent=5 // pred_fallthru
      _
    %p124 = scmp.lt.s32.totalorder %s16, 2
    // Predicated region
    $region25: #{hmm_forward_pallas.1} parent=5 // pred_check
      %p125 = pneg %p124
    $region26: #{hmm_forward_pallas.1} parent=5 // pred_check_branch
      %127 = sbr.rel (%p125) target = $region28
    $region27: #{hmm_forward_pallas.1} parent=5 // pred_region
      _
    $region28: #{hmm_forward_pallas.1} parent=5 // pred_fallthru
      _
    %p128 = scmp.le.s32.totalorder 1, %s16
    %p129 = scmp.lt.s32.totalorder %s16, 3
    %p130 = pnand %p128, %p129
    %p131 = pneg %p130
    // Predicated region
    $region29: #{hmm_forward_pallas.1} parent=5 // pred_check
      _
    $region30: #{hmm_forward_pallas.1} parent=5 // pred_check_branch
      %133 = sbr.rel (%p130) target = $region32
    $region31: #{hmm_forward_pallas.1} parent=5 // pred_region
      %s134 = ssub.s32 %s16, 1
      %p135 = pneg %p37
      %p136 = pneg %p34
      %p137 = pneg %p58
      %p138 = pneg %p55
      %p139 = pneg %p79
      %p140 = pneg %p76
      %p141 = pneg %p100
      %p142 = pneg %p97
      %s143 = smul.u32 %s21, 16
      %s144 = ssub.s32 19, %s143
      %p145 = scmp.lt.s32.totalorder %s143, 20
      // Predicated region
      $region33: #{hmm_forward_pallas.1} parent=31 // pred_check
        %p146 = pneg %p145
      $region34: #{hmm_forward_pallas.1} parent=31 // pred_check_branch
        %148 = sbr.rel (%p146) target = $region36
      $region35: #{hmm_forward_pallas.1} parent=31 // pred_region
        %s149 = sld [smem:[#allocation4 + %s144]]
        %s150 = scalar_lea.vmem %s1, %s149
        %v151 = vld [vmem:[%s150] sm:$0x1]
        %s152 = sshra.s32 %s144, 7
        %s153 = sand.u32 %s144, 127
        %s154 = sadd.s32 %s152, 1
        %s155 = smul.u32 %s154, 128
        %s156 = sshra.s32 %s144, 7
        %s157 = sand.u32 %s144, 127
        %s158 = sadd.s32 %s155, %s157
        %s159 = sld [smem:[#allocation4 + %s158]]
        %s160 = scalar_lea.vmem %s1, %s159
        %v161 = vld [vmem:[%s160] sm:$0x1]
        %s162 = sadd.s32 %s152, 2
        %s163 = smul.u32 %s162, 128
        %s164 = sadd.s32 %s163, %s157
        %s165 = sld [smem:[#allocation4 + %s164]]
        %s166 = scalar_lea.vmem %s1, %s165
        %v167 = vld [vmem:[%s166] sm:$0x1]
        %s168 = sadd.s32 %s152, 3
        %s169 = smul.u32 %s168, 128
        %s170 = sadd.s32 %s169, %s157
        %s171 = sld [smem:[#allocation4 + %s170]]
        %s172 = scalar_lea.vmem %s1, %s171
        %v173 = vld [vmem:[%s172] sm:$0x1]
        %s174 = sadd.s32 %s152, 4
        %s175 = smul.u32 %s174, 128
        %s176 = sadd.s32 %s175, %s157
        %s177 = sld [smem:[#allocation4 + %s176]]
        %s178 = scalar_lea.vmem %s1, %s177
        %v179 = vld [vmem:[%s178] sm:$0x1]
        %s180 = sadd.s32 %s152, 5
        %s181 = smul.u32 %s180, 128
        %s182 = sadd.s32 %s181, %s157
        %s183 = sld [smem:[#allocation4 + %s182]]
        %s184 = scalar_lea.vmem %s1, %s183
        %v185 = vld [vmem:[%s184] sm:$0x1]
        %s186 = sadd.s32 %s152, 6
        %s187 = smul.u32 %s186, 128
        %s188 = sadd.s32 %s187, %s157
        %s189 = sld [smem:[#allocation4 + %s188]]
        %s190 = scalar_lea.vmem %s1, %s189
        %v191 = vld [vmem:[%s190] sm:$0x1]
        %s192 = sadd.s32 %s152, 7
        %s193 = smul.u32 %s192, 128
        %s194 = sadd.s32 %s193, %s157
        %s195 = sld [smem:[#allocation4 + %s194]]
        %s196 = scalar_lea.vmem %s1, %s195
        %v197 = vld [vmem:[%s196] sm:$0x1]
        %v199 = vrot.slane %v161, 7
        %v202 = vrot.slane %v167, 6
        %v205 = vrot.slane %v173, 5
        %v208 = vrot.slane %v179, 4
        %v211 = vrot.slane %v185, 3
        %v214 = vrot.slane %v191, 2
        %v217 = vrot.slane %v197, 1
        %vm219 = vcmask 1040384
        %v220 = vsel %vm219, %v151, %v199
        %vm221 = vcmask 1041408
        %v222 = vsel %vm221, %v220, %v202
        %vm223 = vcmask 1042432
        %v224 = vsel %vm223, %v222, %v205
        %vm225 = vcmask 1043456
        %v226 = vsel %vm225, %v224, %v208
        %vm227 = vcmask 1044480
        %v228 = vsel %vm227, %v226, %v211
        %vm229 = vcmask 1045504
        %v230 = vsel %vm229, %v228, %v214
        %vm231 = vcmask 1046528
        %v232 = vsel %vm231, %v230, %v217
        %p233 = scmp.eq.s32.totalorder %s143, 0
        // Predicated region
        $region37: #{hmm_forward_pallas.1} parent=35 // pred_check
          %p234 = pneg %p233
        $region38: #{hmm_forward_pallas.1} parent=35 // pred_check_branch
          %236 = sbr.rel (%p234) target = $region40
        $region39: #{hmm_forward_pallas.1} parent=35 // pred_region
          %vm237 = vcmask 261120
          %238 = vst.msk [vmem:[#allocation2] sm:$0xff] %vm237, %v232
        $region40: #{hmm_forward_pallas.1} parent=35 // pred_fallthru
          _
        %p239 = scmp.ne.s32.totalorder %s143, 0
        // Predicated region
        $region41: #{hmm_forward_pallas.1} parent=35 // pred_check
          %p240 = pneg %p239
        $region42: #{hmm_forward_pallas.1} parent=35 // pred_check_branch
          %242 = sbr.rel (%p240) target = $region44
        $region43: #{hmm_forward_pallas.1} parent=35 // pred_region
          %v243 = vld [vmem:[#allocation2] sm:$0xff]
          %vm244 = vcmask 261120
          %v245 = vsel %vm244, %v243, -inf
          %246 = vmax.xlane.f32.xlu0 %v245
          %v247 = vpop.xlane.xlu0 %246
          %v248 = vsub.f32 %v243, %v247
          %v249 = vmul.f32 %v248, 1.442695
          %v250 = vpow.pop %v249
          %v251 = vld [vmem:[%s2] sm:$0xff]
          %v252 = vld [vmem:[%s2 + $0x8] sm:$0xff]
          %v253 = vld [vmem:[%s2 + $0x10] sm:$0xff]
          %v254 = vld [vmem:[%s2 + $0x18] sm:$0xff]
          %v256 = vsel %vm244, %v250, 0
          %258 = vmatprep.subr.mxu0 0.0
          %259 = vmatpush1.msra.mxu0 %v251
          %260 = vmatprep.subr.mxu0 0.0
          %261 = vmatpush1.msra.mxu0 %v252
          %262 = vmatprep.subr.mxu0 0.0
          %263 = vmatpush1.msra.mxu0 %v253
          %264 = vmatprep.subr.mxu0 0.0
          %265 = vmatpush1.msra.mxu0 %v254
          %266 = vmatprep.subr.mxu0 0.0
          %267 = vmatpush1.msra.mxu0 0.0
          %268 = vmatprep.subr.mxu0 0.0
          %269 = vmatpush1.msra.mxu0 0.0
          %270 = vmatprep.subr.mxu0 0.0
          %271 = vmatpush1.msra.mxu0 0.0
          %272 = vmatprep.subr.mxu0 0.0
          %273 = vmatpush1.msra.mxu0 0.0
          %274 = vmatprep.subr.mxu0 0.0
          %275 = vmatpush1.msra.mxu0 0.0
          %276 = vmatprep.subr.mxu0 0.0
          %277 = vmatpush1.msra.mxu0 0.0
          %278 = vmatprep.subr.mxu0 0.0
          %279 = vmatpush1.msra.mxu0 0.0
          %280 = vmatprep.subr.mxu0 0.0
          %281 = vmatpush1.msra.mxu0 0.0
          %282 = vmatprep.subr.mxu0 0.0
          %283 = vmatpush1.msra.mxu0 0.0
          %284 = vmatprep.subr.mxu0 0.0
          %285 = vmatpush1.msra.mxu0 0.0
          %286 = vmatprep.subr.mxu0 0.0
          %287 = vmatpush1.msra.mxu0 0.0
          %288 = vmatprep.subr.mxu0 0.0
          %289 = vmatpush1.msra.mxu0 0.0
          %290 = vmatprep.subr.mxu0 0.0
          %291 = vmatpush1.msra.mxu0 0.0
          %292 = vmatprep.subr.mxu0 0.0
          %293 = vmatpush1.msra.mxu0 0.0
          %294 = vmatprep.subr.mxu0 0.0
          %295 = vmatpush1.msra.mxu0 0.0
          %296 = vmatprep.subr.mxu0 0.0
          %297 = vmatpush1.msra.mxu0 0.0
          %298 = vmatprep.subr.mxu0 0.0
          %299 = vmatpush1.msra.mxu0 0.0
          %300 = vmatprep.subr.mxu0 0.0
          %301 = vmatpush1.msra.mxu0 0.0
          %302 = vmatprep.subr.mxu0 0.0
          %303 = vmatpush1.msra.mxu0 0.0
          %304 = vmatprep.subr.mxu0 0.0
          %305 = vmatpush1.msra.mxu0 0.0
          %306 = vmatprep.subr.mxu0 0.0
          %307 = vmatpush1.msra.mxu0 0.0
          %308 = vmatprep.subr.mxu0 0.0
          %309 = vmatpush1.msra.mxu0 0.0
          %310 = vmatprep.subr.mxu0 0.0
          %311 = vmatpush1.msra.mxu0 0.0
          %312 = vmatprep.subr.mxu0 0.0
          %313 = vmatpush1.msra.mxu0 0.0
          %314 = vmatprep.subr.mxu0 0.0
          %315 = vmatpush1.msra.mxu0 0.0
          %316 = vmatprep.subr.mxu0 0.0
          %317 = vmatpush1.msra.mxu0 0.0
          %318 = vmatprep.subr.mxu0 0.0
          %319 = vmatpush1.msra.mxu0 0.0
          %320 = vmatprep.subr.mxu0 0.0
          %321 = vmatpush1.msra.mxu0 0.0
          %322 = vmatprep.mubr.f32.mxu0 0.0
          %323 = vmatmul.mubr.f32.gmra.mrb[0].mxu0 %v256
          %v324 = vpop.f32.mrb[0].mxu0
          %v325 = vadd.f32 0.0, %v324
          %v326 = vpop.f32.mrb[0].mxu0
          %327 = vdwg.mxu0
          %v328 = vlog2.pop %v325
          %v329 = vmul.f32 %v328, 0.6931472
          %v330 = vadd.f32 %v329, %v247
          %v331 = vadd.f32 %v330, %v232
          %332 = vst.msk [vmem:[#allocation2] sm:$0xff] %vm244, %v331
        $region44: #{hmm_forward_pallas.1} parent=35 // pred_fallthru
          _
        %p333 = scmp.eq.s32.totalorder %s143, 19
        // Predicated region
        $region45: #{hmm_forward_pallas.1} parent=35 // pred_check
          %p334 = pneg %p333
        $region46: #{hmm_forward_pallas.1} parent=35 // pred_check_branch
          %336 = sbr.rel (%p334) target = $region48
        $region47: #{hmm_forward_pallas.1} parent=35 // pred_region
          %v337 = vld [vmem:[#allocation2] sm:$0xff]
          %vm338 = vcmask 261120
          %v339 = vsel %vm338, %v337, -inf
          %340 = vmax.xlane.f32.xlu0 %v339
          %v341 = vpop.xlane.xlu0 %340
          %v342 = vsub.f32 %v337, %v341
          %v343 = vmul.f32 %v342, 1.442695
          %v344 = vpow.pop %v343
          %v345 = vld [vmem:[%s3] sm:$0x1]
          %v347 = vlaneseq
          %v348 = vshrl.u32 %v347, 7
          %v349 = vsub.s32 0, %v348
          %v350 = vrot.slane %v345, %v349
          %v352 = vmul.f32 %v344, %v350
          %v353 = vsel %vm338, %v352, 0.0
          %354 = vadd.xlane.f32.xlu0 %v353
          %v355 = vpop.xlane.xlu0 %354
          %v356 = vlog2.pop %v355
          %v357 = vmul.f32 %v356, 0.6931472
          %v358 = vadd.f32 %v357, %v341
          %vm359 = vcmask 7168
          %360 = vst.msk [vmem:[%s4] sm:$0xff] %vm359, %v358
        $region48: #{hmm_forward_pallas.1} parent=35 // pred_fallthru
          _
      $region36: #{hmm_forward_pallas.1} parent=31 // pred_fallthru
        _
      %s361 = sadd.s32 %s143, 1
      %s362 = ssub.s32 18, %s143
      %p363 = scmp.lt.s32.totalorder %s361, 20
      // Predicated region
      $region49: #{hmm_forward_pallas.1} parent=31 // pred_check
        %p364 = pneg %p363
      $region50: #{hmm_forward_pallas.1} parent=31 // pred_check_branch
        %366 = sbr.rel (%p364) target = $region52
      $region51: #{hmm_forward_pallas.1} parent=31 // pred_region
        %s367 = sld [smem:[#allocation4 + %s362]]
        %s368 = scalar_lea.vmem %s1, %s367
        %v369 = vld [vmem:[%s368] sm:$0x1]
        %s370 = sshra.s32 %s362, 7
        %s371 = sand.u32 %s362, 127
        %s372 = sadd.s32 %s370, 1
        %s373 = smul.u32 %s372, 128
        %s374 = sshra.s32 %s362, 7
        %s375 = sand.u32 %s362, 127
        %s376 = sadd.s32 %s373, %s375
        %s377 = sld [smem:[#allocation4 + %s376]]
        %s378 = scalar_lea.vmem %s1, %s377
        %v379 = vld [vmem:[%s378] sm:$0x1]
        %s380 = sadd.s32 %s370, 2
        %s381 = smul.u32 %s380, 128
        %s382 = sadd.s32 %s381, %s375
        %s383 = sld [smem:[#allocation4 + %s382]]
        %s384 = scalar_lea.vmem %s1, %s383
        %v385 = vld [vmem:[%s384] sm:$0x1]
        %s386 = sadd.s32 %s370, 3
        %s387 = smul.u32 %s386, 128
        %s388 = sadd.s32 %s387, %s375
        %s389 = sld [smem:[#allocation4 + %s388]]
        %s390 = scalar_lea.vmem %s1, %s389
        %v391 = vld [vmem:[%s390] sm:$0x1]
        %s392 = sadd.s32 %s370, 4
        %s393 = smul.u32 %s392, 128
        %s394 = sadd.s32 %s393, %s375
        %s395 = sld [smem:[#allocation4 + %s394]]
        %s396 = scalar_lea.vmem %s1, %s395
        %v397 = vld [vmem:[%s396] sm:$0x1]
        %s398 = sadd.s32 %s370, 5
        %s399 = smul.u32 %s398, 128
        %s400 = sadd.s32 %s399, %s375
        %s401 = sld [smem:[#allocation4 + %s400]]
        %s402 = scalar_lea.vmem %s1, %s401
        %v403 = vld [vmem:[%s402] sm:$0x1]
        %s404 = sadd.s32 %s370, 6
        %s405 = smul.u32 %s404, 128
        %s406 = sadd.s32 %s405, %s375
        %s407 = sld [smem:[#allocation4 + %s406]]
        %s408 = scalar_lea.vmem %s1, %s407
        %v409 = vld [vmem:[%s408] sm:$0x1]
        %s410 = sadd.s32 %s370, 7
        %s411 = smul.u32 %s410, 128
        %s412 = sadd.s32 %s411, %s375
        %s413 = sld [smem:[#allocation4 + %s412]]
        %s414 = scalar_lea.vmem %s1, %s413
        %v415 = vld [vmem:[%s414] sm:$0x1]
        %v417 = vrot.slane %v379, 7
        %v420 = vrot.slane %v385, 6
        %v423 = vrot.slane %v391, 5
        %v426 = vrot.slane %v397, 4
        %v429 = vrot.slane %v403, 3
        %v432 = vrot.slane %v409, 2
        %v435 = vrot.slane %v415, 1
        %vm437 = vcmask 1040384
        %v438 = vsel %vm437, %v369, %v417
        %vm439 = vcmask 1041408
        %v440 = vsel %vm439, %v438, %v420
        %vm441 = vcmask 1042432
        %v442 = vsel %vm441, %v440, %v423
        %vm443 = vcmask 1043456
        %v444 = vsel %vm443, %v442, %v426
        %vm445 = vcmask 1044480
        %v446 = vsel %vm445, %v444, %v429
        %vm447 = vcmask 1045504
        %v448 = vsel %vm447, %v446, %v432
        %vm449 = vcmask 1046528
        %v450 = vsel %vm449, %v448, %v435
        %p451 = scmp.eq.s32.totalorder %s361, 0
        // Predicated region
        $region53: #{hmm_forward_pallas.1} parent=51 // pred_check
          %p452 = pneg %p451
        $region54: #{hmm_forward_pallas.1} parent=51 // pred_check_branch
          %454 = sbr.rel (%p452) target = $region56
        $region55: #{hmm_forward_pallas.1} parent=51 // pred_region
          %vm455 = vcmask 261120
          %456 = vst.msk [vmem:[#allocation2] sm:$0xff] %vm455, %v450
        $region56: #{hmm_forward_pallas.1} parent=51 // pred_fallthru
          _
        %p457 = scmp.ne.s32.totalorder %s361, 0
        // Predicated region
        $region57: #{hmm_forward_pallas.1} parent=51 // pred_check
          %p458 = pneg %p457
        $region58: #{hmm_forward_pallas.1} parent=51 // pred_check_branch
          %460 = sbr.rel (%p458) target = $region60
        $region59: #{hmm_forward_pallas.1} parent=51 // pred_region
          %v461 = vld [vmem:[#allocation2] sm:$0xff]
          %vm462 = vcmask 261120
          %v463 = vsel %vm462, %v461, -inf
          %464 = vmax.xlane.f32.xlu0 %v463
          %v465 = vpop.xlane.xlu0 %464
          %v466 = vsub.f32 %v461, %v465
          %v467 = vmul.f32 %v466, 1.442695
          %v468 = vpow.pop %v467
          %v469 = vld [vmem:[%s2] sm:$0xff]
          %v470 = vld [vmem:[%s2 + $0x8] sm:$0xff]
          %v471 = vld [vmem:[%s2 + $0x10] sm:$0xff]
          %v472 = vld [vmem:[%s2 + $0x18] sm:$0xff]
          %v474 = vsel %vm462, %v468, 0
          %476 = vmatprep.subr.mxu0 0.0
          %477 = vmatpush1.msra.mxu0 %v469
          %478 = vmatprep.subr.mxu0 0.0
          %479 = vmatpush1.msra.mxu0 %v470
          %480 = vmatprep.subr.mxu0 0.0
          %481 = vmatpush1.msra.mxu0 %v471
          %482 = vmatprep.subr.mxu0 0.0
          %483 = vmatpush1.msra.mxu0 %v472
          %484 = vmatprep.subr.mxu0 0.0
          %485 = vmatpush1.msra.mxu0 0.0
          %486 = vmatprep.subr.mxu0 0.0
          %487 = vmatpush1.msra.mxu0 0.0
          %488 = vmatprep.subr.mxu0 0.0
          %489 = vmatpush1.msra.mxu0 0.0
          %490 = vmatprep.subr.mxu0 0.0
          %491 = vmatpush1.msra.mxu0 0.0
          %492 = vmatprep.subr.mxu0 0.0
          %493 = vmatpush1.msra.mxu0 0.0
          %494 = vmatprep.subr.mxu0 0.0
          %495 = vmatpush1.msra.mxu0 0.0
          %496 = vmatprep.subr.mxu0 0.0
          %497 = vmatpush1.msra.mxu0 0.0
          %498 = vmatprep.subr.mxu0 0.0
          %499 = vmatpush1.msra.mxu0 0.0
          %500 = vmatprep.subr.mxu0 0.0
          %501 = vmatpush1.msra.mxu0 0.0
          %502 = vmatprep.subr.mxu0 0.0
          %503 = vmatpush1.msra.mxu0 0.0
          %504 = vmatprep.subr.mxu0 0.0
          %505 = vmatpush1.msra.mxu0 0.0
          %506 = vmatprep.subr.mxu0 0.0
          %507 = vmatpush1.msra.mxu0 0.0
          %508 = vmatprep.subr.mxu0 0.0
          %509 = vmatpush1.msra.mxu0 0.0
          %510 = vmatprep.subr.mxu0 0.0
          %511 = vmatpush1.msra.mxu0 0.0
          %512 = vmatprep.subr.mxu0 0.0
          %513 = vmatpush1.msra.mxu0 0.0
          %514 = vmatprep.subr.mxu0 0.0
          %515 = vmatpush1.msra.mxu0 0.0
          %516 = vmatprep.subr.mxu0 0.0
          %517 = vmatpush1.msra.mxu0 0.0
          %518 = vmatprep.subr.mxu0 0.0
          %519 = vmatpush1.msra.mxu0 0.0
          %520 = vmatprep.subr.mxu0 0.0
          %521 = vmatpush1.msra.mxu0 0.0
          %522 = vmatprep.subr.mxu0 0.0
          %523 = vmatpush1.msra.mxu0 0.0
          %524 = vmatprep.subr.mxu0 0.0
          %525 = vmatpush1.msra.mxu0 0.0
          %526 = vmatprep.subr.mxu0 0.0
          %527 = vmatpush1.msra.mxu0 0.0
          %528 = vmatprep.subr.mxu0 0.0
          %529 = vmatpush1.msra.mxu0 0.0
          %530 = vmatprep.subr.mxu0 0.0
          %531 = vmatpush1.msra.mxu0 0.0
          %532 = vmatprep.subr.mxu0 0.0
          %533 = vmatpush1.msra.mxu0 0.0
          %534 = vmatprep.subr.mxu0 0.0
          %535 = vmatpush1.msra.mxu0 0.0
          %536 = vmatprep.subr.mxu0 0.0
          %537 = vmatpush1.msra.mxu0 0.0
          %538 = vmatprep.subr.mxu0 0.0
          %539 = vmatpush1.msra.mxu0 0.0
          %540 = vmatprep.mubr.f32.mxu0 0.0
          %541 = vmatmul.mubr.f32.gmra.mrb[0].mxu0 %v474
          %v542 = vpop.f32.mrb[0].mxu0
          %v543 = vadd.f32 0.0, %v542
          %v544 = vpop.f32.mrb[0].mxu0
          %545 = vdwg.mxu0
          %v546 = vlog2.pop %v543
          %v547 = vmul.f32 %v546, 0.6931472
          %v548 = vadd.f32 %v547, %v465
          %v549 = vadd.f32 %v548, %v450
          %550 = vst.msk [vmem:[#allocation2] sm:$0xff] %vm462, %v549
        $region60: #{hmm_forward_pallas.1} parent=51 // pred_fallthru
          _
        %p551 = scmp.eq.s32.totalorder %s361, 19
        // Predicated region
        $region61: #{hmm_forward_pallas.1} parent=51 // pred_check
          %p552 = pneg %p551
        $region62: #{hmm_forward_pallas.1} parent=51 // pred_check_branch
          %554 = sbr.rel (%p552) target = $region64
        $region63: #{hmm_forward_pallas.1} parent=51 // pred_region
          %v555 = vld [vmem:[#allocation2] sm:$0xff]
          %vm556 = vcmask 261120
          %v557 = vsel %vm556, %v555, -inf
          %558 = vmax.xlane.f32.xlu0 %v557
          %v559 = vpop.xlane.xlu0 %558
          %v560 = vsub.f32 %v555, %v559
          %v561 = vmul.f32 %v560, 1.442695
          %v562 = vpow.pop %v561
          %v563 = vld [vmem:[%s3] sm:$0x1]
          %v565 = vlaneseq
          %v566 = vshrl.u32 %v565, 7
          %v567 = vsub.s32 0, %v566
          %v568 = vrot.slane %v563, %v567
          %v570 = vmul.f32 %v562, %v568
          %v571 = vsel %vm556, %v570, 0.0
          %572 = vadd.xlane.f32.xlu0 %v571
          %v573 = vpop.xlane.xlu0 %572
          %v574 = vlog2.pop %v573
          %v575 = vmul.f32 %v574, 0.6931472
          %v576 = vadd.f32 %v575, %v559
          %vm577 = vcmask 7168
          %578 = vst.msk [vmem:[%s4] sm:$0xff] %vm577, %v576
        $region64: #{hmm_forward_pallas.1} parent=51 // pred_fallthru
          _
      $region52: #{hmm_forward_pallas.1} parent=31 // pred_fallthru
        _
      %s579 = sadd.s32 %s143, 2
      %s580 = ssub.s32 17, %s143
      %p581 = scmp.lt.s32.totalorder %s579, 20
      // Predicated region
      $region65: #{hmm_forward_pallas.1} parent=31 // pred_check
        %p582 = pneg %p581
      $region66: #{hmm_forward_pallas.1} parent=31 // pred_check_branch
        %584 = sbr.rel (%p582) target = $region68
      $region67: #{hmm_forward_pallas.1} parent=31 // pred_region
        %s585 = sld [smem:[#allocation4 + %s580]]
        %s586 = scalar_lea.vmem %s1, %s585
        %v587 = vld [vmem:[%s586] sm:$0x1]
        %s588 = sshra.s32 %s580, 7
        %s589 = sand.u32 %s580, 127
        %s590 = sadd.s32 %s588, 1
        %s591 = smul.u32 %s590, 128
        %s592 = sshra.s32 %s580, 7
        %s593 = sand.u32 %s580, 127
        %s594 = sadd.s32 %s591, %s593
        %s595 = sld [smem:[#allocation4 + %s594]]
        %s596 = scalar_lea.vmem %s1, %s595
        %v597 = vld [vmem:[%s596] sm:$0x1]
        %s598 = sadd.s32 %s588, 2
        %s599 = smul.u32 %s598, 128
        %s600 = sadd.s32 %s599, %s593
        %s601 = sld [smem:[#allocation4 + %s600]]
        %s602 = scalar_lea.vmem %s1, %s601
        %v603 = vld [vmem:[%s602] sm:$0x1]
        %s604 = sadd.s32 %s588, 3
        %s605 = smul.u32 %s604, 128
        %s606 = sadd.s32 %s605, %s593
        %s607 = sld [smem:[#allocation4 + %s606]]
        %s608 = scalar_lea.vmem %s1, %s607
        %v609 = vld [vmem:[%s608] sm:$0x1]
        %s610 = sadd.s32 %s588, 4
        %s611 = smul.u32 %s610, 128
        %s612 = sadd.s32 %s611, %s593
        %s613 = sld [smem:[#allocation4 + %s612]]
        %s614 = scalar_lea.vmem %s1, %s613
        %v615 = vld [vmem:[%s614] sm:$0x1]
        %s616 = sadd.s32 %s588, 5
        %s617 = smul.u32 %s616, 128
        %s618 = sadd.s32 %s617, %s593
        %s619 = sld [smem:[#allocation4 + %s618]]
        %s620 = scalar_lea.vmem %s1, %s619
        %v621 = vld [vmem:[%s620] sm:$0x1]
        %s622 = sadd.s32 %s588, 6
        %s623 = smul.u32 %s622, 128
        %s624 = sadd.s32 %s623, %s593
        %s625 = sld [smem:[#allocation4 + %s624]]
        %s626 = scalar_lea.vmem %s1, %s625
        %v627 = vld [vmem:[%s626] sm:$0x1]
        %s628 = sadd.s32 %s588, 7
        %s629 = smul.u32 %s628, 128
        %s630 = sadd.s32 %s629, %s593
        %s631 = sld [smem:[#allocation4 + %s630]]
        %s632 = scalar_lea.vmem %s1, %s631
        %v633 = vld [vmem:[%s632] sm:$0x1]
        %v635 = vrot.slane %v597, 7
        %v638 = vrot.slane %v603, 6
        %v641 = vrot.slane %v609, 5
        %v644 = vrot.slane %v615, 4
        %v647 = vrot.slane %v621, 3
        %v650 = vrot.slane %v627, 2
        %v653 = vrot.slane %v633, 1
        %vm655 = vcmask 1040384
        %v656 = vsel %vm655, %v587, %v635
        %vm657 = vcmask 1041408
        %v658 = vsel %vm657, %v656, %v638
        %vm659 = vcmask 1042432
        %v660 = vsel %vm659, %v658, %v641
        %vm661 = vcmask 1043456
        %v662 = vsel %vm661, %v660, %v644
        %vm663 = vcmask 1044480
        %v664 = vsel %vm663, %v662, %v647
        %vm665 = vcmask 1045504
        %v666 = vsel %vm665, %v664, %v650
        %vm667 = vcmask 1046528
        %v668 = vsel %vm667, %v666, %v653
        %p669 = scmp.eq.s32.totalorder %s579, 0
        // Predicated region
        $region69: #{hmm_forward_pallas.1} parent=67 // pred_check
          %p670 = pneg %p669
        $region70: #{hmm_forward_pallas.1} parent=67 // pred_check_branch
          %672 = sbr.rel (%p670) target = $region72
        $region71: #{hmm_forward_pallas.1} parent=67 // pred_region
          %vm673 = vcmask 261120
          %674 = vst.msk [vmem:[#allocation2] sm:$0xff] %vm673, %v668
        $region72: #{hmm_forward_pallas.1} parent=67 // pred_fallthru
          _
        %p675 = scmp.ne.s32.totalorder %s579, 0
        // Predicated region
        $region73: #{hmm_forward_pallas.1} parent=67 // pred_check
          %p676 = pneg %p675
        $region74: #{hmm_forward_pallas.1} parent=67 // pred_check_branch
          %678 = sbr.rel (%p676) target = $region76
        $region75: #{hmm_forward_pallas.1} parent=67 // pred_region
          %v679 = vld [vmem:[#allocation2] sm:$0xff]
          %vm680 = vcmask 261120
          %v681 = vsel %vm680, %v679, -inf
          %682 = vmax.xlane.f32.xlu0 %v681
          %v683 = vpop.xlane.xlu0 %682
          %v684 = vsub.f32 %v679, %v683
          %v685 = vmul.f32 %v684, 1.442695
          %v686 = vpow.pop %v685
          %v687 = vld [vmem:[%s2] sm:$0xff]
          %v688 = vld [vmem:[%s2 + $0x8] sm:$0xff]
          %v689 = vld [vmem:[%s2 + $0x10] sm:$0xff]
          %v690 = vld [vmem:[%s2 + $0x18] sm:$0xff]
          %v692 = vsel %vm680, %v686, 0
          %694 = vmatprep.subr.mxu0 0.0
          %695 = vmatpush1.msra.mxu0 %v687
          %696 = vmatprep.subr.mxu0 0.0
          %697 = vmatpush1.msra.mxu0 %v688
          %698 = vmatprep.subr.mxu0 0.0
          %699 = vmatpush1.msra.mxu0 %v689
          %700 = vmatprep.subr.mxu0 0.0
          %701 = vmatpush1.msra.mxu0 %v690
          %702 = vmatprep.subr.mxu0 0.0
          %703 = vmatpush1.msra.mxu0 0.0
          %704 = vmatprep.subr.mxu0 0.0
          %705 = vmatpush1.msra.mxu0 0.0
          %706 = vmatprep.subr.mxu0 0.0
          %707 = vmatpush1.msra.mxu0 0.0
          %708 = vmatprep.subr.mxu0 0.0
          %709 = vmatpush1.msra.mxu0 0.0
          %710 = vmatprep.subr.mxu0 0.0
          %711 = vmatpush1.msra.mxu0 0.0
          %712 = vmatprep.subr.mxu0 0.0
          %713 = vmatpush1.msra.mxu0 0.0
          %714 = vmatprep.subr.mxu0 0.0
          %715 = vmatpush1.msra.mxu0 0.0
          %716 = vmatprep.subr.mxu0 0.0
          %717 = vmatpush1.msra.mxu0 0.0
          %718 = vmatprep.subr.mxu0 0.0
          %719 = vmatpush1.msra.mxu0 0.0
          %720 = vmatprep.subr.mxu0 0.0
          %721 = vmatpush1.msra.mxu0 0.0
          %722 = vmatprep.subr.mxu0 0.0
          %723 = vmatpush1.msra.mxu0 0.0
          %724 = vmatprep.subr.mxu0 0.0
          %725 = vmatpush1.msra.mxu0 0.0
          %726 = vmatprep.subr.mxu0 0.0
          %727 = vmatpush1.msra.mxu0 0.0
          %728 = vmatprep.subr.mxu0 0.0
          %729 = vmatpush1.msra.mxu0 0.0
          %730 = vmatprep.subr.mxu0 0.0
          %731 = vmatpush1.msra.mxu0 0.0
          %732 = vmatprep.subr.mxu0 0.0
          %733 = vmatpush1.msra.mxu0 0.0
          %734 = vmatprep.subr.mxu0 0.0
          %735 = vmatpush1.msra.mxu0 0.0
          %736 = vmatprep.subr.mxu0 0.0
          %737 = vmatpush1.msra.mxu0 0.0
          %738 = vmatprep.subr.mxu0 0.0
          %739 = vmatpush1.msra.mxu0 0.0
          %740 = vmatprep.subr.mxu0 0.0
          %741 = vmatpush1.msra.mxu0 0.0
          %742 = vmatprep.subr.mxu0 0.0
          %743 = vmatpush1.msra.mxu0 0.0
          %744 = vmatprep.subr.mxu0 0.0
          %745 = vmatpush1.msra.mxu0 0.0
          %746 = vmatprep.subr.mxu0 0.0
          %747 = vmatpush1.msra.mxu0 0.0
          %748 = vmatprep.subr.mxu0 0.0
          %749 = vmatpush1.msra.mxu0 0.0
          %750 = vmatprep.subr.mxu0 0.0
          %751 = vmatpush1.msra.mxu0 0.0
          %752 = vmatprep.subr.mxu0 0.0
          %753 = vmatpush1.msra.mxu0 0.0
          %754 = vmatprep.subr.mxu0 0.0
          %755 = vmatpush1.msra.mxu0 0.0
          %756 = vmatprep.subr.mxu0 0.0
          %757 = vmatpush1.msra.mxu0 0.0
          %758 = vmatprep.mubr.f32.mxu0 0.0
          %759 = vmatmul.mubr.f32.gmra.mrb[0].mxu0 %v692
          %v760 = vpop.f32.mrb[0].mxu0
          %v761 = vadd.f32 0.0, %v760
          %v762 = vpop.f32.mrb[0].mxu0
          %763 = vdwg.mxu0
          %v764 = vlog2.pop %v761
          %v765 = vmul.f32 %v764, 0.6931472
          %v766 = vadd.f32 %v765, %v683
          %v767 = vadd.f32 %v766, %v668
          %768 = vst.msk [vmem:[#allocation2] sm:$0xff] %vm680, %v767
        $region76: #{hmm_forward_pallas.1} parent=67 // pred_fallthru
          _
        %p769 = scmp.eq.s32.totalorder %s579, 19
        // Predicated region
        $region77: #{hmm_forward_pallas.1} parent=67 // pred_check
          %p770 = pneg %p769
        $region78: #{hmm_forward_pallas.1} parent=67 // pred_check_branch
          %772 = sbr.rel (%p770) target = $region80
        $region79: #{hmm_forward_pallas.1} parent=67 // pred_region
          %v773 = vld [vmem:[#allocation2] sm:$0xff]
          %vm774 = vcmask 261120
          %v775 = vsel %vm774, %v773, -inf
          %776 = vmax.xlane.f32.xlu0 %v775
          %v777 = vpop.xlane.xlu0 %776
          %v778 = vsub.f32 %v773, %v777
          %v779 = vmul.f32 %v778, 1.442695
          %v780 = vpow.pop %v779
          %v781 = vld [vmem:[%s3] sm:$0x1]
          %v783 = vlaneseq
          %v784 = vshrl.u32 %v783, 7
          %v785 = vsub.s32 0, %v784
          %v786 = vrot.slane %v781, %v785
          %v788 = vmul.f32 %v780, %v786
          %v789 = vsel %vm774, %v788, 0.0
          %790 = vadd.xlane.f32.xlu0 %v789
          %v791 = vpop.xlane.xlu0 %790
          %v792 = vlog2.pop %v791
          %v793 = vmul.f32 %v792, 0.6931472
          %v794 = vadd.f32 %v793, %v777
          %vm795 = vcmask 7168
          %796 = vst.msk [vmem:[%s4] sm:$0xff] %vm795, %v794
        $region80: #{hmm_forward_pallas.1} parent=67 // pred_fallthru
          _
      $region68: #{hmm_forward_pallas.1} parent=31 // pred_fallthru
        _
      %s797 = sadd.s32 %s143, 3
      %s798 = ssub.s32 16, %s143
      %p799 = scmp.lt.s32.totalorder %s797, 20
      // Predicated region
      $region81: #{hmm_forward_pallas.1} parent=31 // pred_check
        %p800 = pneg %p799
      $region82: #{hmm_forward_pallas.1} parent=31 // pred_check_branch
        %802 = sbr.rel (%p800) target = $region84
      $region83: #{hmm_forward_pallas.1} parent=31 // pred_region
        %s803 = sld [smem:[#allocation4 + %s798]]
        %s804 = scalar_lea.vmem %s1, %s803
        %v805 = vld [vmem:[%s804] sm:$0x1]
        %s806 = sshra.s32 %s798, 7
        %s807 = sand.u32 %s798, 127
        %s808 = sadd.s32 %s806, 1
        %s809 = smul.u32 %s808, 128
        %s810 = sshra.s32 %s798, 7
        %s811 = sand.u32 %s798, 127
        %s812 = sadd.s32 %s809, %s811
        %s813 = sld [smem:[#allocation4 + %s812]]
        %s814 = scalar_lea.vmem %s1, %s813
        %v815 = vld [vmem:[%s814] sm:$0x1]
        %s816 = sadd.s32 %s806, 2
        %s817 = smul.u32 %s816, 128
        %s818 = sadd.s32 %s817, %s811
        %s819 = sld [smem:[#allocation4 + %s818]]
        %s820 = scalar_lea.vmem %s1, %s819
        %v821 = vld [vmem:[%s820] sm:$0x1]
        %s822 = sadd.s32 %s806, 3
        %s823 = smul.u32 %s822, 128
        %s824 = sadd.s32 %s823, %s811
        %s825 = sld [smem:[#allocation4 + %s824]]
        %s826 = scalar_lea.vmem %s1, %s825
        %v827 = vld [vmem:[%s826] sm:$0x1]
        %s828 = sadd.s32 %s806, 4
        %s829 = smul.u32 %s828, 128
        %s830 = sadd.s32 %s829, %s811
        %s831 = sld [smem:[#allocation4 + %s830]]
        %s832 = scalar_lea.vmem %s1, %s831
        %v833 = vld [vmem:[%s832] sm:$0x1]
        %s834 = sadd.s32 %s806, 5
        %s835 = smul.u32 %s834, 128
        %s836 = sadd.s32 %s835, %s811
        %s837 = sld [smem:[#allocation4 + %s836]]
        %s838 = scalar_lea.vmem %s1, %s837
        %v839 = vld [vmem:[%s838] sm:$0x1]
        %s840 = sadd.s32 %s806, 6
        %s841 = smul.u32 %s840, 128
        %s842 = sadd.s32 %s841, %s811
        %s843 = sld [smem:[#allocation4 + %s842]]
        %s844 = scalar_lea.vmem %s1, %s843
        %v845 = vld [vmem:[%s844] sm:$0x1]
        %s846 = sadd.s32 %s806, 7
        %s847 = smul.u32 %s846, 128
        %s848 = sadd.s32 %s847, %s811
        %s849 = sld [smem:[#allocation4 + %s848]]
        %s850 = scalar_lea.vmem %s1, %s849
        %v851 = vld [vmem:[%s850] sm:$0x1]
        %v853 = vrot.slane %v815, 7
        %v856 = vrot.slane %v821, 6
        %v859 = vrot.slane %v827, 5
        %v862 = vrot.slane %v833, 4
        %v865 = vrot.slane %v839, 3
        %v868 = vrot.slane %v845, 2
        %v871 = vrot.slane %v851, 1
        %vm873 = vcmask 1040384
        %v874 = vsel %vm873, %v805, %v853
        %vm875 = vcmask 1041408
        %v876 = vsel %vm875, %v874, %v856
        %vm877 = vcmask 1042432
        %v878 = vsel %vm877, %v876, %v859
        %vm879 = vcmask 1043456
        %v880 = vsel %vm879, %v878, %v862
        %vm881 = vcmask 1044480
        %v882 = vsel %vm881, %v880, %v865
        %vm883 = vcmask 1045504
        %v884 = vsel %vm883, %v882, %v868
        %vm885 = vcmask 1046528
        %v886 = vsel %vm885, %v884, %v871
        %p887 = scmp.eq.s32.totalorder %s797, 0
        // Predicated region
        $region85: #{hmm_forward_pallas.1} parent=83 // pred_check
          %p888 = pneg %p887
        $region86: #{hmm_forward_pallas.1} parent=83 // pred_check_branch
          %890 = sbr.rel (%p888) target = $region88
        $region87: #{hmm_forward_pallas.1} parent=83 // pred_region
          %vm891 = vcmask 261120
          %892 = vst.msk [vmem:[#allocation2] sm:$0xff] %vm891, %v886
        $region88: #{hmm_forward_pallas.1} parent=83 // pred_fallthru
          _
        %p893 = scmp.ne.s32.totalorder %s797, 0
        // Predicated region
        $region89: #{hmm_forward_pallas.1} parent=83 // pred_check
          %p894 = pneg %p893
        $region90: #{hmm_forward_pallas.1} parent=83 // pred_check_branch
          %896 = sbr.rel (%p894) target = $region92
        $region91: #{hmm_forward_pallas.1} parent=83 // pred_region
          %v897 = vld [vmem:[#allocation2] sm:$0xff]
          %vm898 = vcmask 261120
          %v899 = vsel %vm898, %v897, -inf
          %900 = vmax.xlane.f32.xlu0 %v899
          %v901 = vpop.xlane.xlu0 %900
          %v902 = vsub.f32 %v897, %v901
          %v903 = vmul.f32 %v902, 1.442695
          %v904 = vpow.pop %v903
          %v905 = vld [vmem:[%s2] sm:$0xff]
          %v906 = vld [vmem:[%s2 + $0x8] sm:$0xff]
          %v907 = vld [vmem:[%s2 + $0x10] sm:$0xff]
          %v908 = vld [vmem:[%s2 + $0x18] sm:$0xff]
          %v910 = vsel %vm898, %v904, 0
          %912 = vmatprep.subr.mxu0 0.0
          %913 = vmatpush1.msra.mxu0 %v905
          %914 = vmatprep.subr.mxu0 0.0
          %915 = vmatpush1.msra.mxu0 %v906
          %916 = vmatprep.subr.mxu0 0.0
          %917 = vmatpush1.msra.mxu0 %v907
          %918 = vmatprep.subr.mxu0 0.0
          %919 = vmatpush1.msra.mxu0 %v908
          %920 = vmatprep.subr.mxu0 0.0
          %921 = vmatpush1.msra.mxu0 0.0
          %922 = vmatprep.subr.mxu0 0.0
          %923 = vmatpush1.msra.mxu0 0.0
          %924 = vmatprep.subr.mxu0 0.0
          %925 = vmatpush1.msra.mxu0 0.0
          %926 = vmatprep.subr.mxu0 0.0
          %927 = vmatpush1.msra.mxu0 0.0
          %928 = vmatprep.subr.mxu0 0.0
          %929 = vmatpush1.msra.mxu0 0.0
          %930 = vmatprep.subr.mxu0 0.0
          %931 = vmatpush1.msra.mxu0 0.0
          %932 = vmatprep.subr.mxu0 0.0
          %933 = vmatpush1.msra.mxu0 0.0
          %934 = vmatprep.subr.mxu0 0.0
          %935 = vmatpush1.msra.mxu0 0.0
          %936 = vmatprep.subr.mxu0 0.0
          %937 = vmatpush1.msra.mxu0 0.0
          %938 = vmatprep.subr.mxu0 0.0
          %939 = vmatpush1.msra.mxu0 0.0
          %940 = vmatprep.subr.mxu0 0.0
          %941 = vmatpush1.msra.mxu0 0.0
          %942 = vmatprep.subr.mxu0 0.0
          %943 = vmatpush1.msra.mxu0 0.0
          %944 = vmatprep.subr.mxu0 0.0
          %945 = vmatpush1.msra.mxu0 0.0
          %946 = vmatprep.subr.mxu0 0.0
          %947 = vmatpush1.msra.mxu0 0.0
          %948 = vmatprep.subr.mxu0 0.0
          %949 = vmatpush1.msra.mxu0 0.0
          %950 = vmatprep.subr.mxu0 0.0
          %951 = vmatpush1.msra.mxu0 0.0
          %952 = vmatprep.subr.mxu0 0.0
          %953 = vmatpush1.msra.mxu0 0.0
          %954 = vmatprep.subr.mxu0 0.0
          %955 = vmatpush1.msra.mxu0 0.0
          %956 = vmatprep.subr.mxu0 0.0
          %957 = vmatpush1.msra.mxu0 0.0
          %958 = vmatprep.subr.mxu0 0.0
          %959 = vmatpush1.msra.mxu0 0.0
          %960 = vmatprep.subr.mxu0 0.0
          %961 = vmatpush1.msra.mxu0 0.0
          %962 = vmatprep.subr.mxu0 0.0
          %963 = vmatpush1.msra.mxu0 0.0
          %964 = vmatprep.subr.mxu0 0.0
          %965 = vmatpush1.msra.mxu0 0.0
          %966 = vmatprep.subr.mxu0 0.0
          %967 = vmatpush1.msra.mxu0 0.0
          %968 = vmatprep.subr.mxu0 0.0
          %969 = vmatpush1.msra.mxu0 0.0
          %970 = vmatprep.subr.mxu0 0.0
          %971 = vmatpush1.msra.mxu0 0.0
          %972 = vmatprep.subr.mxu0 0.0
          %973 = vmatpush1.msra.mxu0 0.0
          %974 = vmatprep.subr.mxu0 0.0
          %975 = vmatpush1.msra.mxu0 0.0
          %976 = vmatprep.mubr.f32.mxu0 0.0
          %977 = vmatmul.mubr.f32.gmra.mrb[0].mxu0 %v910
          %v978 = vpop.f32.mrb[0].mxu0
          %v979 = vadd.f32 0.0, %v978
          %v980 = vpop.f32.mrb[0].mxu0
          %981 = vdwg.mxu0
          %v982 = vlog2.pop %v979
          %v983 = vmul.f32 %v982, 0.6931472
          %v984 = vadd.f32 %v983, %v901
          %v985 = vadd.f32 %v984, %v886
          %986 = vst.msk [vmem:[#allocation2] sm:$0xff] %vm898, %v985
        $region92: #{hmm_forward_pallas.1} parent=83 // pred_fallthru
          _
        %p987 = scmp.eq.s32.totalorder %s797, 19
        // Predicated region
        $region93: #{hmm_forward_pallas.1} parent=83 // pred_check
          %p988 = pneg %p987
        $region94: #{hmm_forward_pallas.1} parent=83 // pred_check_branch
          %990 = sbr.rel (%p988) target = $region96
        $region95: #{hmm_forward_pallas.1} parent=83 // pred_region
          %v991 = vld [vmem:[#allocation2] sm:$0xff]
          %vm992 = vcmask 261120
          %v993 = vsel %vm992, %v991, -inf
          %994 = vmax.xlane.f32.xlu0 %v993
          %v995 = vpop.xlane.xlu0 %994
          %v996 = vsub.f32 %v991, %v995
          %v997 = vmul.f32 %v996, 1.442695
          %v998 = vpow.pop %v997
          %v999 = vld [vmem:[%s3] sm:$0x1]
          %v1001 = vlaneseq
          %v1002 = vshrl.u32 %v1001, 7
          %v1003 = vsub.s32 0, %v1002
          %v1004 = vrot.slane %v999, %v1003
          %v1006 = vmul.f32 %v998, %v1004
          %v1007 = vsel %vm992, %v1006, 0.0
          %1008 = vadd.xlane.f32.xlu0 %v1007
          %v1009 = vpop.xlane.xlu0 %1008
          %v1010 = vlog2.pop %v1009
          %v1011 = vmul.f32 %v1010, 0.6931472
          %v1012 = vadd.f32 %v1011, %v995
          %vm1013 = vcmask 7168
          %1014 = vst.msk [vmem:[%s4] sm:$0xff] %vm1013, %v1012
        $region96: #{hmm_forward_pallas.1} parent=83 // pred_fallthru
          _
      $region84: #{hmm_forward_pallas.1} parent=31 // pred_fallthru
        _
      %s1015 = sadd.s32 %s143, 4
      %s1016 = ssub.s32 15, %s143
      %p1017 = scmp.lt.s32.totalorder %s1015, 20
      // Predicated region
      $region97: #{hmm_forward_pallas.1} parent=31 // pred_check
        %p1018 = pneg %p1017
      $region98: #{hmm_forward_pallas.1} parent=31 // pred_check_branch
        %1020 = sbr.rel (%p1018) target = $region100
      $region99: #{hmm_forward_pallas.1} parent=31 // pred_region
        %s1021 = sld [smem:[#allocation4 + %s1016]]
        %s1022 = scalar_lea.vmem %s1, %s1021
        %v1023 = vld [vmem:[%s1022] sm:$0x1]
        %s1024 = sshra.s32 %s1016, 7
        %s1025 = sand.u32 %s1016, 127
        %s1026 = sadd.s32 %s1024, 1
        %s1027 = smul.u32 %s1026, 128
        %s1028 = sshra.s32 %s1016, 7
        %s1029 = sand.u32 %s1016, 127
        %s1030 = sadd.s32 %s1027, %s1029
        %s1031 = sld [smem:[#allocation4 + %s1030]]
        %s1032 = scalar_lea.vmem %s1, %s1031
        %v1033 = vld [vmem:[%s1032] sm:$0x1]
        %s1034 = sadd.s32 %s1024, 2
        %s1035 = smul.u32 %s1034, 128
        %s1036 = sadd.s32 %s1035, %s1029
        %s1037 = sld [smem:[#allocation4 + %s1036]]
        %s1038 = scalar_lea.vmem %s1, %s1037
        %v1039 = vld [vmem:[%s1038] sm:$0x1]
        %s1040 = sadd.s32 %s1024, 3
        %s1041 = smul.u32 %s1040, 128
        %s1042 = sadd.s32 %s1041, %s1029
        %s1043 = sld [smem:[#allocation4 + %s1042]]
        %s1044 = scalar_lea.vmem %s1, %s1043
        %v1045 = vld [vmem:[%s1044] sm:$0x1]
        %s1046 = sadd.s32 %s1024, 4
        %s1047 = smul.u32 %s1046, 128
        %s1048 = sadd.s32 %s1047, %s1029
        %s1049 = sld [smem:[#allocation4 + %s1048]]
        %s1050 = scalar_lea.vmem %s1, %s1049
        %v1051 = vld [vmem:[%s1050] sm:$0x1]
        %s1052 = sadd.s32 %s1024, 5
        %s1053 = smul.u32 %s1052, 128
        %s1054 = sadd.s32 %s1053, %s1029
        %s1055 = sld [smem:[#allocation4 + %s1054]]
        %s1056 = scalar_lea.vmem %s1, %s1055
        %v1057 = vld [vmem:[%s1056] sm:$0x1]
        %s1058 = sadd.s32 %s1024, 6
        %s1059 = smul.u32 %s1058, 128
        %s1060 = sadd.s32 %s1059, %s1029
        %s1061 = sld [smem:[#allocation4 + %s1060]]
        %s1062 = scalar_lea.vmem %s1, %s1061
        %v1063 = vld [vmem:[%s1062] sm:$0x1]
        %s1064 = sadd.s32 %s1024, 7
        %s1065 = smul.u32 %s1064, 128
        %s1066 = sadd.s32 %s1065, %s1029
        %s1067 = sld [smem:[#allocation4 + %s1066]]
        %s1068 = scalar_lea.vmem %s1, %s1067
        %v1069 = vld [vmem:[%s1068] sm:$0x1]
        %v1071 = vrot.slane %v1033, 7
        %v1074 = vrot.slane %v1039, 6
        %v1077 = vrot.slane %v1045, 5
        %v1080 = vrot.slane %v1051, 4
        %v1083 = vrot.slane %v1057, 3
        %v1086 = vrot.slane %v1063, 2
        %v1089 = vrot.slane %v1069, 1
        %vm1091 = vcmask 1040384
        %v1092 = vsel %vm1091, %v1023, %v1071
        %vm1093 = vcmask 1041408
        %v1094 = vsel %vm1093, %v1092, %v1074
        %vm1095 = vcmask 1042432
        %v1096 = vsel %vm1095, %v1094, %v1077
        %vm1097 = vcmask 1043456
        %v1098 = vsel %vm1097, %v1096, %v1080
        %vm1099 = vcmask 1044480
        %v1100 = vsel %vm1099, %v1098, %v1083
        %vm1101 = vcmask 1045504
        %v1102 = vsel %vm1101, %v1100, %v1086
        %vm1103 = vcmask 1046528
        %v1104 = vsel %vm1103, %v1102, %v1089
        %p1105 = scmp.eq.s32.totalorder %s1015, 0
        // Predicated region
        $region101: #{hmm_forward_pallas.1} parent=99 // pred_check
          %p1106 = pneg %p1105
        $region102: #{hmm_forward_pallas.1} parent=99 // pred_check_branch
          %1108 = sbr.rel (%p1106) target = $region104
        $region103: #{hmm_forward_pallas.1} parent=99 // pred_region
          %vm1109 = vcmask 261120
          %1110 = vst.msk [vmem:[#allocation2] sm:$0xff] %vm1109, %v1104
        $region104: #{hmm_forward_pallas.1} parent=99 // pred_fallthru
          _
        %p1111 = scmp.ne.s32.totalorder %s1015, 0
        // Predicated region
        $region105: #{hmm_forward_pallas.1} parent=99 // pred_check
          %p1112 = pneg %p1111
        $region106: #{hmm_forward_pallas.1} parent=99 // pred_check_branch
          %1114 = sbr.rel (%p1112) target = $region108
        $region107: #{hmm_forward_pallas.1} parent=99 // pred_region
          %v1115 = vld [vmem:[#allocation2] sm:$0xff]
          %vm1116 = vcmask 261120
          %v1117 = vsel %vm1116, %v1115, -inf
          %1118 = vmax.xlane.f32.xlu0 %v1117
          %v1119 = vpop.xlane.xlu0 %1118
          %v1120 = vsub.f32 %v1115, %v1119
          %v1121 = vmul.f32 %v1120, 1.442695
          %v1122 = vpow.pop %v1121
          %v1123 = vld [vmem:[%s2] sm:$0xff]
          %v1124 = vld [vmem:[%s2 + $0x8] sm:$0xff]
          %v1125 = vld [vmem:[%s2 + $0x10] sm:$0xff]
          %v1126 = vld [vmem:[%s2 + $0x18] sm:$0xff]
          %v1128 = vsel %vm1116, %v1122, 0
          %1130 = vmatprep.subr.mxu0 0.0
          %1131 = vmatpush1.msra.mxu0 %v1123
          %1132 = vmatprep.subr.mxu0 0.0
          %1133 = vmatpush1.msra.mxu0 %v1124
          %1134 = vmatprep.subr.mxu0 0.0
          %1135 = vmatpush1.msra.mxu0 %v1125
          %1136 = vmatprep.subr.mxu0 0.0
          %1137 = vmatpush1.msra.mxu0 %v1126
          %1138 = vmatprep.subr.mxu0 0.0
          %1139 = vmatpush1.msra.mxu0 0.0
          %1140 = vmatprep.subr.mxu0 0.0
          %1141 = vmatpush1.msra.mxu0 0.0
          %1142 = vmatprep.subr.mxu0 0.0
          %1143 = vmatpush1.msra.mxu0 0.0
          %1144 = vmatprep.subr.mxu0 0.0
          %1145 = vmatpush1.msra.mxu0 0.0
          %1146 = vmatprep.subr.mxu0 0.0
          %1147 = vmatpush1.msra.mxu0 0.0
          %1148 = vmatprep.subr.mxu0 0.0
          %1149 = vmatpush1.msra.mxu0 0.0
          %1150 = vmatprep.subr.mxu0 0.0
          %1151 = vmatpush1.msra.mxu0 0.0
          %1152 = vmatprep.subr.mxu0 0.0
          %1153 = vmatpush1.msra.mxu0 0.0
          %1154 = vmatprep.subr.mxu0 0.0
          %1155 = vmatpush1.msra.mxu0 0.0
          %1156 = vmatprep.subr.mxu0 0.0
          %1157 = vmatpush1.msra.mxu0 0.0
          %1158 = vmatprep.subr.mxu0 0.0
          %1159 = vmatpush1.msra.mxu0 0.0
          %1160 = vmatprep.subr.mxu0 0.0
          %1161 = vmatpush1.msra.mxu0 0.0
          %1162 = vmatprep.subr.mxu0 0.0
          %1163 = vmatpush1.msra.mxu0 0.0
          %1164 = vmatprep.subr.mxu0 0.0
          %1165 = vmatpush1.msra.mxu0 0.0
          %1166 = vmatprep.subr.mxu0 0.0
          %1167 = vmatpush1.msra.mxu0 0.0
          %1168 = vmatprep.subr.mxu0 0.0
          %1169 = vmatpush1.msra.mxu0 0.0
          %1170 = vmatprep.subr.mxu0 0.0
          %1171 = vmatpush1.msra.mxu0 0.0
          %1172 = vmatprep.subr.mxu0 0.0
          %1173 = vmatpush1.msra.mxu0 0.0
          %1174 = vmatprep.subr.mxu0 0.0
          %1175 = vmatpush1.msra.mxu0 0.0
          %1176 = vmatprep.subr.mxu0 0.0
          %1177 = vmatpush1.msra.mxu0 0.0
          %1178 = vmatprep.subr.mxu0 0.0
          %1179 = vmatpush1.msra.mxu0 0.0
          %1180 = vmatprep.subr.mxu0 0.0
          %1181 = vmatpush1.msra.mxu0 0.0
          %1182 = vmatprep.subr.mxu0 0.0
          %1183 = vmatpush1.msra.mxu0 0.0
          %1184 = vmatprep.subr.mxu0 0.0
          %1185 = vmatpush1.msra.mxu0 0.0
          %1186 = vmatprep.subr.mxu0 0.0
          %1187 = vmatpush1.msra.mxu0 0.0
          %1188 = vmatprep.subr.mxu0 0.0
          %1189 = vmatpush1.msra.mxu0 0.0
          %1190 = vmatprep.subr.mxu0 0.0
          %1191 = vmatpush1.msra.mxu0 0.0
          %1192 = vmatprep.subr.mxu0 0.0
          %1193 = vmatpush1.msra.mxu0 0.0
          %1194 = vmatprep.mubr.f32.mxu0 0.0
          %1195 = vmatmul.mubr.f32.gmra.mrb[0].mxu0 %v1128
          %v1196 = vpop.f32.mrb[0].mxu0
          %v1197 = vadd.f32 0.0, %v1196
          %v1198 = vpop.f32.mrb[0].mxu0
          %1199 = vdwg.mxu0
          %v1200 = vlog2.pop %v1197
          %v1201 = vmul.f32 %v1200, 0.6931472
          %v1202 = vadd.f32 %v1201, %v1119
          %v1203 = vadd.f32 %v1202, %v1104
          %1204 = vst.msk [vmem:[#allocation2] sm:$0xff] %vm1116, %v1203
        $region108: #{hmm_forward_pallas.1} parent=99 // pred_fallthru
          _
        %p1205 = scmp.eq.s32.totalorder %s1015, 19
        // Predicated region
        $region109: #{hmm_forward_pallas.1} parent=99 // pred_check
          %p1206 = pneg %p1205
        $region110: #{hmm_forward_pallas.1} parent=99 // pred_check_branch
          %1208 = sbr.rel (%p1206) target = $region112
        $region111: #{hmm_forward_pallas.1} parent=99 // pred_region
          %v1209 = vld [vmem:[#allocation2] sm:$0xff]
          %vm1210 = vcmask 261120
          %v1211 = vsel %vm1210, %v1209, -inf
          %1212 = vmax.xlane.f32.xlu0 %v1211
          %v1213 = vpop.xlane.xlu0 %1212
          %v1214 = vsub.f32 %v1209, %v1213
          %v1215 = vmul.f32 %v1214, 1.442695
          %v1216 = vpow.pop %v1215
          %v1217 = vld [vmem:[%s3] sm:$0x1]
          %v1219 = vlaneseq
          %v1220 = vshrl.u32 %v1219, 7
          %v1221 = vsub.s32 0, %v1220
          %v1222 = vrot.slane %v1217, %v1221
          %v1224 = vmul.f32 %v1216, %v1222
          %v1225 = vsel %vm1210, %v1224, 0.0
          %1226 = vadd.xlane.f32.xlu0 %v1225
          %v1227 = vpop.xlane.xlu0 %1226
          %v1228 = vlog2.pop %v1227
          %v1229 = vmul.f32 %v1228, 0.6931472
          %v1230 = vadd.f32 %v1229, %v1213
          %vm1231 = vcmask 7168
          %1232 = vst.msk [vmem:[%s4] sm:$0xff] %vm1231, %v1230
        $region112: #{hmm_forward_pallas.1} parent=99 // pred_fallthru
          _
      $region100: #{hmm_forward_pallas.1} parent=31 // pred_fallthru
        _
      %s1233 = sadd.s32 %s143, 5
      %s1234 = ssub.s32 14, %s143
      %p1235 = scmp.lt.s32.totalorder %s1233, 20
      // Predicated region
      $region113: #{hmm_forward_pallas.1} parent=31 // pred_check
        %p1236 = pneg %p1235
      $region114: #{hmm_forward_pallas.1} parent=31 // pred_check_branch
        %1238 = sbr.rel (%p1236) target = $region116
      $region115: #{hmm_forward_pallas.1} parent=31 // pred_region
        %s1239 = sld [smem:[#allocation4 + %s1234]]
        %s1240 = scalar_lea.vmem %s1, %s1239
        %v1241 = vld [vmem:[%s1240] sm:$0x1]
        %s1242 = sshra.s32 %s1234, 7
        %s1243 = sand.u32 %s1234, 127
        %s1244 = sadd.s32 %s1242, 1
        %s1245 = smul.u32 %s1244, 128
        %s1246 = sshra.s32 %s1234, 7
        %s1247 = sand.u32 %s1234, 127
        %s1248 = sadd.s32 %s1245, %s1247
        %s1249 = sld [smem:[#allocation4 + %s1248]]
        %s1250 = scalar_lea.vmem %s1, %s1249
        %v1251 = vld [vmem:[%s1250] sm:$0x1]
        %s1252 = sadd.s32 %s1242, 2
        %s1253 = smul.u32 %s1252, 128
        %s1254 = sadd.s32 %s1253, %s1247
        %s1255 = sld [smem:[#allocation4 + %s1254]]
        %s1256 = scalar_lea.vmem %s1, %s1255
        %v1257 = vld [vmem:[%s1256] sm:$0x1]
        %s1258 = sadd.s32 %s1242, 3
        %s1259 = smul.u32 %s1258, 128
        %s1260 = sadd.s32 %s1259, %s1247
        %s1261 = sld [smem:[#allocation4 + %s1260]]
        %s1262 = scalar_lea.vmem %s1, %s1261
        %v1263 = vld [vmem:[%s1262] sm:$0x1]
        %s1264 = sadd.s32 %s1242, 4
        %s1265 = smul.u32 %s1264, 128
        %s1266 = sadd.s32 %s1265, %s1247
        %s1267 = sld [smem:[#allocation4 + %s1266]]
        %s1268 = scalar_lea.vmem %s1, %s1267
        %v1269 = vld [vmem:[%s1268] sm:$0x1]
        %s1270 = sadd.s32 %s1242, 5
        %s1271 = smul.u32 %s1270, 128
        %s1272 = sadd.s32 %s1271, %s1247
        %s1273 = sld [smem:[#allocation4 + %s1272]]
        %s1274 = scalar_lea.vmem %s1, %s1273
        %v1275 = vld [vmem:[%s1274] sm:$0x1]
        %s1276 = sadd.s32 %s1242, 6
        %s1277 = smul.u32 %s1276, 128
        %s1278 = sadd.s32 %s1277, %s1247
        %s1279 = sld [smem:[#allocation4 + %s1278]]
        %s1280 = scalar_lea.vmem %s1, %s1279
        %v1281 = vld [vmem:[%s1280] sm:$0x1]
        %s1282 = sadd.s32 %s1242, 7
        %s1283 = smul.u32 %s1282, 128
        %s1284 = sadd.s32 %s1283, %s1247
        %s1285 = sld [smem:[#allocation4 + %s1284]]
        %s1286 = scalar_lea.vmem %s1, %s1285
        %v1287 = vld [vmem:[%s1286] sm:$0x1]
        %v1289 = vrot.slane %v1251, 7
        %v1292 = vrot.slane %v1257, 6
        %v1295 = vrot.slane %v1263, 5
        %v1298 = vrot.slane %v1269, 4
        %v1301 = vrot.slane %v1275, 3
        %v1304 = vrot.slane %v1281, 2
        %v1307 = vrot.slane %v1287, 1
        %vm1309 = vcmask 1040384
        %v1310 = vsel %vm1309, %v1241, %v1289
        %vm1311 = vcmask 1041408
        %v1312 = vsel %vm1311, %v1310, %v1292
        %vm1313 = vcmask 1042432
        %v1314 = vsel %vm1313, %v1312, %v1295
        %vm1315 = vcmask 1043456
        %v1316 = vsel %vm1315, %v1314, %v1298
        %vm1317 = vcmask 1044480
        %v1318 = vsel %vm1317, %v1316, %v1301
        %vm1319 = vcmask 1045504
        %v1320 = vsel %vm1319, %v1318, %v1304
        %vm1321 = vcmask 1046528
        %v1322 = vsel %vm1321, %v1320, %v1307
        %p1323 = scmp.eq.s32.totalorder %s1233, 0
        // Predicated region
        $region117: #{hmm_forward_pallas.1} parent=115 // pred_check
          %p1324 = pneg %p1323
        $region118: #{hmm_forward_pallas.1} parent=115 // pred_check_branch
          %1326 = sbr.rel (%p1324) target = $region120
        $region119: #{hmm_forward_pallas.1} parent=115 // pred_region
          %vm1327 = vcmask 261120
          %1328 = vst.msk [vmem:[#allocation2] sm:$0xff] %vm1327, %v1322
        $region120: #{hmm_forward_pallas.1} parent=115 // pred_fallthru
          _
        %p1329 = scmp.ne.s32.totalorder %s1233, 0
        // Predicated region
        $region121: #{hmm_forward_pallas.1} parent=115 // pred_check
          %p1330 = pneg %p1329
        $region122: #{hmm_forward_pallas.1} parent=115 // pred_check_branch
          %1332 = sbr.rel (%p1330) target = $region124
        $region123: #{hmm_forward_pallas.1} parent=115 // pred_region
          %v1333 = vld [vmem:[#allocation2] sm:$0xff]
          %vm1334 = vcmask 261120
          %v1335 = vsel %vm1334, %v1333, -inf
          %1336 = vmax.xlane.f32.xlu0 %v1335
          %v1337 = vpop.xlane.xlu0 %1336
          %v1338 = vsub.f32 %v1333, %v1337
          %v1339 = vmul.f32 %v1338, 1.442695
          %v1340 = vpow.pop %v1339
          %v1341 = vld [vmem:[%s2] sm:$0xff]
          %v1342 = vld [vmem:[%s2 + $0x8] sm:$0xff]
          %v1343 = vld [vmem:[%s2 + $0x10] sm:$0xff]
          %v1344 = vld [vmem:[%s2 + $0x18] sm:$0xff]
          %v1346 = vsel %vm1334, %v1340, 0
          %1348 = vmatprep.subr.mxu0 0.0
          %1349 = vmatpush1.msra.mxu0 %v1341
          %1350 = vmatprep.subr.mxu0 0.0
          %1351 = vmatpush1.msra.mxu0 %v1342
          %1352 = vmatprep.subr.mxu0 0.0
          %1353 = vmatpush1.msra.mxu0 %v1343
          %1354 = vmatprep.subr.mxu0 0.0
          %1355 = vmatpush1.msra.mxu0 %v1344
          %1356 = vmatprep.subr.mxu0 0.0
          %1357 = vmatpush1.msra.mxu0 0.0
          %1358 = vmatprep.subr.mxu0 0.0
          %1359 = vmatpush1.msra.mxu0 0.0
          %1360 = vmatprep.subr.mxu0 0.0
          %1361 = vmatpush1.msra.mxu0 0.0
          %1362 = vmatprep.subr.mxu0 0.0
          %1363 = vmatpush1.msra.mxu0 0.0
          %1364 = vmatprep.subr.mxu0 0.0
          %1365 = vmatpush1.msra.mxu0 0.0
          %1366 = vmatprep.subr.mxu0 0.0
          %1367 = vmatpush1.msra.mxu0 0.0
          %1368 = vmatprep.subr.mxu0 0.0
          %1369 = vmatpush1.msra.mxu0 0.0
          %1370 = vmatprep.subr.mxu0 0.0
          %1371 = vmatpush1.msra.mxu0 0.0
          %1372 = vmatprep.subr.mxu0 0.0
          %1373 = vmatpush1.msra.mxu0 0.0
          %1374 = vmatprep.subr.mxu0 0.0
          %1375 = vmatpush1.msra.mxu0 0.0
          %1376 = vmatprep.subr.mxu0 0.0
          %1377 = vmatpush1.msra.mxu0 0.0
          %1378 = vmatprep.subr.mxu0 0.0
          %1379 = vmatpush1.msra.mxu0 0.0
          %1380 = vmatprep.subr.mxu0 0.0
          %1381 = vmatpush1.msra.mxu0 0.0
          %1382 = vmatprep.subr.mxu0 0.0
          %1383 = vmatpush1.msra.mxu0 0.0
          %1384 = vmatprep.subr.mxu0 0.0
          %1385 = vmatpush1.msra.mxu0 0.0
          %1386 = vmatprep.subr.mxu0 0.0
          %1387 = vmatpush1.msra.mxu0 0.0
          %1388 = vmatprep.subr.mxu0 0.0
          %1389 = vmatpush1.msra.mxu0 0.0
          %1390 = vmatprep.subr.mxu0 0.0
          %1391 = vmatpush1.msra.mxu0 0.0
          %1392 = vmatprep.subr.mxu0 0.0
          %1393 = vmatpush1.msra.mxu0 0.0
          %1394 = vmatprep.subr.mxu0 0.0
          %1395 = vmatpush1.msra.mxu0 0.0
          %1396 = vmatprep.subr.mxu0 0.0
          %1397 = vmatpush1.msra.mxu0 0.0
          %1398 = vmatprep.subr.mxu0 0.0
          %1399 = vmatpush1.msra.mxu0 0.0
          %1400 = vmatprep.subr.mxu0 0.0
          %1401 = vmatpush1.msra.mxu0 0.0
          %1402 = vmatprep.subr.mxu0 0.0
          %1403 = vmatpush1.msra.mxu0 0.0
          %1404 = vmatprep.subr.mxu0 0.0
          %1405 = vmatpush1.msra.mxu0 0.0
          %1406 = vmatprep.subr.mxu0 0.0
          %1407 = vmatpush1.msra.mxu0 0.0
          %1408 = vmatprep.subr.mxu0 0.0
          %1409 = vmatpush1.msra.mxu0 0.0
          %1410 = vmatprep.subr.mxu0 0.0
          %1411 = vmatpush1.msra.mxu0 0.0
          %1412 = vmatprep.mubr.f32.mxu0 0.0
          %1413 = vmatmul.mubr.f32.gmra.mrb[0].mxu0 %v1346
          %v1414 = vpop.f32.mrb[0].mxu0
          %v1415 = vadd.f32 0.0, %v1414
          %v1416 = vpop.f32.mrb[0].mxu0
          %1417 = vdwg.mxu0
          %v1418 = vlog2.pop %v1415
          %v1419 = vmul.f32 %v1418, 0.6931472
          %v1420 = vadd.f32 %v1419, %v1337
          %v1421 = vadd.f32 %v1420, %v1322
          %1422 = vst.msk [vmem:[#allocation2] sm:$0xff] %vm1334, %v1421
        $region124: #{hmm_forward_pallas.1} parent=115 // pred_fallthru
          _
        %p1423 = scmp.eq.s32.totalorder %s1233, 19
        // Predicated region
        $region125: #{hmm_forward_pallas.1} parent=115 // pred_check
          %p1424 = pneg %p1423
        $region126: #{hmm_forward_pallas.1} parent=115 // pred_check_branch
          %1426 = sbr.rel (%p1424) target = $region128
        $region127: #{hmm_forward_pallas.1} parent=115 // pred_region
          %v1427 = vld [vmem:[#allocation2] sm:$0xff]
          %vm1428 = vcmask 261120
          %v1429 = vsel %vm1428, %v1427, -inf
          %1430 = vmax.xlane.f32.xlu0 %v1429
          %v1431 = vpop.xlane.xlu0 %1430
          %v1432 = vsub.f32 %v1427, %v1431
          %v1433 = vmul.f32 %v1432, 1.442695
          %v1434 = vpow.pop %v1433
          %v1435 = vld [vmem:[%s3] sm:$0x1]
          %v1437 = vlaneseq
          %v1438 = vshrl.u32 %v1437, 7
          %v1439 = vsub.s32 0, %v1438
          %v1440 = vrot.slane %v1435, %v1439
          %v1442 = vmul.f32 %v1434, %v1440
          %v1443 = vsel %vm1428, %v1442, 0.0
          %1444 = vadd.xlane.f32.xlu0 %v1443
          %v1445 = vpop.xlane.xlu0 %1444
          %v1446 = vlog2.pop %v1445
          %v1447 = vmul.f32 %v1446, 0.6931472
          %v1448 = vadd.f32 %v1447, %v1431
          %vm1449 = vcmask 7168
          %1450 = vst.msk [vmem:[%s4] sm:$0xff] %vm1449, %v1448
        $region128: #{hmm_forward_pallas.1} parent=115 // pred_fallthru
          _
      $region116: #{hmm_forward_pallas.1} parent=31 // pred_fallthru
        _
      %s1451 = sadd.s32 %s143, 6
      %s1452 = ssub.s32 13, %s143
      %p1453 = scmp.lt.s32.totalorder %s1451, 20
      // Predicated region
      $region129: #{hmm_forward_pallas.1} parent=31 // pred_check
        %p1454 = pneg %p1453
      $region130: #{hmm_forward_pallas.1} parent=31 // pred_check_branch
        %1456 = sbr.rel (%p1454) target = $region132
      $region131: #{hmm_forward_pallas.1} parent=31 // pred_region
        %s1457 = sld [smem:[#allocation4 + %s1452]]
        %s1458 = scalar_lea.vmem %s1, %s1457
        %v1459 = vld [vmem:[%s1458] sm:$0x1]
        %s1460 = sshra.s32 %s1452, 7
        %s1461 = sand.u32 %s1452, 127
        %s1462 = sadd.s32 %s1460, 1
        %s1463 = smul.u32 %s1462, 128
        %s1464 = sshra.s32 %s1452, 7
        %s1465 = sand.u32 %s1452, 127
        %s1466 = sadd.s32 %s1463, %s1465
        %s1467 = sld [smem:[#allocation4 + %s1466]]
        %s1468 = scalar_lea.vmem %s1, %s1467
        %v1469 = vld [vmem:[%s1468] sm:$0x1]
        %s1470 = sadd.s32 %s1460, 2
        %s1471 = smul.u32 %s1470, 128
        %s1472 = sadd.s32 %s1471, %s1465
        %s1473 = sld [smem:[#allocation4 + %s1472]]
        %s1474 = scalar_lea.vmem %s1, %s1473
        %v1475 = vld [vmem:[%s1474] sm:$0x1]
        %s1476 = sadd.s32 %s1460, 3
        %s1477 = smul.u32 %s1476, 128
        %s1478 = sadd.s32 %s1477, %s1465
        %s1479 = sld [smem:[#allocation4 + %s1478]]
        %s1480 = scalar_lea.vmem %s1, %s1479
        %v1481 = vld [vmem:[%s1480] sm:$0x1]
        %s1482 = sadd.s32 %s1460, 4
        %s1483 = smul.u32 %s1482, 128
        %s1484 = sadd.s32 %s1483, %s1465
        %s1485 = sld [smem:[#allocation4 + %s1484]]
        %s1486 = scalar_lea.vmem %s1, %s1485
        %v1487 = vld [vmem:[%s1486] sm:$0x1]
        %s1488 = sadd.s32 %s1460, 5
        %s1489 = smul.u32 %s1488, 128
        %s1490 = sadd.s32 %s1489, %s1465
        %s1491 = sld [smem:[#allocation4 + %s1490]]
        %s1492 = scalar_lea.vmem %s1, %s1491
        %v1493 = vld [vmem:[%s1492] sm:$0x1]
        %s1494 = sadd.s32 %s1460, 6
        %s1495 = smul.u32 %s1494, 128
        %s1496 = sadd.s32 %s1495, %s1465
        %s1497 = sld [smem:[#allocation4 + %s1496]]
        %s1498 = scalar_lea.vmem %s1, %s1497
        %v1499 = vld [vmem:[%s1498] sm:$0x1]
        %s1500 = sadd.s32 %s1460, 7
        %s1501 = smul.u32 %s1500, 128
        %s1502 = sadd.s32 %s1501, %s1465
        %s1503 = sld [smem:[#allocation4 + %s1502]]
        %s1504 = scalar_lea.vmem %s1, %s1503
        %v1505 = vld [vmem:[%s1504] sm:$0x1]
        %v1507 = vrot.slane %v1469, 7
        %v1510 = vrot.slane %v1475, 6
        %v1513 = vrot.slane %v1481, 5
        %v1516 = vrot.slane %v1487, 4
        %v1519 = vrot.slane %v1493, 3
        %v1522 = vrot.slane %v1499, 2
        %v1525 = vrot.slane %v1505, 1
        %vm1527 = vcmask 1040384
        %v1528 = vsel %vm1527, %v1459, %v1507
        %vm1529 = vcmask 1041408
        %v1530 = vsel %vm1529, %v1528, %v1510
        %vm1531 = vcmask 1042432
        %v1532 = vsel %vm1531, %v1530, %v1513
        %vm1533 = vcmask 1043456
        %v1534 = vsel %vm1533, %v1532, %v1516
        %vm1535 = vcmask 1044480
        %v1536 = vsel %vm1535, %v1534, %v1519
        %vm1537 = vcmask 1045504
        %v1538 = vsel %vm1537, %v1536, %v1522
        %vm1539 = vcmask 1046528
        %v1540 = vsel %vm1539, %v1538, %v1525
        %p1541 = scmp.eq.s32.totalorder %s1451, 0
        // Predicated region
        $region133: #{hmm_forward_pallas.1} parent=131 // pred_check
          %p1542 = pneg %p1541
        $region134: #{hmm_forward_pallas.1} parent=131 // pred_check_branch
          %1544 = sbr.rel (%p1542) target = $region136
        $region135: #{hmm_forward_pallas.1} parent=131 // pred_region
          %vm1545 = vcmask 261120
          %1546 = vst.msk [vmem:[#allocation2] sm:$0xff] %vm1545, %v1540
        $region136: #{hmm_forward_pallas.1} parent=131 // pred_fallthru
          _
        %p1547 = scmp.ne.s32.totalorder %s1451, 0
        // Predicated region
        $region137: #{hmm_forward_pallas.1} parent=131 // pred_check
          %p1548 = pneg %p1547
        $region138: #{hmm_forward_pallas.1} parent=131 // pred_check_branch
          %1550 = sbr.rel (%p1548) target = $region140
        $region139: #{hmm_forward_pallas.1} parent=131 // pred_region
          %v1551 = vld [vmem:[#allocation2] sm:$0xff]
          %vm1552 = vcmask 261120
          %v1553 = vsel %vm1552, %v1551, -inf
          %1554 = vmax.xlane.f32.xlu0 %v1553
          %v1555 = vpop.xlane.xlu0 %1554
          %v1556 = vsub.f32 %v1551, %v1555
          %v1557 = vmul.f32 %v1556, 1.442695
          %v1558 = vpow.pop %v1557
          %v1559 = vld [vmem:[%s2] sm:$0xff]
          %v1560 = vld [vmem:[%s2 + $0x8] sm:$0xff]
          %v1561 = vld [vmem:[%s2 + $0x10] sm:$0xff]
          %v1562 = vld [vmem:[%s2 + $0x18] sm:$0xff]
          %v1564 = vsel %vm1552, %v1558, 0
          %1566 = vmatprep.subr.mxu0 0.0
          %1567 = vmatpush1.msra.mxu0 %v1559
          %1568 = vmatprep.subr.mxu0 0.0
          %1569 = vmatpush1.msra.mxu0 %v1560
          %1570 = vmatprep.subr.mxu0 0.0
          %1571 = vmatpush1.msra.mxu0 %v1561
          %1572 = vmatprep.subr.mxu0 0.0
          %1573 = vmatpush1.msra.mxu0 %v1562
          %1574 = vmatprep.subr.mxu0 0.0
          %1575 = vmatpush1.msra.mxu0 0.0
          %1576 = vmatprep.subr.mxu0 0.0
          %1577 = vmatpush1.msra.mxu0 0.0
          %1578 = vmatprep.subr.mxu0 0.0
          %1579 = vmatpush1.msra.mxu0 0.0
          %1580 = vmatprep.subr.mxu0 0.0
          %1581 = vmatpush1.msra.mxu0 0.0
          %1582 = vmatprep.subr.mxu0 0.0
          %1583 = vmatpush1.msra.mxu0 0.0
          %1584 = vmatprep.subr.mxu0 0.0
          %1585 = vmatpush1.msra.mxu0 0.0
          %1586 = vmatprep.subr.mxu0 0.0
          %1587 = vmatpush1.msra.mxu0 0.0
          %1588 = vmatprep.subr.mxu0 0.0
          %1589 = vmatpush1.msra.mxu0 0.0
          %1590 = vmatprep.subr.mxu0 0.0
          %1591 = vmatpush1.msra.mxu0 0.0
          %1592 = vmatprep.subr.mxu0 0.0
          %1593 = vmatpush1.msra.mxu0 0.0
          %1594 = vmatprep.subr.mxu0 0.0
          %1595 = vmatpush1.msra.mxu0 0.0
          %1596 = vmatprep.subr.mxu0 0.0
          %1597 = vmatpush1.msra.mxu0 0.0
          %1598 = vmatprep.subr.mxu0 0.0
          %1599 = vmatpush1.msra.mxu0 0.0
          %1600 = vmatprep.subr.mxu0 0.0
          %1601 = vmatpush1.msra.mxu0 0.0
          %1602 = vmatprep.subr.mxu0 0.0
          %1603 = vmatpush1.msra.mxu0 0.0
          %1604 = vmatprep.subr.mxu0 0.0
          %1605 = vmatpush1.msra.mxu0 0.0
          %1606 = vmatprep.subr.mxu0 0.0
          %1607 = vmatpush1.msra.mxu0 0.0
          %1608 = vmatprep.subr.mxu0 0.0
          %1609 = vmatpush1.msra.mxu0 0.0
          %1610 = vmatprep.subr.mxu0 0.0
          %1611 = vmatpush1.msra.mxu0 0.0
          %1612 = vmatprep.subr.mxu0 0.0
          %1613 = vmatpush1.msra.mxu0 0.0
          %1614 = vmatprep.subr.mxu0 0.0
          %1615 = vmatpush1.msra.mxu0 0.0
          %1616 = vmatprep.subr.mxu0 0.0
          %1617 = vmatpush1.msra.mxu0 0.0
          %1618 = vmatprep.subr.mxu0 0.0
          %1619 = vmatpush1.msra.mxu0 0.0
          %1620 = vmatprep.subr.mxu0 0.0
          %1621 = vmatpush1.msra.mxu0 0.0
          %1622 = vmatprep.subr.mxu0 0.0
          %1623 = vmatpush1.msra.mxu0 0.0
          %1624 = vmatprep.subr.mxu0 0.0
          %1625 = vmatpush1.msra.mxu0 0.0
          %1626 = vmatprep.subr.mxu0 0.0
          %1627 = vmatpush1.msra.mxu0 0.0
          %1628 = vmatprep.subr.mxu0 0.0
          %1629 = vmatpush1.msra.mxu0 0.0
          %1630 = vmatprep.mubr.f32.mxu0 0.0
          %1631 = vmatmul.mubr.f32.gmra.mrb[0].mxu0 %v1564
          %v1632 = vpop.f32.mrb[0].mxu0
          %v1633 = vadd.f32 0.0, %v1632
          %v1634 = vpop.f32.mrb[0].mxu0
          %1635 = vdwg.mxu0
          %v1636 = vlog2.pop %v1633
          %v1637 = vmul.f32 %v1636, 0.6931472
          %v1638 = vadd.f32 %v1637, %v1555
          %v1639 = vadd.f32 %v1638, %v1540
          %1640 = vst.msk [vmem:[#allocation2] sm:$0xff] %vm1552, %v1639
        $region140: #{hmm_forward_pallas.1} parent=131 // pred_fallthru
          _
        %p1641 = scmp.eq.s32.totalorder %s1451, 19
        // Predicated region
        $region141: #{hmm_forward_pallas.1} parent=131 // pred_check
          %p1642 = pneg %p1641
        $region142: #{hmm_forward_pallas.1} parent=131 // pred_check_branch
          %1644 = sbr.rel (%p1642) target = $region144
        $region143: #{hmm_forward_pallas.1} parent=131 // pred_region
          %v1645 = vld [vmem:[#allocation2] sm:$0xff]
          %vm1646 = vcmask 261120
          %v1647 = vsel %vm1646, %v1645, -inf
          %1648 = vmax.xlane.f32.xlu0 %v1647
          %v1649 = vpop.xlane.xlu0 %1648
          %v1650 = vsub.f32 %v1645, %v1649
          %v1651 = vmul.f32 %v1650, 1.442695
          %v1652 = vpow.pop %v1651
          %v1653 = vld [vmem:[%s3] sm:$0x1]
          %v1655 = vlaneseq
          %v1656 = vshrl.u32 %v1655, 7
          %v1657 = vsub.s32 0, %v1656
          %v1658 = vrot.slane %v1653, %v1657
          %v1660 = vmul.f32 %v1652, %v1658
          %v1661 = vsel %vm1646, %v1660, 0.0
          %1662 = vadd.xlane.f32.xlu0 %v1661
          %v1663 = vpop.xlane.xlu0 %1662
          %v1664 = vlog2.pop %v1663
          %v1665 = vmul.f32 %v1664, 0.6931472
          %v1666 = vadd.f32 %v1665, %v1649
          %vm1667 = vcmask 7168
          %1668 = vst.msk [vmem:[%s4] sm:$0xff] %vm1667, %v1666
        $region144: #{hmm_forward_pallas.1} parent=131 // pred_fallthru
          _
      $region132: #{hmm_forward_pallas.1} parent=31 // pred_fallthru
        _
      %s1669 = sadd.s32 %s143, 7
      %s1670 = ssub.s32 12, %s143
      %p1671 = scmp.lt.s32.totalorder %s1669, 20
      // Predicated region
      $region145: #{hmm_forward_pallas.1} parent=31 // pred_check
        %p1672 = pneg %p1671
      $region146: #{hmm_forward_pallas.1} parent=31 // pred_check_branch
        %1674 = sbr.rel (%p1672) target = $region148
      $region147: #{hmm_forward_pallas.1} parent=31 // pred_region
        %s1675 = sld [smem:[#allocation4 + %s1670]]
        %s1676 = scalar_lea.vmem %s1, %s1675
        %v1677 = vld [vmem:[%s1676] sm:$0x1]
        %s1678 = sshra.s32 %s1670, 7
        %s1679 = sand.u32 %s1670, 127
        %s1680 = sadd.s32 %s1678, 1
        %s1681 = smul.u32 %s1680, 128
        %s1682 = sshra.s32 %s1670, 7
        %s1683 = sand.u32 %s1670, 127
        %s1684 = sadd.s32 %s1681, %s1683
        %s1685 = sld [smem:[#allocation4 + %s1684]]
        %s1686 = scalar_lea.vmem %s1, %s1685
        %v1687 = vld [vmem:[%s1686] sm:$0x1]
        %s1688 = sadd.s32 %s1678, 2
        %s1689 = smul.u32 %s1688, 128
        %s1690 = sadd.s32 %s1689, %s1683
        %s1691 = sld [smem:[#allocation4 + %s1690]]
        %s1692 = scalar_lea.vmem %s1, %s1691
        %v1693 = vld [vmem:[%s1692] sm:$0x1]
        %s1694 = sadd.s32 %s1678, 3
        %s1695 = smul.u32 %s1694, 128
        %s1696 = sadd.s32 %s1695, %s1683
        %s1697 = sld [smem:[#allocation4 + %s1696]]
        %s1698 = scalar_lea.vmem %s1, %s1697
        %v1699 = vld [vmem:[%s1698] sm:$0x1]
        %s1700 = sadd.s32 %s1678, 4
        %s1701 = smul.u32 %s1700, 128
        %s1702 = sadd.s32 %s1701, %s1683
        %s1703 = sld [smem:[#allocation4 + %s1702]]
        %s1704 = scalar_lea.vmem %s1, %s1703
        %v1705 = vld [vmem:[%s1704] sm:$0x1]
        %s1706 = sadd.s32 %s1678, 5
        %s1707 = smul.u32 %s1706, 128
        %s1708 = sadd.s32 %s1707, %s1683
        %s1709 = sld [smem:[#allocation4 + %s1708]]
        %s1710 = scalar_lea.vmem %s1, %s1709
        %v1711 = vld [vmem:[%s1710] sm:$0x1]
        %s1712 = sadd.s32 %s1678, 6
        %s1713 = smul.u32 %s1712, 128
        %s1714 = sadd.s32 %s1713, %s1683
        %s1715 = sld [smem:[#allocation4 + %s1714]]
        %s1716 = scalar_lea.vmem %s1, %s1715
        %v1717 = vld [vmem:[%s1716] sm:$0x1]
        %s1718 = sadd.s32 %s1678, 7
        %s1719 = smul.u32 %s1718, 128
        %s1720 = sadd.s32 %s1719, %s1683
        %s1721 = sld [smem:[#allocation4 + %s1720]]
        %s1722 = scalar_lea.vmem %s1, %s1721
        %v1723 = vld [vmem:[%s1722] sm:$0x1]
        %v1725 = vrot.slane %v1687, 7
        %v1728 = vrot.slane %v1693, 6
        %v1731 = vrot.slane %v1699, 5
        %v1734 = vrot.slane %v1705, 4
        %v1737 = vrot.slane %v1711, 3
        %v1740 = vrot.slane %v1717, 2
        %v1743 = vrot.slane %v1723, 1
        %vm1745 = vcmask 1040384
        %v1746 = vsel %vm1745, %v1677, %v1725
        %vm1747 = vcmask 1041408
        %v1748 = vsel %vm1747, %v1746, %v1728
        %vm1749 = vcmask 1042432
        %v1750 = vsel %vm1749, %v1748, %v1731
        %vm1751 = vcmask 1043456
        %v1752 = vsel %vm1751, %v1750, %v1734
        %vm1753 = vcmask 1044480
        %v1754 = vsel %vm1753, %v1752, %v1737
        %vm1755 = vcmask 1045504
        %v1756 = vsel %vm1755, %v1754, %v1740
        %vm1757 = vcmask 1046528
        %v1758 = vsel %vm1757, %v1756, %v1743
        %p1759 = scmp.eq.s32.totalorder %s1669, 0
        // Predicated region
        $region149: #{hmm_forward_pallas.1} parent=147 // pred_check
          %p1760 = pneg %p1759
        $region150: #{hmm_forward_pallas.1} parent=147 // pred_check_branch
          %1762 = sbr.rel (%p1760) target = $region152
        $region151: #{hmm_forward_pallas.1} parent=147 // pred_region
          %vm1763 = vcmask 261120
          %1764 = vst.msk [vmem:[#allocation2] sm:$0xff] %vm1763, %v1758
        $region152: #{hmm_forward_pallas.1} parent=147 // pred_fallthru
          _
        %p1765 = scmp.ne.s32.totalorder %s1669, 0
        // Predicated region
        $region153: #{hmm_forward_pallas.1} parent=147 // pred_check
          %p1766 = pneg %p1765
        $region154: #{hmm_forward_pallas.1} parent=147 // pred_check_branch
          %1768 = sbr.rel (%p1766) target = $region156
        $region155: #{hmm_forward_pallas.1} parent=147 // pred_region
          %v1769 = vld [vmem:[#allocation2] sm:$0xff]
          %vm1770 = vcmask 261120
          %v1771 = vsel %vm1770, %v1769, -inf
          %1772 = vmax.xlane.f32.xlu0 %v1771
          %v1773 = vpop.xlane.xlu0 %1772
          %v1774 = vsub.f32 %v1769, %v1773
          %v1775 = vmul.f32 %v1774, 1.442695
          %v1776 = vpow.pop %v1775
          %v1777 = vld [vmem:[%s2] sm:$0xff]
          %v1778 = vld [vmem:[%s2 + $0x8] sm:$0xff]
          %v1779 = vld [vmem:[%s2 + $0x10] sm:$0xff]
          %v1780 = vld [vmem:[%s2 + $0x18] sm:$0xff]
          %v1782 = vsel %vm1770, %v1776, 0
          %1784 = vmatprep.subr.mxu0 0.0
          %1785 = vmatpush1.msra.mxu0 %v1777
          %1786 = vmatprep.subr.mxu0 0.0
          %1787 = vmatpush1.msra.mxu0 %v1778
          %1788 = vmatprep.subr.mxu0 0.0
          %1789 = vmatpush1.msra.mxu0 %v1779
          %1790 = vmatprep.subr.mxu0 0.0
          %1791 = vmatpush1.msra.mxu0 %v1780
          %1792 = vmatprep.subr.mxu0 0.0
          %1793 = vmatpush1.msra.mxu0 0.0
          %1794 = vmatprep.subr.mxu0 0.0
          %1795 = vmatpush1.msra.mxu0 0.0
          %1796 = vmatprep.subr.mxu0 0.0
          %1797 = vmatpush1.msra.mxu0 0.0
          %1798 = vmatprep.subr.mxu0 0.0
          %1799 = vmatpush1.msra.mxu0 0.0
          %1800 = vmatprep.subr.mxu0 0.0
          %1801 = vmatpush1.msra.mxu0 0.0
          %1802 = vmatprep.subr.mxu0 0.0
          %1803 = vmatpush1.msra.mxu0 0.0
          %1804 = vmatprep.subr.mxu0 0.0
          %1805 = vmatpush1.msra.mxu0 0.0
          %1806 = vmatprep.subr.mxu0 0.0
          %1807 = vmatpush1.msra.mxu0 0.0
          %1808 = vmatprep.subr.mxu0 0.0
          %1809 = vmatpush1.msra.mxu0 0.0
          %1810 = vmatprep.subr.mxu0 0.0
          %1811 = vmatpush1.msra.mxu0 0.0
          %1812 = vmatprep.subr.mxu0 0.0
          %1813 = vmatpush1.msra.mxu0 0.0
          %1814 = vmatprep.subr.mxu0 0.0
          %1815 = vmatpush1.msra.mxu0 0.0
          %1816 = vmatprep.subr.mxu0 0.0
          %1817 = vmatpush1.msra.mxu0 0.0
          %1818 = vmatprep.subr.mxu0 0.0
          %1819 = vmatpush1.msra.mxu0 0.0
          %1820 = vmatprep.subr.mxu0 0.0
          %1821 = vmatpush1.msra.mxu0 0.0
          %1822 = vmatprep.subr.mxu0 0.0
          %1823 = vmatpush1.msra.mxu0 0.0
          %1824 = vmatprep.subr.mxu0 0.0
          %1825 = vmatpush1.msra.mxu0 0.0
          %1826 = vmatprep.subr.mxu0 0.0
          %1827 = vmatpush1.msra.mxu0 0.0
          %1828 = vmatprep.subr.mxu0 0.0
          %1829 = vmatpush1.msra.mxu0 0.0
          %1830 = vmatprep.subr.mxu0 0.0
          %1831 = vmatpush1.msra.mxu0 0.0
          %1832 = vmatprep.subr.mxu0 0.0
          %1833 = vmatpush1.msra.mxu0 0.0
          %1834 = vmatprep.subr.mxu0 0.0
          %1835 = vmatpush1.msra.mxu0 0.0
          %1836 = vmatprep.subr.mxu0 0.0
          %1837 = vmatpush1.msra.mxu0 0.0
          %1838 = vmatprep.subr.mxu0 0.0
          %1839 = vmatpush1.msra.mxu0 0.0
          %1840 = vmatprep.subr.mxu0 0.0
          %1841 = vmatpush1.msra.mxu0 0.0
          %1842 = vmatprep.subr.mxu0 0.0
          %1843 = vmatpush1.msra.mxu0 0.0
          %1844 = vmatprep.subr.mxu0 0.0
          %1845 = vmatpush1.msra.mxu0 0.0
          %1846 = vmatprep.subr.mxu0 0.0
          %1847 = vmatpush1.msra.mxu0 0.0
          %1848 = vmatprep.mubr.f32.mxu0 0.0
          %1849 = vmatmul.mubr.f32.gmra.mrb[0].mxu0 %v1782
          %v1850 = vpop.f32.mrb[0].mxu0
          %v1851 = vadd.f32 0.0, %v1850
          %v1852 = vpop.f32.mrb[0].mxu0
          %1853 = vdwg.mxu0
          %v1854 = vlog2.pop %v1851
          %v1855 = vmul.f32 %v1854, 0.6931472
          %v1856 = vadd.f32 %v1855, %v1773
          %v1857 = vadd.f32 %v1856, %v1758
          %1858 = vst.msk [vmem:[#allocation2] sm:$0xff] %vm1770, %v1857
        $region156: #{hmm_forward_pallas.1} parent=147 // pred_fallthru
          _
        %p1859 = scmp.eq.s32.totalorder %s1669, 19
        // Predicated region
        $region157: #{hmm_forward_pallas.1} parent=147 // pred_check
          %p1860 = pneg %p1859
        $region158: #{hmm_forward_pallas.1} parent=147 // pred_check_branch
          %1862 = sbr.rel (%p1860) target = $region160
        $region159: #{hmm_forward_pallas.1} parent=147 // pred_region
          %v1863 = vld [vmem:[#allocation2] sm:$0xff]
          %vm1864 = vcmask 261120
          %v1865 = vsel %vm1864, %v1863, -inf
          %1866 = vmax.xlane.f32.xlu0 %v1865
          %v1867 = vpop.xlane.xlu0 %1866
          %v1868 = vsub.f32 %v1863, %v1867
          %v1869 = vmul.f32 %v1868, 1.442695
          %v1870 = vpow.pop %v1869
          %v1871 = vld [vmem:[%s3] sm:$0x1]
          %v1873 = vlaneseq
          %v1874 = vshrl.u32 %v1873, 7
          %v1875 = vsub.s32 0, %v1874
          %v1876 = vrot.slane %v1871, %v1875
          %v1878 = vmul.f32 %v1870, %v1876
          %v1879 = vsel %vm1864, %v1878, 0.0
          %1880 = vadd.xlane.f32.xlu0 %v1879
          %v1881 = vpop.xlane.xlu0 %1880
          %v1882 = vlog2.pop %v1881
          %v1883 = vmul.f32 %v1882, 0.6931472
          %v1884 = vadd.f32 %v1883, %v1867
          %vm1885 = vcmask 7168
          %1886 = vst.msk [vmem:[%s4] sm:$0xff] %vm1885, %v1884
        $region160: #{hmm_forward_pallas.1} parent=147 // pred_fallthru
          _
      $region148: #{hmm_forward_pallas.1} parent=31 // pred_fallthru
        _
      %s1887 = sadd.s32 %s143, 8
      %s1888 = ssub.s32 11, %s143
      %p1889 = scmp.lt.s32.totalorder %s1887, 20
      // Predicated region
      $region161: #{hmm_forward_pallas.1} parent=31 // pred_check
        %p1890 = pneg %p1889
      $region162: #{hmm_forward_pallas.1} parent=31 // pred_check_branch
        %1892 = sbr.rel (%p1890) target = $region164
      $region163: #{hmm_forward_pallas.1} parent=31 // pred_region
        %s1893 = sld [smem:[#allocation4 + %s1888]]
        %s1894 = scalar_lea.vmem %s1, %s1893
        %v1895 = vld [vmem:[%s1894] sm:$0x1]
        %s1896 = sshra.s32 %s1888, 7
        %s1897 = sand.u32 %s1888, 127
        %s1898 = sadd.s32 %s1896, 1
        %s1899 = smul.u32 %s1898, 128
        %s1900 = sshra.s32 %s1888, 7
        %s1901 = sand.u32 %s1888, 127
        %s1902 = sadd.s32 %s1899, %s1901
        %s1903 = sld [smem:[#allocation4 + %s1902]]
        %s1904 = scalar_lea.vmem %s1, %s1903
        %v1905 = vld [vmem:[%s1904] sm:$0x1]
        %s1906 = sadd.s32 %s1896, 2
        %s1907 = smul.u32 %s1906, 128
        %s1908 = sadd.s32 %s1907, %s1901
        %s1909 = sld [smem:[#allocation4 + %s1908]]
        %s1910 = scalar_lea.vmem %s1, %s1909
        %v1911 = vld [vmem:[%s1910] sm:$0x1]
        %s1912 = sadd.s32 %s1896, 3
        %s1913 = smul.u32 %s1912, 128
        %s1914 = sadd.s32 %s1913, %s1901
        %s1915 = sld [smem:[#allocation4 + %s1914]]
        %s1916 = scalar_lea.vmem %s1, %s1915
        %v1917 = vld [vmem:[%s1916] sm:$0x1]
        %s1918 = sadd.s32 %s1896, 4
        %s1919 = smul.u32 %s1918, 128
        %s1920 = sadd.s32 %s1919, %s1901
        %s1921 = sld [smem:[#allocation4 + %s1920]]
        %s1922 = scalar_lea.vmem %s1, %s1921
        %v1923 = vld [vmem:[%s1922] sm:$0x1]
        %s1924 = sadd.s32 %s1896, 5
        %s1925 = smul.u32 %s1924, 128
        %s1926 = sadd.s32 %s1925, %s1901
        %s1927 = sld [smem:[#allocation4 + %s1926]]
        %s1928 = scalar_lea.vmem %s1, %s1927
        %v1929 = vld [vmem:[%s1928] sm:$0x1]
        %s1930 = sadd.s32 %s1896, 6
        %s1931 = smul.u32 %s1930, 128
        %s1932 = sadd.s32 %s1931, %s1901
        %s1933 = sld [smem:[#allocation4 + %s1932]]
        %s1934 = scalar_lea.vmem %s1, %s1933
        %v1935 = vld [vmem:[%s1934] sm:$0x1]
        %s1936 = sadd.s32 %s1896, 7
        %s1937 = smul.u32 %s1936, 128
        %s1938 = sadd.s32 %s1937, %s1901
        %s1939 = sld [smem:[#allocation4 + %s1938]]
        %s1940 = scalar_lea.vmem %s1, %s1939
        %v1941 = vld [vmem:[%s1940] sm:$0x1]
        %v1943 = vrot.slane %v1905, 7
        %v1946 = vrot.slane %v1911, 6
        %v1949 = vrot.slane %v1917, 5
        %v1952 = vrot.slane %v1923, 4
        %v1955 = vrot.slane %v1929, 3
        %v1958 = vrot.slane %v1935, 2
        %v1961 = vrot.slane %v1941, 1
        %vm1963 = vcmask 1040384
        %v1964 = vsel %vm1963, %v1895, %v1943
        %vm1965 = vcmask 1041408
        %v1966 = vsel %vm1965, %v1964, %v1946
        %vm1967 = vcmask 1042432
        %v1968 = vsel %vm1967, %v1966, %v1949
        %vm1969 = vcmask 1043456
        %v1970 = vsel %vm1969, %v1968, %v1952
        %vm1971 = vcmask 1044480
        %v1972 = vsel %vm1971, %v1970, %v1955
        %vm1973 = vcmask 1045504
        %v1974 = vsel %vm1973, %v1972, %v1958
        %vm1975 = vcmask 1046528
        %v1976 = vsel %vm1975, %v1974, %v1961
        %p1977 = scmp.eq.s32.totalorder %s1887, 0
        // Predicated region
        $region165: #{hmm_forward_pallas.1} parent=163 // pred_check
          %p1978 = pneg %p1977
        $region166: #{hmm_forward_pallas.1} parent=163 // pred_check_branch
          %1980 = sbr.rel (%p1978) target = $region168
        $region167: #{hmm_forward_pallas.1} parent=163 // pred_region
          %vm1981 = vcmask 261120
          %1982 = vst.msk [vmem:[#allocation2] sm:$0xff] %vm1981, %v1976
        $region168: #{hmm_forward_pallas.1} parent=163 // pred_fallthru
          _
        %p1983 = scmp.ne.s32.totalorder %s1887, 0
        // Predicated region
        $region169: #{hmm_forward_pallas.1} parent=163 // pred_check
          %p1984 = pneg %p1983
        $region170: #{hmm_forward_pallas.1} parent=163 // pred_check_branch
          %1986 = sbr.rel (%p1984) target = $region172
        $region171: #{hmm_forward_pallas.1} parent=163 // pred_region
          %v1987 = vld [vmem:[#allocation2] sm:$0xff]
          %vm1988 = vcmask 261120
          %v1989 = vsel %vm1988, %v1987, -inf
          %1990 = vmax.xlane.f32.xlu0 %v1989
          %v1991 = vpop.xlane.xlu0 %1990
          %v1992 = vsub.f32 %v1987, %v1991
          %v1993 = vmul.f32 %v1992, 1.442695
          %v1994 = vpow.pop %v1993
          %v1995 = vld [vmem:[%s2] sm:$0xff]
          %v1996 = vld [vmem:[%s2 + $0x8] sm:$0xff]
          %v1997 = vld [vmem:[%s2 + $0x10] sm:$0xff]
          %v1998 = vld [vmem:[%s2 + $0x18] sm:$0xff]
          %v2000 = vsel %vm1988, %v1994, 0
          %2002 = vmatprep.subr.mxu0 0.0
          %2003 = vmatpush1.msra.mxu0 %v1995
          %2004 = vmatprep.subr.mxu0 0.0
          %2005 = vmatpush1.msra.mxu0 %v1996
          %2006 = vmatprep.subr.mxu0 0.0
          %2007 = vmatpush1.msra.mxu0 %v1997
          %2008 = vmatprep.subr.mxu0 0.0
          %2009 = vmatpush1.msra.mxu0 %v1998
          %2010 = vmatprep.subr.mxu0 0.0
          %2011 = vmatpush1.msra.mxu0 0.0
          %2012 = vmatprep.subr.mxu0 0.0
          %2013 = vmatpush1.msra.mxu0 0.0
          %2014 = vmatprep.subr.mxu0 0.0
          %2015 = vmatpush1.msra.mxu0 0.0
          %2016 = vmatprep.subr.mxu0 0.0
          %2017 = vmatpush1.msra.mxu0 0.0
          %2018 = vmatprep.subr.mxu0 0.0
          %2019 = vmatpush1.msra.mxu0 0.0
          %2020 = vmatprep.subr.mxu0 0.0
          %2021 = vmatpush1.msra.mxu0 0.0
          %2022 = vmatprep.subr.mxu0 0.0
          %2023 = vmatpush1.msra.mxu0 0.0
          %2024 = vmatprep.subr.mxu0 0.0
          %2025 = vmatpush1.msra.mxu0 0.0
          %2026 = vmatprep.subr.mxu0 0.0
          %2027 = vmatpush1.msra.mxu0 0.0
          %2028 = vmatprep.subr.mxu0 0.0
          %2029 = vmatpush1.msra.mxu0 0.0
          %2030 = vmatprep.subr.mxu0 0.0
          %2031 = vmatpush1.msra.mxu0 0.0
          %2032 = vmatprep.subr.mxu0 0.0
          %2033 = vmatpush1.msra.mxu0 0.0
          %2034 = vmatprep.subr.mxu0 0.0
          %2035 = vmatpush1.msra.mxu0 0.0
          %2036 = vmatprep.subr.mxu0 0.0
          %2037 = vmatpush1.msra.mxu0 0.0
          %2038 = vmatprep.subr.mxu0 0.0
          %2039 = vmatpush1.msra.mxu0 0.0
          %2040 = vmatprep.subr.mxu0 0.0
          %2041 = vmatpush1.msra.mxu0 0.0
          %2042 = vmatprep.subr.mxu0 0.0
          %2043 = vmatpush1.msra.mxu0 0.0
          %2044 = vmatprep.subr.mxu0 0.0
          %2045 = vmatpush1.msra.mxu0 0.0
          %2046 = vmatprep.subr.mxu0 0.0
          %2047 = vmatpush1.msra.mxu0 0.0
          %2048 = vmatprep.subr.mxu0 0.0
          %2049 = vmatpush1.msra.mxu0 0.0
          %2050 = vmatprep.subr.mxu0 0.0
          %2051 = vmatpush1.msra.mxu0 0.0
          %2052 = vmatprep.subr.mxu0 0.0
          %2053 = vmatpush1.msra.mxu0 0.0
          %2054 = vmatprep.subr.mxu0 0.0
          %2055 = vmatpush1.msra.mxu0 0.0
          %2056 = vmatprep.subr.mxu0 0.0
          %2057 = vmatpush1.msra.mxu0 0.0
          %2058 = vmatprep.subr.mxu0 0.0
          %2059 = vmatpush1.msra.mxu0 0.0
          %2060 = vmatprep.subr.mxu0 0.0
          %2061 = vmatpush1.msra.mxu0 0.0
          %2062 = vmatprep.subr.mxu0 0.0
          %2063 = vmatpush1.msra.mxu0 0.0
          %2064 = vmatprep.subr.mxu0 0.0
          %2065 = vmatpush1.msra.mxu0 0.0
          %2066 = vmatprep.mubr.f32.mxu0 0.0
          %2067 = vmatmul.mubr.f32.gmra.mrb[0].mxu0 %v2000
          %v2068 = vpop.f32.mrb[0].mxu0
          %v2069 = vadd.f32 0.0, %v2068
          %v2070 = vpop.f32.mrb[0].mxu0
          %2071 = vdwg.mxu0
          %v2072 = vlog2.pop %v2069
          %v2073 = vmul.f32 %v2072, 0.6931472
          %v2074 = vadd.f32 %v2073, %v1991
          %v2075 = vadd.f32 %v2074, %v1976
          %2076 = vst.msk [vmem:[#allocation2] sm:$0xff] %vm1988, %v2075
        $region172: #{hmm_forward_pallas.1} parent=163 // pred_fallthru
          _
        %p2077 = scmp.eq.s32.totalorder %s1887, 19
        // Predicated region
        $region173: #{hmm_forward_pallas.1} parent=163 // pred_check
          %p2078 = pneg %p2077
        $region174: #{hmm_forward_pallas.1} parent=163 // pred_check_branch
          %2080 = sbr.rel (%p2078) target = $region176
        $region175: #{hmm_forward_pallas.1} parent=163 // pred_region
          %v2081 = vld [vmem:[#allocation2] sm:$0xff]
          %vm2082 = vcmask 261120
          %v2083 = vsel %vm2082, %v2081, -inf
          %2084 = vmax.xlane.f32.xlu0 %v2083
          %v2085 = vpop.xlane.xlu0 %2084
          %v2086 = vsub.f32 %v2081, %v2085
          %v2087 = vmul.f32 %v2086, 1.442695
          %v2088 = vpow.pop %v2087
          %v2089 = vld [vmem:[%s3] sm:$0x1]
          %v2091 = vlaneseq
          %v2092 = vshrl.u32 %v2091, 7
          %v2093 = vsub.s32 0, %v2092
          %v2094 = vrot.slane %v2089, %v2093
          %v2096 = vmul.f32 %v2088, %v2094
          %v2097 = vsel %vm2082, %v2096, 0.0
          %2098 = vadd.xlane.f32.xlu0 %v2097
          %v2099 = vpop.xlane.xlu0 %2098
          %v2100 = vlog2.pop %v2099
          %v2101 = vmul.f32 %v2100, 0.6931472
          %v2102 = vadd.f32 %v2101, %v2085
          %vm2103 = vcmask 7168
          %2104 = vst.msk [vmem:[%s4] sm:$0xff] %vm2103, %v2102
        $region176: #{hmm_forward_pallas.1} parent=163 // pred_fallthru
          _
      $region164: #{hmm_forward_pallas.1} parent=31 // pred_fallthru
        _
      %s2105 = sadd.s32 %s143, 9
      %s2106 = ssub.s32 10, %s143
      %p2107 = scmp.lt.s32.totalorder %s2105, 20
      // Predicated region
      $region177: #{hmm_forward_pallas.1} parent=31 // pred_check
        %p2108 = pneg %p2107
      $region178: #{hmm_forward_pallas.1} parent=31 // pred_check_branch
        %2110 = sbr.rel (%p2108) target = $region180
      $region179: #{hmm_forward_pallas.1} parent=31 // pred_region
        %s2111 = sld [smem:[#allocation4 + %s2106]]
        %s2112 = scalar_lea.vmem %s1, %s2111
        %v2113 = vld [vmem:[%s2112] sm:$0x1]
        %s2114 = sshra.s32 %s2106, 7
        %s2115 = sand.u32 %s2106, 127
        %s2116 = sadd.s32 %s2114, 1
        %s2117 = smul.u32 %s2116, 128
        %s2118 = sshra.s32 %s2106, 7
        %s2119 = sand.u32 %s2106, 127
        %s2120 = sadd.s32 %s2117, %s2119
        %s2121 = sld [smem:[#allocation4 + %s2120]]
        %s2122 = scalar_lea.vmem %s1, %s2121
        %v2123 = vld [vmem:[%s2122] sm:$0x1]
        %s2124 = sadd.s32 %s2114, 2
        %s2125 = smul.u32 %s2124, 128
        %s2126 = sadd.s32 %s2125, %s2119
        %s2127 = sld [smem:[#allocation4 + %s2126]]
        %s2128 = scalar_lea.vmem %s1, %s2127
        %v2129 = vld [vmem:[%s2128] sm:$0x1]
        %s2130 = sadd.s32 %s2114, 3
        %s2131 = smul.u32 %s2130, 128
        %s2132 = sadd.s32 %s2131, %s2119
        %s2133 = sld [smem:[#allocation4 + %s2132]]
        %s2134 = scalar_lea.vmem %s1, %s2133
        %v2135 = vld [vmem:[%s2134] sm:$0x1]
        %s2136 = sadd.s32 %s2114, 4
        %s2137 = smul.u32 %s2136, 128
        %s2138 = sadd.s32 %s2137, %s2119
        %s2139 = sld [smem:[#allocation4 + %s2138]]
        %s2140 = scalar_lea.vmem %s1, %s2139
        %v2141 = vld [vmem:[%s2140] sm:$0x1]
        %s2142 = sadd.s32 %s2114, 5
        %s2143 = smul.u32 %s2142, 128
        %s2144 = sadd.s32 %s2143, %s2119
        %s2145 = sld [smem:[#allocation4 + %s2144]]
        %s2146 = scalar_lea.vmem %s1, %s2145
        %v2147 = vld [vmem:[%s2146] sm:$0x1]
        %s2148 = sadd.s32 %s2114, 6
        %s2149 = smul.u32 %s2148, 128
        %s2150 = sadd.s32 %s2149, %s2119
        %s2151 = sld [smem:[#allocation4 + %s2150]]
        %s2152 = scalar_lea.vmem %s1, %s2151
        %v2153 = vld [vmem:[%s2152] sm:$0x1]
        %s2154 = sadd.s32 %s2114, 7
        %s2155 = smul.u32 %s2154, 128
        %s2156 = sadd.s32 %s2155, %s2119
        %s2157 = sld [smem:[#allocation4 + %s2156]]
        %s2158 = scalar_lea.vmem %s1, %s2157
        %v2159 = vld [vmem:[%s2158] sm:$0x1]
        %v2161 = vrot.slane %v2123, 7
        %v2164 = vrot.slane %v2129, 6
        %v2167 = vrot.slane %v2135, 5
        %v2170 = vrot.slane %v2141, 4
        %v2173 = vrot.slane %v2147, 3
        %v2176 = vrot.slane %v2153, 2
        %v2179 = vrot.slane %v2159, 1
        %vm2181 = vcmask 1040384
        %v2182 = vsel %vm2181, %v2113, %v2161
        %vm2183 = vcmask 1041408
        %v2184 = vsel %vm2183, %v2182, %v2164
        %vm2185 = vcmask 1042432
        %v2186 = vsel %vm2185, %v2184, %v2167
        %vm2187 = vcmask 1043456
        %v2188 = vsel %vm2187, %v2186, %v2170
        %vm2189 = vcmask 1044480
        %v2190 = vsel %vm2189, %v2188, %v2173
        %vm2191 = vcmask 1045504
        %v2192 = vsel %vm2191, %v2190, %v2176
        %vm2193 = vcmask 1046528
        %v2194 = vsel %vm2193, %v2192, %v2179
        %p2195 = scmp.eq.s32.totalorder %s2105, 0
        // Predicated region
        $region181: #{hmm_forward_pallas.1} parent=179 // pred_check
          %p2196 = pneg %p2195
        $region182: #{hmm_forward_pallas.1} parent=179 // pred_check_branch
          %2198 = sbr.rel (%p2196) target = $region184
        $region183: #{hmm_forward_pallas.1} parent=179 // pred_region
          %vm2199 = vcmask 261120
          %2200 = vst.msk [vmem:[#allocation2] sm:$0xff] %vm2199, %v2194
        $region184: #{hmm_forward_pallas.1} parent=179 // pred_fallthru
          _
        %p2201 = scmp.ne.s32.totalorder %s2105, 0
        // Predicated region
        $region185: #{hmm_forward_pallas.1} parent=179 // pred_check
          %p2202 = pneg %p2201
        $region186: #{hmm_forward_pallas.1} parent=179 // pred_check_branch
          %2204 = sbr.rel (%p2202) target = $region188
        $region187: #{hmm_forward_pallas.1} parent=179 // pred_region
          %v2205 = vld [vmem:[#allocation2] sm:$0xff]
          %vm2206 = vcmask 261120
          %v2207 = vsel %vm2206, %v2205, -inf
          %2208 = vmax.xlane.f32.xlu0 %v2207
          %v2209 = vpop.xlane.xlu0 %2208
          %v2210 = vsub.f32 %v2205, %v2209
          %v2211 = vmul.f32 %v2210, 1.442695
          %v2212 = vpow.pop %v2211
          %v2213 = vld [vmem:[%s2] sm:$0xff]
          %v2214 = vld [vmem:[%s2 + $0x8] sm:$0xff]
          %v2215 = vld [vmem:[%s2 + $0x10] sm:$0xff]
          %v2216 = vld [vmem:[%s2 + $0x18] sm:$0xff]
          %v2218 = vsel %vm2206, %v2212, 0
          %2220 = vmatprep.subr.mxu0 0.0
          %2221 = vmatpush1.msra.mxu0 %v2213
          %2222 = vmatprep.subr.mxu0 0.0
          %2223 = vmatpush1.msra.mxu0 %v2214
          %2224 = vmatprep.subr.mxu0 0.0
          %2225 = vmatpush1.msra.mxu0 %v2215
          %2226 = vmatprep.subr.mxu0 0.0
          %2227 = vmatpush1.msra.mxu0 %v2216
          %2228 = vmatprep.subr.mxu0 0.0
          %2229 = vmatpush1.msra.mxu0 0.0
          %2230 = vmatprep.subr.mxu0 0.0
          %2231 = vmatpush1.msra.mxu0 0.0
          %2232 = vmatprep.subr.mxu0 0.0
          %2233 = vmatpush1.msra.mxu0 0.0
          %2234 = vmatprep.subr.mxu0 0.0
          %2235 = vmatpush1.msra.mxu0 0.0
          %2236 = vmatprep.subr.mxu0 0.0
          %2237 = vmatpush1.msra.mxu0 0.0
          %2238 = vmatprep.subr.mxu0 0.0
          %2239 = vmatpush1.msra.mxu0 0.0
          %2240 = vmatprep.subr.mxu0 0.0
          %2241 = vmatpush1.msra.mxu0 0.0
          %2242 = vmatprep.subr.mxu0 0.0
          %2243 = vmatpush1.msra.mxu0 0.0
          %2244 = vmatprep.subr.mxu0 0.0
          %2245 = vmatpush1.msra.mxu0 0.0
          %2246 = vmatprep.subr.mxu0 0.0
          %2247 = vmatpush1.msra.mxu0 0.0
          %2248 = vmatprep.subr.mxu0 0.0
          %2249 = vmatpush1.msra.mxu0 0.0
          %2250 = vmatprep.subr.mxu0 0.0
          %2251 = vmatpush1.msra.mxu0 0.0
          %2252 = vmatprep.subr.mxu0 0.0
          %2253 = vmatpush1.msra.mxu0 0.0
          %2254 = vmatprep.subr.mxu0 0.0
          %2255 = vmatpush1.msra.mxu0 0.0
          %2256 = vmatprep.subr.mxu0 0.0
          %2257 = vmatpush1.msra.mxu0 0.0
          %2258 = vmatprep.subr.mxu0 0.0
          %2259 = vmatpush1.msra.mxu0 0.0
          %2260 = vmatprep.subr.mxu0 0.0
          %2261 = vmatpush1.msra.mxu0 0.0
          %2262 = vmatprep.subr.mxu0 0.0
          %2263 = vmatpush1.msra.mxu0 0.0
          %2264 = vmatprep.subr.mxu0 0.0
          %2265 = vmatpush1.msra.mxu0 0.0
          %2266 = vmatprep.subr.mxu0 0.0
          %2267 = vmatpush1.msra.mxu0 0.0
          %2268 = vmatprep.subr.mxu0 0.0
          %2269 = vmatpush1.msra.mxu0 0.0
          %2270 = vmatprep.subr.mxu0 0.0
          %2271 = vmatpush1.msra.mxu0 0.0
          %2272 = vmatprep.subr.mxu0 0.0
          %2273 = vmatpush1.msra.mxu0 0.0
          %2274 = vmatprep.subr.mxu0 0.0
          %2275 = vmatpush1.msra.mxu0 0.0
          %2276 = vmatprep.subr.mxu0 0.0
          %2277 = vmatpush1.msra.mxu0 0.0
          %2278 = vmatprep.subr.mxu0 0.0
          %2279 = vmatpush1.msra.mxu0 0.0
          %2280 = vmatprep.subr.mxu0 0.0
          %2281 = vmatpush1.msra.mxu0 0.0
          %2282 = vmatprep.subr.mxu0 0.0
          %2283 = vmatpush1.msra.mxu0 0.0
          %2284 = vmatprep.mubr.f32.mxu0 0.0
          %2285 = vmatmul.mubr.f32.gmra.mrb[0].mxu0 %v2218
          %v2286 = vpop.f32.mrb[0].mxu0
          %v2287 = vadd.f32 0.0, %v2286
          %v2288 = vpop.f32.mrb[0].mxu0
          %2289 = vdwg.mxu0
          %v2290 = vlog2.pop %v2287
          %v2291 = vmul.f32 %v2290, 0.6931472
          %v2292 = vadd.f32 %v2291, %v2209
          %v2293 = vadd.f32 %v2292, %v2194
          %2294 = vst.msk [vmem:[#allocation2] sm:$0xff] %vm2206, %v2293
        $region188: #{hmm_forward_pallas.1} parent=179 // pred_fallthru
          _
        %p2295 = scmp.eq.s32.totalorder %s2105, 19
        // Predicated region
        $region189: #{hmm_forward_pallas.1} parent=179 // pred_check
          %p2296 = pneg %p2295
        $region190: #{hmm_forward_pallas.1} parent=179 // pred_check_branch
          %2298 = sbr.rel (%p2296) target = $region192
        $region191: #{hmm_forward_pallas.1} parent=179 // pred_region
          %v2299 = vld [vmem:[#allocation2] sm:$0xff]
          %vm2300 = vcmask 261120
          %v2301 = vsel %vm2300, %v2299, -inf
          %2302 = vmax.xlane.f32.xlu0 %v2301
          %v2303 = vpop.xlane.xlu0 %2302
          %v2304 = vsub.f32 %v2299, %v2303
          %v2305 = vmul.f32 %v2304, 1.442695
          %v2306 = vpow.pop %v2305
          %v2307 = vld [vmem:[%s3] sm:$0x1]
          %v2309 = vlaneseq
          %v2310 = vshrl.u32 %v2309, 7
          %v2311 = vsub.s32 0, %v2310
          %v2312 = vrot.slane %v2307, %v2311
          %v2314 = vmul.f32 %v2306, %v2312
          %v2315 = vsel %vm2300, %v2314, 0.0
          %2316 = vadd.xlane.f32.xlu0 %v2315
          %v2317 = vpop.xlane.xlu0 %2316
          %v2318 = vlog2.pop %v2317
          %v2319 = vmul.f32 %v2318, 0.6931472
          %v2320 = vadd.f32 %v2319, %v2303
          %vm2321 = vcmask 7168
          %2322 = vst.msk [vmem:[%s4] sm:$0xff] %vm2321, %v2320
        $region192: #{hmm_forward_pallas.1} parent=179 // pred_fallthru
          _
      $region180: #{hmm_forward_pallas.1} parent=31 // pred_fallthru
        _
      %s2323 = sadd.s32 %s143, 10
      %s2324 = ssub.s32 9, %s143
      %p2325 = scmp.lt.s32.totalorder %s2323, 20
      // Predicated region
      $region193: #{hmm_forward_pallas.1} parent=31 // pred_check
        %p2326 = pneg %p2325
      $region194: #{hmm_forward_pallas.1} parent=31 // pred_check_branch
        %2328 = sbr.rel (%p2326) target = $region196
      $region195: #{hmm_forward_pallas.1} parent=31 // pred_region
        %s2329 = sld [smem:[#allocation4 + %s2324]]
        %s2330 = scalar_lea.vmem %s1, %s2329
        %v2331 = vld [vmem:[%s2330] sm:$0x1]
        %s2332 = sshra.s32 %s2324, 7
        %s2333 = sand.u32 %s2324, 127
        %s2334 = sadd.s32 %s2332, 1
        %s2335 = smul.u32 %s2334, 128
        %s2336 = sshra.s32 %s2324, 7
        %s2337 = sand.u32 %s2324, 127
        %s2338 = sadd.s32 %s2335, %s2337
        %s2339 = sld [smem:[#allocation4 + %s2338]]
        %s2340 = scalar_lea.vmem %s1, %s2339
        %v2341 = vld [vmem:[%s2340] sm:$0x1]
        %s2342 = sadd.s32 %s2332, 2
        %s2343 = smul.u32 %s2342, 128
        %s2344 = sadd.s32 %s2343, %s2337
        %s2345 = sld [smem:[#allocation4 + %s2344]]
        %s2346 = scalar_lea.vmem %s1, %s2345
        %v2347 = vld [vmem:[%s2346] sm:$0x1]
        %s2348 = sadd.s32 %s2332, 3
        %s2349 = smul.u32 %s2348, 128
        %s2350 = sadd.s32 %s2349, %s2337
        %s2351 = sld [smem:[#allocation4 + %s2350]]
        %s2352 = scalar_lea.vmem %s1, %s2351
        %v2353 = vld [vmem:[%s2352] sm:$0x1]
        %s2354 = sadd.s32 %s2332, 4
        %s2355 = smul.u32 %s2354, 128
        %s2356 = sadd.s32 %s2355, %s2337
        %s2357 = sld [smem:[#allocation4 + %s2356]]
        %s2358 = scalar_lea.vmem %s1, %s2357
        %v2359 = vld [vmem:[%s2358] sm:$0x1]
        %s2360 = sadd.s32 %s2332, 5
        %s2361 = smul.u32 %s2360, 128
        %s2362 = sadd.s32 %s2361, %s2337
        %s2363 = sld [smem:[#allocation4 + %s2362]]
        %s2364 = scalar_lea.vmem %s1, %s2363
        %v2365 = vld [vmem:[%s2364] sm:$0x1]
        %s2366 = sadd.s32 %s2332, 6
        %s2367 = smul.u32 %s2366, 128
        %s2368 = sadd.s32 %s2367, %s2337
        %s2369 = sld [smem:[#allocation4 + %s2368]]
        %s2370 = scalar_lea.vmem %s1, %s2369
        %v2371 = vld [vmem:[%s2370] sm:$0x1]
        %s2372 = sadd.s32 %s2332, 7
        %s2373 = smul.u32 %s2372, 128
        %s2374 = sadd.s32 %s2373, %s2337
        %s2375 = sld [smem:[#allocation4 + %s2374]]
        %s2376 = scalar_lea.vmem %s1, %s2375
        %v2377 = vld [vmem:[%s2376] sm:$0x1]
        %v2379 = vrot.slane %v2341, 7
        %v2382 = vrot.slane %v2347, 6
        %v2385 = vrot.slane %v2353, 5
        %v2388 = vrot.slane %v2359, 4
        %v2391 = vrot.slane %v2365, 3
        %v2394 = vrot.slane %v2371, 2
        %v2397 = vrot.slane %v2377, 1
        %vm2399 = vcmask 1040384
        %v2400 = vsel %vm2399, %v2331, %v2379
        %vm2401 = vcmask 1041408
        %v2402 = vsel %vm2401, %v2400, %v2382
        %vm2403 = vcmask 1042432
        %v2404 = vsel %vm2403, %v2402, %v2385
        %vm2405 = vcmask 1043456
        %v2406 = vsel %vm2405, %v2404, %v2388
        %vm2407 = vcmask 1044480
        %v2408 = vsel %vm2407, %v2406, %v2391
        %vm2409 = vcmask 1045504
        %v2410 = vsel %vm2409, %v2408, %v2394
        %vm2411 = vcmask 1046528
        %v2412 = vsel %vm2411, %v2410, %v2397
        %p2413 = scmp.eq.s32.totalorder %s2323, 0
        // Predicated region
        $region197: #{hmm_forward_pallas.1} parent=195 // pred_check
          %p2414 = pneg %p2413
        $region198: #{hmm_forward_pallas.1} parent=195 // pred_check_branch
          %2416 = sbr.rel (%p2414) target = $region200
        $region199: #{hmm_forward_pallas.1} parent=195 // pred_region
          %vm2417 = vcmask 261120
          %2418 = vst.msk [vmem:[#allocation2] sm:$0xff] %vm2417, %v2412
        $region200: #{hmm_forward_pallas.1} parent=195 // pred_fallthru
          _
        %p2419 = scmp.ne.s32.totalorder %s2323, 0
        // Predicated region
        $region201: #{hmm_forward_pallas.1} parent=195 // pred_check
          %p2420 = pneg %p2419
        $region202: #{hmm_forward_pallas.1} parent=195 // pred_check_branch
          %2422 = sbr.rel (%p2420) target = $region204
        $region203: #{hmm_forward_pallas.1} parent=195 // pred_region
          %v2423 = vld [vmem:[#allocation2] sm:$0xff]
          %vm2424 = vcmask 261120
          %v2425 = vsel %vm2424, %v2423, -inf
          %2426 = vmax.xlane.f32.xlu0 %v2425
          %v2427 = vpop.xlane.xlu0 %2426
          %v2428 = vsub.f32 %v2423, %v2427
          %v2429 = vmul.f32 %v2428, 1.442695
          %v2430 = vpow.pop %v2429
          %v2431 = vld [vmem:[%s2] sm:$0xff]
          %v2432 = vld [vmem:[%s2 + $0x8] sm:$0xff]
          %v2433 = vld [vmem:[%s2 + $0x10] sm:$0xff]
          %v2434 = vld [vmem:[%s2 + $0x18] sm:$0xff]
          %v2436 = vsel %vm2424, %v2430, 0
          %2438 = vmatprep.subr.mxu0 0.0
          %2439 = vmatpush1.msra.mxu0 %v2431
          %2440 = vmatprep.subr.mxu0 0.0
          %2441 = vmatpush1.msra.mxu0 %v2432
          %2442 = vmatprep.subr.mxu0 0.0
          %2443 = vmatpush1.msra.mxu0 %v2433
          %2444 = vmatprep.subr.mxu0 0.0
          %2445 = vmatpush1.msra.mxu0 %v2434
          %2446 = vmatprep.subr.mxu0 0.0
          %2447 = vmatpush1.msra.mxu0 0.0
          %2448 = vmatprep.subr.mxu0 0.0
          %2449 = vmatpush1.msra.mxu0 0.0
          %2450 = vmatprep.subr.mxu0 0.0
          %2451 = vmatpush1.msra.mxu0 0.0
          %2452 = vmatprep.subr.mxu0 0.0
          %2453 = vmatpush1.msra.mxu0 0.0
          %2454 = vmatprep.subr.mxu0 0.0
          %2455 = vmatpush1.msra.mxu0 0.0
          %2456 = vmatprep.subr.mxu0 0.0
          %2457 = vmatpush1.msra.mxu0 0.0
          %2458 = vmatprep.subr.mxu0 0.0
          %2459 = vmatpush1.msra.mxu0 0.0
          %2460 = vmatprep.subr.mxu0 0.0
          %2461 = vmatpush1.msra.mxu0 0.0
          %2462 = vmatprep.subr.mxu0 0.0
          %2463 = vmatpush1.msra.mxu0 0.0
          %2464 = vmatprep.subr.mxu0 0.0
          %2465 = vmatpush1.msra.mxu0 0.0
          %2466 = vmatprep.subr.mxu0 0.0
          %2467 = vmatpush1.msra.mxu0 0.0
          %2468 = vmatprep.subr.mxu0 0.0
          %2469 = vmatpush1.msra.mxu0 0.0
          %2470 = vmatprep.subr.mxu0 0.0
          %2471 = vmatpush1.msra.mxu0 0.0
          %2472 = vmatprep.subr.mxu0 0.0
          %2473 = vmatpush1.msra.mxu0 0.0
          %2474 = vmatprep.subr.mxu0 0.0
          %2475 = vmatpush1.msra.mxu0 0.0
          %2476 = vmatprep.subr.mxu0 0.0
          %2477 = vmatpush1.msra.mxu0 0.0
          %2478 = vmatprep.subr.mxu0 0.0
          %2479 = vmatpush1.msra.mxu0 0.0
          %2480 = vmatprep.subr.mxu0 0.0
          %2481 = vmatpush1.msra.mxu0 0.0
          %2482 = vmatprep.subr.mxu0 0.0
          %2483 = vmatpush1.msra.mxu0 0.0
          %2484 = vmatprep.subr.mxu0 0.0
          %2485 = vmatpush1.msra.mxu0 0.0
          %2486 = vmatprep.subr.mxu0 0.0
          %2487 = vmatpush1.msra.mxu0 0.0
          %2488 = vmatprep.subr.mxu0 0.0
          %2489 = vmatpush1.msra.mxu0 0.0
          %2490 = vmatprep.subr.mxu0 0.0
          %2491 = vmatpush1.msra.mxu0 0.0
          %2492 = vmatprep.subr.mxu0 0.0
          %2493 = vmatpush1.msra.mxu0 0.0
          %2494 = vmatprep.subr.mxu0 0.0
          %2495 = vmatpush1.msra.mxu0 0.0
          %2496 = vmatprep.subr.mxu0 0.0
          %2497 = vmatpush1.msra.mxu0 0.0
          %2498 = vmatprep.subr.mxu0 0.0
          %2499 = vmatpush1.msra.mxu0 0.0
          %2500 = vmatprep.subr.mxu0 0.0
          %2501 = vmatpush1.msra.mxu0 0.0
          %2502 = vmatprep.mubr.f32.mxu0 0.0
          %2503 = vmatmul.mubr.f32.gmra.mrb[0].mxu0 %v2436
          %v2504 = vpop.f32.mrb[0].mxu0
          %v2505 = vadd.f32 0.0, %v2504
          %v2506 = vpop.f32.mrb[0].mxu0
          %2507 = vdwg.mxu0
          %v2508 = vlog2.pop %v2505
          %v2509 = vmul.f32 %v2508, 0.6931472
          %v2510 = vadd.f32 %v2509, %v2427
          %v2511 = vadd.f32 %v2510, %v2412
          %2512 = vst.msk [vmem:[#allocation2] sm:$0xff] %vm2424, %v2511
        $region204: #{hmm_forward_pallas.1} parent=195 // pred_fallthru
          _
        %p2513 = scmp.eq.s32.totalorder %s2323, 19
        // Predicated region
        $region205: #{hmm_forward_pallas.1} parent=195 // pred_check
          %p2514 = pneg %p2513
        $region206: #{hmm_forward_pallas.1} parent=195 // pred_check_branch
          %2516 = sbr.rel (%p2514) target = $region208
        $region207: #{hmm_forward_pallas.1} parent=195 // pred_region
          %v2517 = vld [vmem:[#allocation2] sm:$0xff]
          %vm2518 = vcmask 261120
          %v2519 = vsel %vm2518, %v2517, -inf
          %2520 = vmax.xlane.f32.xlu0 %v2519
          %v2521 = vpop.xlane.xlu0 %2520
          %v2522 = vsub.f32 %v2517, %v2521
          %v2523 = vmul.f32 %v2522, 1.442695
          %v2524 = vpow.pop %v2523
          %v2525 = vld [vmem:[%s3] sm:$0x1]
          %v2527 = vlaneseq
          %v2528 = vshrl.u32 %v2527, 7
          %v2529 = vsub.s32 0, %v2528
          %v2530 = vrot.slane %v2525, %v2529
          %v2532 = vmul.f32 %v2524, %v2530
          %v2533 = vsel %vm2518, %v2532, 0.0
          %2534 = vadd.xlane.f32.xlu0 %v2533
          %v2535 = vpop.xlane.xlu0 %2534
          %v2536 = vlog2.pop %v2535
          %v2537 = vmul.f32 %v2536, 0.6931472
          %v2538 = vadd.f32 %v2537, %v2521
          %vm2539 = vcmask 7168
          %2540 = vst.msk [vmem:[%s4] sm:$0xff] %vm2539, %v2538
        $region208: #{hmm_forward_pallas.1} parent=195 // pred_fallthru
          _
      $region196: #{hmm_forward_pallas.1} parent=31 // pred_fallthru
        _
      %s2541 = sadd.s32 %s143, 11
      %s2542 = ssub.s32 8, %s143
      %p2543 = scmp.lt.s32.totalorder %s2541, 20
      // Predicated region
      $region209: #{hmm_forward_pallas.1} parent=31 // pred_check
        %p2544 = pneg %p2543
      $region210: #{hmm_forward_pallas.1} parent=31 // pred_check_branch
        %2546 = sbr.rel (%p2544) target = $region212
      $region211: #{hmm_forward_pallas.1} parent=31 // pred_region
        %s2547 = sld [smem:[#allocation4 + %s2542]]
        %s2548 = scalar_lea.vmem %s1, %s2547
        %v2549 = vld [vmem:[%s2548] sm:$0x1]
        %s2550 = sshra.s32 %s2542, 7
        %s2551 = sand.u32 %s2542, 127
        %s2552 = sadd.s32 %s2550, 1
        %s2553 = smul.u32 %s2552, 128
        %s2554 = sshra.s32 %s2542, 7
        %s2555 = sand.u32 %s2542, 127
        %s2556 = sadd.s32 %s2553, %s2555
        %s2557 = sld [smem:[#allocation4 + %s2556]]
        %s2558 = scalar_lea.vmem %s1, %s2557
        %v2559 = vld [vmem:[%s2558] sm:$0x1]
        %s2560 = sadd.s32 %s2550, 2
        %s2561 = smul.u32 %s2560, 128
        %s2562 = sadd.s32 %s2561, %s2555
        %s2563 = sld [smem:[#allocation4 + %s2562]]
        %s2564 = scalar_lea.vmem %s1, %s2563
        %v2565 = vld [vmem:[%s2564] sm:$0x1]
        %s2566 = sadd.s32 %s2550, 3
        %s2567 = smul.u32 %s2566, 128
        %s2568 = sadd.s32 %s2567, %s2555
        %s2569 = sld [smem:[#allocation4 + %s2568]]
        %s2570 = scalar_lea.vmem %s1, %s2569
        %v2571 = vld [vmem:[%s2570] sm:$0x1]
        %s2572 = sadd.s32 %s2550, 4
        %s2573 = smul.u32 %s2572, 128
        %s2574 = sadd.s32 %s2573, %s2555
        %s2575 = sld [smem:[#allocation4 + %s2574]]
        %s2576 = scalar_lea.vmem %s1, %s2575
        %v2577 = vld [vmem:[%s2576] sm:$0x1]
        %s2578 = sadd.s32 %s2550, 5
        %s2579 = smul.u32 %s2578, 128
        %s2580 = sadd.s32 %s2579, %s2555
        %s2581 = sld [smem:[#allocation4 + %s2580]]
        %s2582 = scalar_lea.vmem %s1, %s2581
        %v2583 = vld [vmem:[%s2582] sm:$0x1]
        %s2584 = sadd.s32 %s2550, 6
        %s2585 = smul.u32 %s2584, 128
        %s2586 = sadd.s32 %s2585, %s2555
        %s2587 = sld [smem:[#allocation4 + %s2586]]
        %s2588 = scalar_lea.vmem %s1, %s2587
        %v2589 = vld [vmem:[%s2588] sm:$0x1]
        %s2590 = sadd.s32 %s2550, 7
        %s2591 = smul.u32 %s2590, 128
        %s2592 = sadd.s32 %s2591, %s2555
        %s2593 = sld [smem:[#allocation4 + %s2592]]
        %s2594 = scalar_lea.vmem %s1, %s2593
        %v2595 = vld [vmem:[%s2594] sm:$0x1]
        %v2597 = vrot.slane %v2559, 7
        %v2600 = vrot.slane %v2565, 6
        %v2603 = vrot.slane %v2571, 5
        %v2606 = vrot.slane %v2577, 4
        %v2609 = vrot.slane %v2583, 3
        %v2612 = vrot.slane %v2589, 2
        %v2615 = vrot.slane %v2595, 1
        %vm2617 = vcmask 1040384
        %v2618 = vsel %vm2617, %v2549, %v2597
        %vm2619 = vcmask 1041408
        %v2620 = vsel %vm2619, %v2618, %v2600
        %vm2621 = vcmask 1042432
        %v2622 = vsel %vm2621, %v2620, %v2603
        %vm2623 = vcmask 1043456
        %v2624 = vsel %vm2623, %v2622, %v2606
        %vm2625 = vcmask 1044480
        %v2626 = vsel %vm2625, %v2624, %v2609
        %vm2627 = vcmask 1045504
        %v2628 = vsel %vm2627, %v2626, %v2612
        %vm2629 = vcmask 1046528
        %v2630 = vsel %vm2629, %v2628, %v2615
        %p2631 = scmp.eq.s32.totalorder %s2541, 0
        // Predicated region
        $region213: #{hmm_forward_pallas.1} parent=211 // pred_check
          %p2632 = pneg %p2631
        $region214: #{hmm_forward_pallas.1} parent=211 // pred_check_branch
          %2634 = sbr.rel (%p2632) target = $region216
        $region215: #{hmm_forward_pallas.1} parent=211 // pred_region
          %vm2635 = vcmask 261120
          %2636 = vst.msk [vmem:[#allocation2] sm:$0xff] %vm2635, %v2630
        $region216: #{hmm_forward_pallas.1} parent=211 // pred_fallthru
          _
        %p2637 = scmp.ne.s32.totalorder %s2541, 0
        // Predicated region
        $region217: #{hmm_forward_pallas.1} parent=211 // pred_check
          %p2638 = pneg %p2637
        $region218: #{hmm_forward_pallas.1} parent=211 // pred_check_branch
          %2640 = sbr.rel (%p2638) target = $region220
        $region219: #{hmm_forward_pallas.1} parent=211 // pred_region
          %v2641 = vld [vmem:[#allocation2] sm:$0xff]
          %vm2642 = vcmask 261120
          %v2643 = vsel %vm2642, %v2641, -inf
          %2644 = vmax.xlane.f32.xlu0 %v2643
          %v2645 = vpop.xlane.xlu0 %2644
          %v2646 = vsub.f32 %v2641, %v2645
          %v2647 = vmul.f32 %v2646, 1.442695
          %v2648 = vpow.pop %v2647
          %v2649 = vld [vmem:[%s2] sm:$0xff]
          %v2650 = vld [vmem:[%s2 + $0x8] sm:$0xff]
          %v2651 = vld [vmem:[%s2 + $0x10] sm:$0xff]
          %v2652 = vld [vmem:[%s2 + $0x18] sm:$0xff]
          %v2654 = vsel %vm2642, %v2648, 0
          %2656 = vmatprep.subr.mxu0 0.0
          %2657 = vmatpush1.msra.mxu0 %v2649
          %2658 = vmatprep.subr.mxu0 0.0
          %2659 = vmatpush1.msra.mxu0 %v2650
          %2660 = vmatprep.subr.mxu0 0.0
          %2661 = vmatpush1.msra.mxu0 %v2651
          %2662 = vmatprep.subr.mxu0 0.0
          %2663 = vmatpush1.msra.mxu0 %v2652
          %2664 = vmatprep.subr.mxu0 0.0
          %2665 = vmatpush1.msra.mxu0 0.0
          %2666 = vmatprep.subr.mxu0 0.0
          %2667 = vmatpush1.msra.mxu0 0.0
          %2668 = vmatprep.subr.mxu0 0.0
          %2669 = vmatpush1.msra.mxu0 0.0
          %2670 = vmatprep.subr.mxu0 0.0
          %2671 = vmatpush1.msra.mxu0 0.0
          %2672 = vmatprep.subr.mxu0 0.0
          %2673 = vmatpush1.msra.mxu0 0.0
          %2674 = vmatprep.subr.mxu0 0.0
          %2675 = vmatpush1.msra.mxu0 0.0
          %2676 = vmatprep.subr.mxu0 0.0
          %2677 = vmatpush1.msra.mxu0 0.0
          %2678 = vmatprep.subr.mxu0 0.0
          %2679 = vmatpush1.msra.mxu0 0.0
          %2680 = vmatprep.subr.mxu0 0.0
          %2681 = vmatpush1.msra.mxu0 0.0
          %2682 = vmatprep.subr.mxu0 0.0
          %2683 = vmatpush1.msra.mxu0 0.0
          %2684 = vmatprep.subr.mxu0 0.0
          %2685 = vmatpush1.msra.mxu0 0.0
          %2686 = vmatprep.subr.mxu0 0.0
          %2687 = vmatpush1.msra.mxu0 0.0
          %2688 = vmatprep.subr.mxu0 0.0
          %2689 = vmatpush1.msra.mxu0 0.0
          %2690 = vmatprep.subr.mxu0 0.0
          %2691 = vmatpush1.msra.mxu0 0.0
          %2692 = vmatprep.subr.mxu0 0.0
          %2693 = vmatpush1.msra.mxu0 0.0
          %2694 = vmatprep.subr.mxu0 0.0
          %2695 = vmatpush1.msra.mxu0 0.0
          %2696 = vmatprep.subr.mxu0 0.0
          %2697 = vmatpush1.msra.mxu0 0.0
          %2698 = vmatprep.subr.mxu0 0.0
          %2699 = vmatpush1.msra.mxu0 0.0
          %2700 = vmatprep.subr.mxu0 0.0
          %2701 = vmatpush1.msra.mxu0 0.0
          %2702 = vmatprep.subr.mxu0 0.0
          %2703 = vmatpush1.msra.mxu0 0.0
          %2704 = vmatprep.subr.mxu0 0.0
          %2705 = vmatpush1.msra.mxu0 0.0
          %2706 = vmatprep.subr.mxu0 0.0
          %2707 = vmatpush1.msra.mxu0 0.0
          %2708 = vmatprep.subr.mxu0 0.0
          %2709 = vmatpush1.msra.mxu0 0.0
          %2710 = vmatprep.subr.mxu0 0.0
          %2711 = vmatpush1.msra.mxu0 0.0
          %2712 = vmatprep.subr.mxu0 0.0
          %2713 = vmatpush1.msra.mxu0 0.0
          %2714 = vmatprep.subr.mxu0 0.0
          %2715 = vmatpush1.msra.mxu0 0.0
          %2716 = vmatprep.subr.mxu0 0.0
          %2717 = vmatpush1.msra.mxu0 0.0
          %2718 = vmatprep.subr.mxu0 0.0
          %2719 = vmatpush1.msra.mxu0 0.0
          %2720 = vmatprep.mubr.f32.mxu0 0.0
          %2721 = vmatmul.mubr.f32.gmra.mrb[0].mxu0 %v2654
          %v2722 = vpop.f32.mrb[0].mxu0
          %v2723 = vadd.f32 0.0, %v2722
          %v2724 = vpop.f32.mrb[0].mxu0
          %2725 = vdwg.mxu0
          %v2726 = vlog2.pop %v2723
          %v2727 = vmul.f32 %v2726, 0.6931472
          %v2728 = vadd.f32 %v2727, %v2645
          %v2729 = vadd.f32 %v2728, %v2630
          %2730 = vst.msk [vmem:[#allocation2] sm:$0xff] %vm2642, %v2729
        $region220: #{hmm_forward_pallas.1} parent=211 // pred_fallthru
          _
        %p2731 = scmp.eq.s32.totalorder %s2541, 19
        // Predicated region
        $region221: #{hmm_forward_pallas.1} parent=211 // pred_check
          %p2732 = pneg %p2731
        $region222: #{hmm_forward_pallas.1} parent=211 // pred_check_branch
          %2734 = sbr.rel (%p2732) target = $region224
        $region223: #{hmm_forward_pallas.1} parent=211 // pred_region
          %v2735 = vld [vmem:[#allocation2] sm:$0xff]
          %vm2736 = vcmask 261120
          %v2737 = vsel %vm2736, %v2735, -inf
          %2738 = vmax.xlane.f32.xlu0 %v2737
          %v2739 = vpop.xlane.xlu0 %2738
          %v2740 = vsub.f32 %v2735, %v2739
          %v2741 = vmul.f32 %v2740, 1.442695
          %v2742 = vpow.pop %v2741
          %v2743 = vld [vmem:[%s3] sm:$0x1]
          %v2745 = vlaneseq
          %v2746 = vshrl.u32 %v2745, 7
          %v2747 = vsub.s32 0, %v2746
          %v2748 = vrot.slane %v2743, %v2747
          %v2750 = vmul.f32 %v2742, %v2748
          %v2751 = vsel %vm2736, %v2750, 0.0
          %2752 = vadd.xlane.f32.xlu0 %v2751
          %v2753 = vpop.xlane.xlu0 %2752
          %v2754 = vlog2.pop %v2753
          %v2755 = vmul.f32 %v2754, 0.6931472
          %v2756 = vadd.f32 %v2755, %v2739
          %vm2757 = vcmask 7168
          %2758 = vst.msk [vmem:[%s4] sm:$0xff] %vm2757, %v2756
        $region224: #{hmm_forward_pallas.1} parent=211 // pred_fallthru
          _
      $region212: #{hmm_forward_pallas.1} parent=31 // pred_fallthru
        _
      %s2759 = sadd.s32 %s143, 12
      %s2760 = ssub.s32 7, %s143
      %p2761 = scmp.lt.s32.totalorder %s2759, 20
      // Predicated region
      $region225: #{hmm_forward_pallas.1} parent=31 // pred_check
        %p2762 = pneg %p2761
      $region226: #{hmm_forward_pallas.1} parent=31 // pred_check_branch
        %2764 = sbr.rel (%p2762) target = $region228
      $region227: #{hmm_forward_pallas.1} parent=31 // pred_region
        %s2765 = sld [smem:[#allocation4 + %s2760]]
        %s2766 = scalar_lea.vmem %s1, %s2765
        %v2767 = vld [vmem:[%s2766] sm:$0x1]
        %s2768 = sshra.s32 %s2760, 7
        %s2769 = sand.u32 %s2760, 127
        %s2770 = sadd.s32 %s2768, 1
        %s2771 = smul.u32 %s2770, 128
        %s2772 = sshra.s32 %s2760, 7
        %s2773 = sand.u32 %s2760, 127
        %s2774 = sadd.s32 %s2771, %s2773
        %s2775 = sld [smem:[#allocation4 + %s2774]]
        %s2776 = scalar_lea.vmem %s1, %s2775
        %v2777 = vld [vmem:[%s2776] sm:$0x1]
        %s2778 = sadd.s32 %s2768, 2
        %s2779 = smul.u32 %s2778, 128
        %s2780 = sadd.s32 %s2779, %s2773
        %s2781 = sld [smem:[#allocation4 + %s2780]]
        %s2782 = scalar_lea.vmem %s1, %s2781
        %v2783 = vld [vmem:[%s2782] sm:$0x1]
        %s2784 = sadd.s32 %s2768, 3
        %s2785 = smul.u32 %s2784, 128
        %s2786 = sadd.s32 %s2785, %s2773
        %s2787 = sld [smem:[#allocation4 + %s2786]]
        %s2788 = scalar_lea.vmem %s1, %s2787
        %v2789 = vld [vmem:[%s2788] sm:$0x1]
        %s2790 = sadd.s32 %s2768, 4
        %s2791 = smul.u32 %s2790, 128
        %s2792 = sadd.s32 %s2791, %s2773
        %s2793 = sld [smem:[#allocation4 + %s2792]]
        %s2794 = scalar_lea.vmem %s1, %s2793
        %v2795 = vld [vmem:[%s2794] sm:$0x1]
        %s2796 = sadd.s32 %s2768, 5
        %s2797 = smul.u32 %s2796, 128
        %s2798 = sadd.s32 %s2797, %s2773
        %s2799 = sld [smem:[#allocation4 + %s2798]]
        %s2800 = scalar_lea.vmem %s1, %s2799
        %v2801 = vld [vmem:[%s2800] sm:$0x1]
        %s2802 = sadd.s32 %s2768, 6
        %s2803 = smul.u32 %s2802, 128
        %s2804 = sadd.s32 %s2803, %s2773
        %s2805 = sld [smem:[#allocation4 + %s2804]]
        %s2806 = scalar_lea.vmem %s1, %s2805
        %v2807 = vld [vmem:[%s2806] sm:$0x1]
        %s2808 = sadd.s32 %s2768, 7
        %s2809 = smul.u32 %s2808, 128
        %s2810 = sadd.s32 %s2809, %s2773
        %s2811 = sld [smem:[#allocation4 + %s2810]]
        %s2812 = scalar_lea.vmem %s1, %s2811
        %v2813 = vld [vmem:[%s2812] sm:$0x1]
        %v2815 = vrot.slane %v2777, 7
        %v2818 = vrot.slane %v2783, 6
        %v2821 = vrot.slane %v2789, 5
        %v2824 = vrot.slane %v2795, 4
        %v2827 = vrot.slane %v2801, 3
        %v2830 = vrot.slane %v2807, 2
        %v2833 = vrot.slane %v2813, 1
        %vm2835 = vcmask 1040384
        %v2836 = vsel %vm2835, %v2767, %v2815
        %vm2837 = vcmask 1041408
        %v2838 = vsel %vm2837, %v2836, %v2818
        %vm2839 = vcmask 1042432
        %v2840 = vsel %vm2839, %v2838, %v2821
        %vm2841 = vcmask 1043456
        %v2842 = vsel %vm2841, %v2840, %v2824
        %vm2843 = vcmask 1044480
        %v2844 = vsel %vm2843, %v2842, %v2827
        %vm2845 = vcmask 1045504
        %v2846 = vsel %vm2845, %v2844, %v2830
        %vm2847 = vcmask 1046528
        %v2848 = vsel %vm2847, %v2846, %v2833
        %p2849 = scmp.eq.s32.totalorder %s2759, 0
        // Predicated region
        $region229: #{hmm_forward_pallas.1} parent=227 // pred_check
          %p2850 = pneg %p2849
        $region230: #{hmm_forward_pallas.1} parent=227 // pred_check_branch
          %2852 = sbr.rel (%p2850) target = $region232
        $region231: #{hmm_forward_pallas.1} parent=227 // pred_region
          %vm2853 = vcmask 261120
          %2854 = vst.msk [vmem:[#allocation2] sm:$0xff] %vm2853, %v2848
        $region232: #{hmm_forward_pallas.1} parent=227 // pred_fallthru
          _
        %p2855 = scmp.ne.s32.totalorder %s2759, 0
        // Predicated region
        $region233: #{hmm_forward_pallas.1} parent=227 // pred_check
          %p2856 = pneg %p2855
        $region234: #{hmm_forward_pallas.1} parent=227 // pred_check_branch
          %2858 = sbr.rel (%p2856) target = $region236
        $region235: #{hmm_forward_pallas.1} parent=227 // pred_region
          %v2859 = vld [vmem:[#allocation2] sm:$0xff]
          %vm2860 = vcmask 261120
          %v2861 = vsel %vm2860, %v2859, -inf
          %2862 = vmax.xlane.f32.xlu0 %v2861
          %v2863 = vpop.xlane.xlu0 %2862
          %v2864 = vsub.f32 %v2859, %v2863
          %v2865 = vmul.f32 %v2864, 1.442695
          %v2866 = vpow.pop %v2865
          %v2867 = vld [vmem:[%s2] sm:$0xff]
          %v2868 = vld [vmem:[%s2 + $0x8] sm:$0xff]
          %v2869 = vld [vmem:[%s2 + $0x10] sm:$0xff]
          %v2870 = vld [vmem:[%s2 + $0x18] sm:$0xff]
          %v2872 = vsel %vm2860, %v2866, 0
          %2874 = vmatprep.subr.mxu0 0.0
          %2875 = vmatpush1.msra.mxu0 %v2867
          %2876 = vmatprep.subr.mxu0 0.0
          %2877 = vmatpush1.msra.mxu0 %v2868
          %2878 = vmatprep.subr.mxu0 0.0
          %2879 = vmatpush1.msra.mxu0 %v2869
          %2880 = vmatprep.subr.mxu0 0.0
          %2881 = vmatpush1.msra.mxu0 %v2870
          %2882 = vmatprep.subr.mxu0 0.0
          %2883 = vmatpush1.msra.mxu0 0.0
          %2884 = vmatprep.subr.mxu0 0.0
          %2885 = vmatpush1.msra.mxu0 0.0
          %2886 = vmatprep.subr.mxu0 0.0
          %2887 = vmatpush1.msra.mxu0 0.0
          %2888 = vmatprep.subr.mxu0 0.0
          %2889 = vmatpush1.msra.mxu0 0.0
          %2890 = vmatprep.subr.mxu0 0.0
          %2891 = vmatpush1.msra.mxu0 0.0
          %2892 = vmatprep.subr.mxu0 0.0
          %2893 = vmatpush1.msra.mxu0 0.0
          %2894 = vmatprep.subr.mxu0 0.0
          %2895 = vmatpush1.msra.mxu0 0.0
          %2896 = vmatprep.subr.mxu0 0.0
          %2897 = vmatpush1.msra.mxu0 0.0
          %2898 = vmatprep.subr.mxu0 0.0
          %2899 = vmatpush1.msra.mxu0 0.0
          %2900 = vmatprep.subr.mxu0 0.0
          %2901 = vmatpush1.msra.mxu0 0.0
          %2902 = vmatprep.subr.mxu0 0.0
          %2903 = vmatpush1.msra.mxu0 0.0
          %2904 = vmatprep.subr.mxu0 0.0
          %2905 = vmatpush1.msra.mxu0 0.0
          %2906 = vmatprep.subr.mxu0 0.0
          %2907 = vmatpush1.msra.mxu0 0.0
          %2908 = vmatprep.subr.mxu0 0.0
          %2909 = vmatpush1.msra.mxu0 0.0
          %2910 = vmatprep.subr.mxu0 0.0
          %2911 = vmatpush1.msra.mxu0 0.0
          %2912 = vmatprep.subr.mxu0 0.0
          %2913 = vmatpush1.msra.mxu0 0.0
          %2914 = vmatprep.subr.mxu0 0.0
          %2915 = vmatpush1.msra.mxu0 0.0
          %2916 = vmatprep.subr.mxu0 0.0
          %2917 = vmatpush1.msra.mxu0 0.0
          %2918 = vmatprep.subr.mxu0 0.0
          %2919 = vmatpush1.msra.mxu0 0.0
          %2920 = vmatprep.subr.mxu0 0.0
          %2921 = vmatpush1.msra.mxu0 0.0
          %2922 = vmatprep.subr.mxu0 0.0
          %2923 = vmatpush1.msra.mxu0 0.0
          %2924 = vmatprep.subr.mxu0 0.0
          %2925 = vmatpush1.msra.mxu0 0.0
          %2926 = vmatprep.subr.mxu0 0.0
          %2927 = vmatpush1.msra.mxu0 0.0
          %2928 = vmatprep.subr.mxu0 0.0
          %2929 = vmatpush1.msra.mxu0 0.0
          %2930 = vmatprep.subr.mxu0 0.0
          %2931 = vmatpush1.msra.mxu0 0.0
          %2932 = vmatprep.subr.mxu0 0.0
          %2933 = vmatpush1.msra.mxu0 0.0
          %2934 = vmatprep.subr.mxu0 0.0
          %2935 = vmatpush1.msra.mxu0 0.0
          %2936 = vmatprep.subr.mxu0 0.0
          %2937 = vmatpush1.msra.mxu0 0.0
          %2938 = vmatprep.mubr.f32.mxu0 0.0
          %2939 = vmatmul.mubr.f32.gmra.mrb[0].mxu0 %v2872
          %v2940 = vpop.f32.mrb[0].mxu0
          %v2941 = vadd.f32 0.0, %v2940
          %v2942 = vpop.f32.mrb[0].mxu0
          %2943 = vdwg.mxu0
          %v2944 = vlog2.pop %v2941
          %v2945 = vmul.f32 %v2944, 0.6931472
          %v2946 = vadd.f32 %v2945, %v2863
          %v2947 = vadd.f32 %v2946, %v2848
          %2948 = vst.msk [vmem:[#allocation2] sm:$0xff] %vm2860, %v2947
        $region236: #{hmm_forward_pallas.1} parent=227 // pred_fallthru
          _
        %p2949 = scmp.eq.s32.totalorder %s2759, 19
        // Predicated region
        $region237: #{hmm_forward_pallas.1} parent=227 // pred_check
          %p2950 = pneg %p2949
        $region238: #{hmm_forward_pallas.1} parent=227 // pred_check_branch
          %2952 = sbr.rel (%p2950) target = $region240
        $region239: #{hmm_forward_pallas.1} parent=227 // pred_region
          %v2953 = vld [vmem:[#allocation2] sm:$0xff]
          %vm2954 = vcmask 261120
          %v2955 = vsel %vm2954, %v2953, -inf
          %2956 = vmax.xlane.f32.xlu0 %v2955
          %v2957 = vpop.xlane.xlu0 %2956
          %v2958 = vsub.f32 %v2953, %v2957
          %v2959 = vmul.f32 %v2958, 1.442695
          %v2960 = vpow.pop %v2959
          %v2961 = vld [vmem:[%s3] sm:$0x1]
          %v2963 = vlaneseq
          %v2964 = vshrl.u32 %v2963, 7
          %v2965 = vsub.s32 0, %v2964
          %v2966 = vrot.slane %v2961, %v2965
          %v2968 = vmul.f32 %v2960, %v2966
          %v2969 = vsel %vm2954, %v2968, 0.0
          %2970 = vadd.xlane.f32.xlu0 %v2969
          %v2971 = vpop.xlane.xlu0 %2970
          %v2972 = vlog2.pop %v2971
          %v2973 = vmul.f32 %v2972, 0.6931472
          %v2974 = vadd.f32 %v2973, %v2957
          %vm2975 = vcmask 7168
          %2976 = vst.msk [vmem:[%s4] sm:$0xff] %vm2975, %v2974
        $region240: #{hmm_forward_pallas.1} parent=227 // pred_fallthru
          _
      $region228: #{hmm_forward_pallas.1} parent=31 // pred_fallthru
        _
      %s2977 = sadd.s32 %s143, 13
      %s2978 = ssub.s32 6, %s143
      %p2979 = scmp.lt.s32.totalorder %s2977, 20
      // Predicated region
      $region241: #{hmm_forward_pallas.1} parent=31 // pred_check
        %p2980 = pneg %p2979
      $region242: #{hmm_forward_pallas.1} parent=31 // pred_check_branch
        %2982 = sbr.rel (%p2980) target = $region244
      $region243: #{hmm_forward_pallas.1} parent=31 // pred_region
        %s2983 = sld [smem:[#allocation4 + %s2978]]
        %s2984 = scalar_lea.vmem %s1, %s2983
        %v2985 = vld [vmem:[%s2984] sm:$0x1]
        %s2986 = sshra.s32 %s2978, 7
        %s2987 = sand.u32 %s2978, 127
        %s2988 = sadd.s32 %s2986, 1
        %s2989 = smul.u32 %s2988, 128
        %s2990 = sshra.s32 %s2978, 7
        %s2991 = sand.u32 %s2978, 127
        %s2992 = sadd.s32 %s2989, %s2991
        %s2993 = sld [smem:[#allocation4 + %s2992]]
        %s2994 = scalar_lea.vmem %s1, %s2993
        %v2995 = vld [vmem:[%s2994] sm:$0x1]
        %s2996 = sadd.s32 %s2986, 2
        %s2997 = smul.u32 %s2996, 128
        %s2998 = sadd.s32 %s2997, %s2991
        %s2999 = sld [smem:[#allocation4 + %s2998]]
        %s3000 = scalar_lea.vmem %s1, %s2999
        %v3001 = vld [vmem:[%s3000] sm:$0x1]
        %s3002 = sadd.s32 %s2986, 3
        %s3003 = smul.u32 %s3002, 128
        %s3004 = sadd.s32 %s3003, %s2991
        %s3005 = sld [smem:[#allocation4 + %s3004]]
        %s3006 = scalar_lea.vmem %s1, %s3005
        %v3007 = vld [vmem:[%s3006] sm:$0x1]
        %s3008 = sadd.s32 %s2986, 4
        %s3009 = smul.u32 %s3008, 128
        %s3010 = sadd.s32 %s3009, %s2991
        %s3011 = sld [smem:[#allocation4 + %s3010]]
        %s3012 = scalar_lea.vmem %s1, %s3011
        %v3013 = vld [vmem:[%s3012] sm:$0x1]
        %s3014 = sadd.s32 %s2986, 5
        %s3015 = smul.u32 %s3014, 128
        %s3016 = sadd.s32 %s3015, %s2991
        %s3017 = sld [smem:[#allocation4 + %s3016]]
        %s3018 = scalar_lea.vmem %s1, %s3017
        %v3019 = vld [vmem:[%s3018] sm:$0x1]
        %s3020 = sadd.s32 %s2986, 6
        %s3021 = smul.u32 %s3020, 128
        %s3022 = sadd.s32 %s3021, %s2991
        %s3023 = sld [smem:[#allocation4 + %s3022]]
        %s3024 = scalar_lea.vmem %s1, %s3023
        %v3025 = vld [vmem:[%s3024] sm:$0x1]
        %s3026 = sadd.s32 %s2986, 7
        %s3027 = smul.u32 %s3026, 128
        %s3028 = sadd.s32 %s3027, %s2991
        %s3029 = sld [smem:[#allocation4 + %s3028]]
        %s3030 = scalar_lea.vmem %s1, %s3029
        %v3031 = vld [vmem:[%s3030] sm:$0x1]
        %v3033 = vrot.slane %v2995, 7
        %v3036 = vrot.slane %v3001, 6
        %v3039 = vrot.slane %v3007, 5
        %v3042 = vrot.slane %v3013, 4
        %v3045 = vrot.slane %v3019, 3
        %v3048 = vrot.slane %v3025, 2
        %v3051 = vrot.slane %v3031, 1
        %vm3053 = vcmask 1040384
        %v3054 = vsel %vm3053, %v2985, %v3033
        %vm3055 = vcmask 1041408
        %v3056 = vsel %vm3055, %v3054, %v3036
        %vm3057 = vcmask 1042432
        %v3058 = vsel %vm3057, %v3056, %v3039
        %vm3059 = vcmask 1043456
        %v3060 = vsel %vm3059, %v3058, %v3042
        %vm3061 = vcmask 1044480
        %v3062 = vsel %vm3061, %v3060, %v3045
        %vm3063 = vcmask 1045504
        %v3064 = vsel %vm3063, %v3062, %v3048
        %vm3065 = vcmask 1046528
        %v3066 = vsel %vm3065, %v3064, %v3051
        %p3067 = scmp.eq.s32.totalorder %s2977, 0
        // Predicated region
        $region245: #{hmm_forward_pallas.1} parent=243 // pred_check
          %p3068 = pneg %p3067
        $region246: #{hmm_forward_pallas.1} parent=243 // pred_check_branch
          %3070 = sbr.rel (%p3068) target = $region248
        $region247: #{hmm_forward_pallas.1} parent=243 // pred_region
          %vm3071 = vcmask 261120
          %3072 = vst.msk [vmem:[#allocation2] sm:$0xff] %vm3071, %v3066
        $region248: #{hmm_forward_pallas.1} parent=243 // pred_fallthru
          _
        %p3073 = scmp.ne.s32.totalorder %s2977, 0
        // Predicated region
        $region249: #{hmm_forward_pallas.1} parent=243 // pred_check
          %p3074 = pneg %p3073
        $region250: #{hmm_forward_pallas.1} parent=243 // pred_check_branch
          %3076 = sbr.rel (%p3074) target = $region252
        $region251: #{hmm_forward_pallas.1} parent=243 // pred_region
          %v3077 = vld [vmem:[#allocation2] sm:$0xff]
          %vm3078 = vcmask 261120
          %v3079 = vsel %vm3078, %v3077, -inf
          %3080 = vmax.xlane.f32.xlu0 %v3079
          %v3081 = vpop.xlane.xlu0 %3080
          %v3082 = vsub.f32 %v3077, %v3081
          %v3083 = vmul.f32 %v3082, 1.442695
          %v3084 = vpow.pop %v3083
          %v3085 = vld [vmem:[%s2] sm:$0xff]
          %v3086 = vld [vmem:[%s2 + $0x8] sm:$0xff]
          %v3087 = vld [vmem:[%s2 + $0x10] sm:$0xff]
          %v3088 = vld [vmem:[%s2 + $0x18] sm:$0xff]
          %v3090 = vsel %vm3078, %v3084, 0
          %3092 = vmatprep.subr.mxu0 0.0
          %3093 = vmatpush1.msra.mxu0 %v3085
          %3094 = vmatprep.subr.mxu0 0.0
          %3095 = vmatpush1.msra.mxu0 %v3086
          %3096 = vmatprep.subr.mxu0 0.0
          %3097 = vmatpush1.msra.mxu0 %v3087
          %3098 = vmatprep.subr.mxu0 0.0
          %3099 = vmatpush1.msra.mxu0 %v3088
          %3100 = vmatprep.subr.mxu0 0.0
          %3101 = vmatpush1.msra.mxu0 0.0
          %3102 = vmatprep.subr.mxu0 0.0
          %3103 = vmatpush1.msra.mxu0 0.0
          %3104 = vmatprep.subr.mxu0 0.0
          %3105 = vmatpush1.msra.mxu0 0.0
          %3106 = vmatprep.subr.mxu0 0.0
          %3107 = vmatpush1.msra.mxu0 0.0
          %3108 = vmatprep.subr.mxu0 0.0
          %3109 = vmatpush1.msra.mxu0 0.0
          %3110 = vmatprep.subr.mxu0 0.0
          %3111 = vmatpush1.msra.mxu0 0.0
          %3112 = vmatprep.subr.mxu0 0.0
          %3113 = vmatpush1.msra.mxu0 0.0
          %3114 = vmatprep.subr.mxu0 0.0
          %3115 = vmatpush1.msra.mxu0 0.0
          %3116 = vmatprep.subr.mxu0 0.0
          %3117 = vmatpush1.msra.mxu0 0.0
          %3118 = vmatprep.subr.mxu0 0.0
          %3119 = vmatpush1.msra.mxu0 0.0
          %3120 = vmatprep.subr.mxu0 0.0
          %3121 = vmatpush1.msra.mxu0 0.0
          %3122 = vmatprep.subr.mxu0 0.0
          %3123 = vmatpush1.msra.mxu0 0.0
          %3124 = vmatprep.subr.mxu0 0.0
          %3125 = vmatpush1.msra.mxu0 0.0
          %3126 = vmatprep.subr.mxu0 0.0
          %3127 = vmatpush1.msra.mxu0 0.0
          %3128 = vmatprep.subr.mxu0 0.0
          %3129 = vmatpush1.msra.mxu0 0.0
          %3130 = vmatprep.subr.mxu0 0.0
          %3131 = vmatpush1.msra.mxu0 0.0
          %3132 = vmatprep.subr.mxu0 0.0
          %3133 = vmatpush1.msra.mxu0 0.0
          %3134 = vmatprep.subr.mxu0 0.0
          %3135 = vmatpush1.msra.mxu0 0.0
          %3136 = vmatprep.subr.mxu0 0.0
          %3137 = vmatpush1.msra.mxu0 0.0
          %3138 = vmatprep.subr.mxu0 0.0
          %3139 = vmatpush1.msra.mxu0 0.0
          %3140 = vmatprep.subr.mxu0 0.0
          %3141 = vmatpush1.msra.mxu0 0.0
          %3142 = vmatprep.subr.mxu0 0.0
          %3143 = vmatpush1.msra.mxu0 0.0
          %3144 = vmatprep.subr.mxu0 0.0
          %3145 = vmatpush1.msra.mxu0 0.0
          %3146 = vmatprep.subr.mxu0 0.0
          %3147 = vmatpush1.msra.mxu0 0.0
          %3148 = vmatprep.subr.mxu0 0.0
          %3149 = vmatpush1.msra.mxu0 0.0
          %3150 = vmatprep.subr.mxu0 0.0
          %3151 = vmatpush1.msra.mxu0 0.0
          %3152 = vmatprep.subr.mxu0 0.0
          %3153 = vmatpush1.msra.mxu0 0.0
          %3154 = vmatprep.subr.mxu0 0.0
          %3155 = vmatpush1.msra.mxu0 0.0
          %3156 = vmatprep.mubr.f32.mxu0 0.0
          %3157 = vmatmul.mubr.f32.gmra.mrb[0].mxu0 %v3090
          %v3158 = vpop.f32.mrb[0].mxu0
          %v3159 = vadd.f32 0.0, %v3158
          %v3160 = vpop.f32.mrb[0].mxu0
          %3161 = vdwg.mxu0
          %v3162 = vlog2.pop %v3159
          %v3163 = vmul.f32 %v3162, 0.6931472
          %v3164 = vadd.f32 %v3163, %v3081
          %v3165 = vadd.f32 %v3164, %v3066
          %3166 = vst.msk [vmem:[#allocation2] sm:$0xff] %vm3078, %v3165
        $region252: #{hmm_forward_pallas.1} parent=243 // pred_fallthru
          _
        %p3167 = scmp.eq.s32.totalorder %s2977, 19
        // Predicated region
        $region253: #{hmm_forward_pallas.1} parent=243 // pred_check
          %p3168 = pneg %p3167
        $region254: #{hmm_forward_pallas.1} parent=243 // pred_check_branch
          %3170 = sbr.rel (%p3168) target = $region256
        $region255: #{hmm_forward_pallas.1} parent=243 // pred_region
          %v3171 = vld [vmem:[#allocation2] sm:$0xff]
          %vm3172 = vcmask 261120
          %v3173 = vsel %vm3172, %v3171, -inf
          %3174 = vmax.xlane.f32.xlu0 %v3173
          %v3175 = vpop.xlane.xlu0 %3174
          %v3176 = vsub.f32 %v3171, %v3175
          %v3177 = vmul.f32 %v3176, 1.442695
          %v3178 = vpow.pop %v3177
          %v3179 = vld [vmem:[%s3] sm:$0x1]
          %v3181 = vlaneseq
          %v3182 = vshrl.u32 %v3181, 7
          %v3183 = vsub.s32 0, %v3182
          %v3184 = vrot.slane %v3179, %v3183
          %v3186 = vmul.f32 %v3178, %v3184
          %v3187 = vsel %vm3172, %v3186, 0.0
          %3188 = vadd.xlane.f32.xlu0 %v3187
          %v3189 = vpop.xlane.xlu0 %3188
          %v3190 = vlog2.pop %v3189
          %v3191 = vmul.f32 %v3190, 0.6931472
          %v3192 = vadd.f32 %v3191, %v3175
          %vm3193 = vcmask 7168
          %3194 = vst.msk [vmem:[%s4] sm:$0xff] %vm3193, %v3192
        $region256: #{hmm_forward_pallas.1} parent=243 // pred_fallthru
          _
      $region244: #{hmm_forward_pallas.1} parent=31 // pred_fallthru
        _
      %s3195 = sadd.s32 %s143, 14
      %s3196 = ssub.s32 5, %s143
      %p3197 = scmp.lt.s32.totalorder %s3195, 20
      // Predicated region
      $region257: #{hmm_forward_pallas.1} parent=31 // pred_check
        %p3198 = pneg %p3197
      $region258: #{hmm_forward_pallas.1} parent=31 // pred_check_branch
        %3200 = sbr.rel (%p3198) target = $region260
      $region259: #{hmm_forward_pallas.1} parent=31 // pred_region
        %s3201 = sld [smem:[#allocation4 + %s3196]]
        %s3202 = scalar_lea.vmem %s1, %s3201
        %v3203 = vld [vmem:[%s3202] sm:$0x1]
        %s3204 = sshra.s32 %s3196, 7
        %s3205 = sand.u32 %s3196, 127
        %s3206 = sadd.s32 %s3204, 1
        %s3207 = smul.u32 %s3206, 128
        %s3208 = sshra.s32 %s3196, 7
        %s3209 = sand.u32 %s3196, 127
        %s3210 = sadd.s32 %s3207, %s3209
        %s3211 = sld [smem:[#allocation4 + %s3210]]
        %s3212 = scalar_lea.vmem %s1, %s3211
        %v3213 = vld [vmem:[%s3212] sm:$0x1]
        %s3214 = sadd.s32 %s3204, 2
        %s3215 = smul.u32 %s3214, 128
        %s3216 = sadd.s32 %s3215, %s3209
        %s3217 = sld [smem:[#allocation4 + %s3216]]
        %s3218 = scalar_lea.vmem %s1, %s3217
        %v3219 = vld [vmem:[%s3218] sm:$0x1]
        %s3220 = sadd.s32 %s3204, 3
        %s3221 = smul.u32 %s3220, 128
        %s3222 = sadd.s32 %s3221, %s3209
        %s3223 = sld [smem:[#allocation4 + %s3222]]
        %s3224 = scalar_lea.vmem %s1, %s3223
        %v3225 = vld [vmem:[%s3224] sm:$0x1]
        %s3226 = sadd.s32 %s3204, 4
        %s3227 = smul.u32 %s3226, 128
        %s3228 = sadd.s32 %s3227, %s3209
        %s3229 = sld [smem:[#allocation4 + %s3228]]
        %s3230 = scalar_lea.vmem %s1, %s3229
        %v3231 = vld [vmem:[%s3230] sm:$0x1]
        %s3232 = sadd.s32 %s3204, 5
        %s3233 = smul.u32 %s3232, 128
        %s3234 = sadd.s32 %s3233, %s3209
        %s3235 = sld [smem:[#allocation4 + %s3234]]
        %s3236 = scalar_lea.vmem %s1, %s3235
        %v3237 = vld [vmem:[%s3236] sm:$0x1]
        %s3238 = sadd.s32 %s3204, 6
        %s3239 = smul.u32 %s3238, 128
        %s3240 = sadd.s32 %s3239, %s3209
        %s3241 = sld [smem:[#allocation4 + %s3240]]
        %s3242 = scalar_lea.vmem %s1, %s3241
        %v3243 = vld [vmem:[%s3242] sm:$0x1]
        %s3244 = sadd.s32 %s3204, 7
        %s3245 = smul.u32 %s3244, 128
        %s3246 = sadd.s32 %s3245, %s3209
        %s3247 = sld [smem:[#allocation4 + %s3246]]
        %s3248 = scalar_lea.vmem %s1, %s3247
        %v3249 = vld [vmem:[%s3248] sm:$0x1]
        %v3251 = vrot.slane %v3213, 7
        %v3254 = vrot.slane %v3219, 6
        %v3257 = vrot.slane %v3225, 5
        %v3260 = vrot.slane %v3231, 4
        %v3263 = vrot.slane %v3237, 3
        %v3266 = vrot.slane %v3243, 2
        %v3269 = vrot.slane %v3249, 1
        %vm3271 = vcmask 1040384
        %v3272 = vsel %vm3271, %v3203, %v3251
        %vm3273 = vcmask 1041408
        %v3274 = vsel %vm3273, %v3272, %v3254
        %vm3275 = vcmask 1042432
        %v3276 = vsel %vm3275, %v3274, %v3257
        %vm3277 = vcmask 1043456
        %v3278 = vsel %vm3277, %v3276, %v3260
        %vm3279 = vcmask 1044480
        %v3280 = vsel %vm3279, %v3278, %v3263
        %vm3281 = vcmask 1045504
        %v3282 = vsel %vm3281, %v3280, %v3266
        %vm3283 = vcmask 1046528
        %v3284 = vsel %vm3283, %v3282, %v3269
        %p3285 = scmp.eq.s32.totalorder %s3195, 0
        // Predicated region
        $region261: #{hmm_forward_pallas.1} parent=259 // pred_check
          %p3286 = pneg %p3285
        $region262: #{hmm_forward_pallas.1} parent=259 // pred_check_branch
          %3288 = sbr.rel (%p3286) target = $region264
        $region263: #{hmm_forward_pallas.1} parent=259 // pred_region
          %vm3289 = vcmask 261120
          %3290 = vst.msk [vmem:[#allocation2] sm:$0xff] %vm3289, %v3284
        $region264: #{hmm_forward_pallas.1} parent=259 // pred_fallthru
          _
        %p3291 = scmp.ne.s32.totalorder %s3195, 0
        // Predicated region
        $region265: #{hmm_forward_pallas.1} parent=259 // pred_check
          %p3292 = pneg %p3291
        $region266: #{hmm_forward_pallas.1} parent=259 // pred_check_branch
          %3294 = sbr.rel (%p3292) target = $region268
        $region267: #{hmm_forward_pallas.1} parent=259 // pred_region
          %v3295 = vld [vmem:[#allocation2] sm:$0xff]
          %vm3296 = vcmask 261120
          %v3297 = vsel %vm3296, %v3295, -inf
          %3298 = vmax.xlane.f32.xlu0 %v3297
          %v3299 = vpop.xlane.xlu0 %3298
          %v3300 = vsub.f32 %v3295, %v3299
          %v3301 = vmul.f32 %v3300, 1.442695
          %v3302 = vpow.pop %v3301
          %v3303 = vld [vmem:[%s2] sm:$0xff]
          %v3304 = vld [vmem:[%s2 + $0x8] sm:$0xff]
          %v3305 = vld [vmem:[%s2 + $0x10] sm:$0xff]
          %v3306 = vld [vmem:[%s2 + $0x18] sm:$0xff]
          %v3308 = vsel %vm3296, %v3302, 0
          %3310 = vmatprep.subr.mxu0 0.0
          %3311 = vmatpush1.msra.mxu0 %v3303
          %3312 = vmatprep.subr.mxu0 0.0
          %3313 = vmatpush1.msra.mxu0 %v3304
          %3314 = vmatprep.subr.mxu0 0.0
          %3315 = vmatpush1.msra.mxu0 %v3305
          %3316 = vmatprep.subr.mxu0 0.0
          %3317 = vmatpush1.msra.mxu0 %v3306
          %3318 = vmatprep.subr.mxu0 0.0
          %3319 = vmatpush1.msra.mxu0 0.0
          %3320 = vmatprep.subr.mxu0 0.0
          %3321 = vmatpush1.msra.mxu0 0.0
          %3322 = vmatprep.subr.mxu0 0.0
          %3323 = vmatpush1.msra.mxu0 0.0
          %3324 = vmatprep.subr.mxu0 0.0
          %3325 = vmatpush1.msra.mxu0 0.0
          %3326 = vmatprep.subr.mxu0 0.0
          %3327 = vmatpush1.msra.mxu0 0.0
          %3328 = vmatprep.subr.mxu0 0.0
          %3329 = vmatpush1.msra.mxu0 0.0
          %3330 = vmatprep.subr.mxu0 0.0
          %3331 = vmatpush1.msra.mxu0 0.0
          %3332 = vmatprep.subr.mxu0 0.0
          %3333 = vmatpush1.msra.mxu0 0.0
          %3334 = vmatprep.subr.mxu0 0.0
          %3335 = vmatpush1.msra.mxu0 0.0
          %3336 = vmatprep.subr.mxu0 0.0
          %3337 = vmatpush1.msra.mxu0 0.0
          %3338 = vmatprep.subr.mxu0 0.0
          %3339 = vmatpush1.msra.mxu0 0.0
          %3340 = vmatprep.subr.mxu0 0.0
          %3341 = vmatpush1.msra.mxu0 0.0
          %3342 = vmatprep.subr.mxu0 0.0
          %3343 = vmatpush1.msra.mxu0 0.0
          %3344 = vmatprep.subr.mxu0 0.0
          %3345 = vmatpush1.msra.mxu0 0.0
          %3346 = vmatprep.subr.mxu0 0.0
          %3347 = vmatpush1.msra.mxu0 0.0
          %3348 = vmatprep.subr.mxu0 0.0
          %3349 = vmatpush1.msra.mxu0 0.0
          %3350 = vmatprep.subr.mxu0 0.0
          %3351 = vmatpush1.msra.mxu0 0.0
          %3352 = vmatprep.subr.mxu0 0.0
          %3353 = vmatpush1.msra.mxu0 0.0
          %3354 = vmatprep.subr.mxu0 0.0
          %3355 = vmatpush1.msra.mxu0 0.0
          %3356 = vmatprep.subr.mxu0 0.0
          %3357 = vmatpush1.msra.mxu0 0.0
          %3358 = vmatprep.subr.mxu0 0.0
          %3359 = vmatpush1.msra.mxu0 0.0
          %3360 = vmatprep.subr.mxu0 0.0
          %3361 = vmatpush1.msra.mxu0 0.0
          %3362 = vmatprep.subr.mxu0 0.0
          %3363 = vmatpush1.msra.mxu0 0.0
          %3364 = vmatprep.subr.mxu0 0.0
          %3365 = vmatpush1.msra.mxu0 0.0
          %3366 = vmatprep.subr.mxu0 0.0
          %3367 = vmatpush1.msra.mxu0 0.0
          %3368 = vmatprep.subr.mxu0 0.0
          %3369 = vmatpush1.msra.mxu0 0.0
          %3370 = vmatprep.subr.mxu0 0.0
          %3371 = vmatpush1.msra.mxu0 0.0
          %3372 = vmatprep.subr.mxu0 0.0
          %3373 = vmatpush1.msra.mxu0 0.0
          %3374 = vmatprep.mubr.f32.mxu0 0.0
          %3375 = vmatmul.mubr.f32.gmra.mrb[0].mxu0 %v3308
          %v3376 = vpop.f32.mrb[0].mxu0
          %v3377 = vadd.f32 0.0, %v3376
          %v3378 = vpop.f32.mrb[0].mxu0
          %3379 = vdwg.mxu0
          %v3380 = vlog2.pop %v3377
          %v3381 = vmul.f32 %v3380, 0.6931472
          %v3382 = vadd.f32 %v3381, %v3299
          %v3383 = vadd.f32 %v3382, %v3284
          %3384 = vst.msk [vmem:[#allocation2] sm:$0xff] %vm3296, %v3383
        $region268: #{hmm_forward_pallas.1} parent=259 // pred_fallthru
          _
        %p3385 = scmp.eq.s32.totalorder %s3195, 19
        // Predicated region
        $region269: #{hmm_forward_pallas.1} parent=259 // pred_check
          %p3386 = pneg %p3385
        $region270: #{hmm_forward_pallas.1} parent=259 // pred_check_branch
          %3388 = sbr.rel (%p3386) target = $region272
        $region271: #{hmm_forward_pallas.1} parent=259 // pred_region
          %v3389 = vld [vmem:[#allocation2] sm:$0xff]
          %vm3390 = vcmask 261120
          %v3391 = vsel %vm3390, %v3389, -inf
          %3392 = vmax.xlane.f32.xlu0 %v3391
          %v3393 = vpop.xlane.xlu0 %3392
          %v3394 = vsub.f32 %v3389, %v3393
          %v3395 = vmul.f32 %v3394, 1.442695
          %v3396 = vpow.pop %v3395
          %v3397 = vld [vmem:[%s3] sm:$0x1]
          %v3399 = vlaneseq
          %v3400 = vshrl.u32 %v3399, 7
          %v3401 = vsub.s32 0, %v3400
          %v3402 = vrot.slane %v3397, %v3401
          %v3404 = vmul.f32 %v3396, %v3402
          %v3405 = vsel %vm3390, %v3404, 0.0
          %3406 = vadd.xlane.f32.xlu0 %v3405
          %v3407 = vpop.xlane.xlu0 %3406
          %v3408 = vlog2.pop %v3407
          %v3409 = vmul.f32 %v3408, 0.6931472
          %v3410 = vadd.f32 %v3409, %v3393
          %vm3411 = vcmask 7168
          %3412 = vst.msk [vmem:[%s4] sm:$0xff] %vm3411, %v3410
        $region272: #{hmm_forward_pallas.1} parent=259 // pred_fallthru
          _
      $region260: #{hmm_forward_pallas.1} parent=31 // pred_fallthru
        _
      %s3413 = sadd.s32 %s143, 15
      %s3414 = ssub.s32 4, %s143
      %p3415 = scmp.lt.s32.totalorder %s3413, 20
      // Predicated region
      $region273: #{hmm_forward_pallas.1} parent=31 // pred_check
        %p3416 = pneg %p3415
      $region274: #{hmm_forward_pallas.1} parent=31 // pred_check_branch
        %3418 = sbr.rel (%p3416) target = $region276
      $region275: #{hmm_forward_pallas.1} parent=31 // pred_region
        %s3419 = sld [smem:[#allocation4 + %s3414]]
        %s3420 = scalar_lea.vmem %s1, %s3419
        %v3421 = vld [vmem:[%s3420] sm:$0x1]
        %s3422 = sshra.s32 %s3414, 7
        %s3423 = sand.u32 %s3414, 127
        %s3424 = sadd.s32 %s3422, 1
        %s3425 = smul.u32 %s3424, 128
        %s3426 = sshra.s32 %s3414, 7
        %s3427 = sand.u32 %s3414, 127
        %s3428 = sadd.s32 %s3425, %s3427
        %s3429 = sld [smem:[#allocation4 + %s3428]]
        %s3430 = scalar_lea.vmem %s1, %s3429
        %v3431 = vld [vmem:[%s3430] sm:$0x1]
        %s3432 = sadd.s32 %s3422, 2
        %s3433 = smul.u32 %s3432, 128
        %s3434 = sadd.s32 %s3433, %s3427
        %s3435 = sld [smem:[#allocation4 + %s3434]]
        %s3436 = scalar_lea.vmem %s1, %s3435
        %v3437 = vld [vmem:[%s3436] sm:$0x1]
        %s3438 = sadd.s32 %s3422, 3
        %s3439 = smul.u32 %s3438, 128
        %s3440 = sadd.s32 %s3439, %s3427
        %s3441 = sld [smem:[#allocation4 + %s3440]]
        %s3442 = scalar_lea.vmem %s1, %s3441
        %v3443 = vld [vmem:[%s3442] sm:$0x1]
        %s3444 = sadd.s32 %s3422, 4
        %s3445 = smul.u32 %s3444, 128
        %s3446 = sadd.s32 %s3445, %s3427
        %s3447 = sld [smem:[#allocation4 + %s3446]]
        %s3448 = scalar_lea.vmem %s1, %s3447
        %v3449 = vld [vmem:[%s3448] sm:$0x1]
        %s3450 = sadd.s32 %s3422, 5
        %s3451 = smul.u32 %s3450, 128
        %s3452 = sadd.s32 %s3451, %s3427
        %s3453 = sld [smem:[#allocation4 + %s3452]]
        %s3454 = scalar_lea.vmem %s1, %s3453
        %v3455 = vld [vmem:[%s3454] sm:$0x1]
        %s3456 = sadd.s32 %s3422, 6
        %s3457 = smul.u32 %s3456, 128
        %s3458 = sadd.s32 %s3457, %s3427
        %s3459 = sld [smem:[#allocation4 + %s3458]]
        %s3460 = scalar_lea.vmem %s1, %s3459
        %v3461 = vld [vmem:[%s3460] sm:$0x1]
        %s3462 = sadd.s32 %s3422, 7
        %s3463 = smul.u32 %s3462, 128
        %s3464 = sadd.s32 %s3463, %s3427
        %s3465 = sld [smem:[#allocation4 + %s3464]]
        %s3466 = scalar_lea.vmem %s1, %s3465
        %v3467 = vld [vmem:[%s3466] sm:$0x1]
        %v3469 = vrot.slane %v3431, 7
        %v3472 = vrot.slane %v3437, 6
        %v3475 = vrot.slane %v3443, 5
        %v3478 = vrot.slane %v3449, 4
        %v3481 = vrot.slane %v3455, 3
        %v3484 = vrot.slane %v3461, 2
        %v3487 = vrot.slane %v3467, 1
        %vm3489 = vcmask 1040384
        %v3490 = vsel %vm3489, %v3421, %v3469
        %vm3491 = vcmask 1041408
        %v3492 = vsel %vm3491, %v3490, %v3472
        %vm3493 = vcmask 1042432
        %v3494 = vsel %vm3493, %v3492, %v3475
        %vm3495 = vcmask 1043456
        %v3496 = vsel %vm3495, %v3494, %v3478
        %vm3497 = vcmask 1044480
        %v3498 = vsel %vm3497, %v3496, %v3481
        %vm3499 = vcmask 1045504
        %v3500 = vsel %vm3499, %v3498, %v3484
        %vm3501 = vcmask 1046528
        %v3502 = vsel %vm3501, %v3500, %v3487
        %p3503 = scmp.eq.s32.totalorder %s3413, 0
        // Predicated region
        $region277: #{hmm_forward_pallas.1} parent=275 // pred_check
          %p3504 = pneg %p3503
        $region278: #{hmm_forward_pallas.1} parent=275 // pred_check_branch
          %3506 = sbr.rel (%p3504) target = $region280
        $region279: #{hmm_forward_pallas.1} parent=275 // pred_region
          %vm3507 = vcmask 261120
          %3508 = vst.msk [vmem:[#allocation2] sm:$0xff] %vm3507, %v3502
        $region280: #{hmm_forward_pallas.1} parent=275 // pred_fallthru
          _
        %p3509 = scmp.ne.s32.totalorder %s3413, 0
        // Predicated region
        $region281: #{hmm_forward_pallas.1} parent=275 // pred_check
          %p3510 = pneg %p3509
        $region282: #{hmm_forward_pallas.1} parent=275 // pred_check_branch
          %3512 = sbr.rel (%p3510) target = $region284
        $region283: #{hmm_forward_pallas.1} parent=275 // pred_region
          %v3513 = vld [vmem:[#allocation2] sm:$0xff]
          %vm3514 = vcmask 261120
          %v3515 = vsel %vm3514, %v3513, -inf
          %3516 = vmax.xlane.f32.xlu0 %v3515
          %v3517 = vpop.xlane.xlu0 %3516
          %v3518 = vsub.f32 %v3513, %v3517
          %v3519 = vmul.f32 %v3518, 1.442695
          %v3520 = vpow.pop %v3519
          %v3521 = vld [vmem:[%s2] sm:$0xff]
          %v3522 = vld [vmem:[%s2 + $0x8] sm:$0xff]
          %v3523 = vld [vmem:[%s2 + $0x10] sm:$0xff]
          %v3524 = vld [vmem:[%s2 + $0x18] sm:$0xff]
          %v3526 = vsel %vm3514, %v3520, 0
          %3528 = vmatprep.subr.mxu0 0.0
          %3529 = vmatpush1.msra.mxu0 %v3521
          %3530 = vmatprep.subr.mxu0 0.0
          %3531 = vmatpush1.msra.mxu0 %v3522
          %3532 = vmatprep.subr.mxu0 0.0
          %3533 = vmatpush1.msra.mxu0 %v3523
          %3534 = vmatprep.subr.mxu0 0.0
          %3535 = vmatpush1.msra.mxu0 %v3524
          %3536 = vmatprep.subr.mxu0 0.0
          %3537 = vmatpush1.msra.mxu0 0.0
          %3538 = vmatprep.subr.mxu0 0.0
          %3539 = vmatpush1.msra.mxu0 0.0
          %3540 = vmatprep.subr.mxu0 0.0
          %3541 = vmatpush1.msra.mxu0 0.0
          %3542 = vmatprep.subr.mxu0 0.0
          %3543 = vmatpush1.msra.mxu0 0.0
          %3544 = vmatprep.subr.mxu0 0.0
          %3545 = vmatpush1.msra.mxu0 0.0
          %3546 = vmatprep.subr.mxu0 0.0
          %3547 = vmatpush1.msra.mxu0 0.0
          %3548 = vmatprep.subr.mxu0 0.0
          %3549 = vmatpush1.msra.mxu0 0.0
          %3550 = vmatprep.subr.mxu0 0.0
          %3551 = vmatpush1.msra.mxu0 0.0
          %3552 = vmatprep.subr.mxu0 0.0
          %3553 = vmatpush1.msra.mxu0 0.0
          %3554 = vmatprep.subr.mxu0 0.0
          %3555 = vmatpush1.msra.mxu0 0.0
          %3556 = vmatprep.subr.mxu0 0.0
          %3557 = vmatpush1.msra.mxu0 0.0
          %3558 = vmatprep.subr.mxu0 0.0
          %3559 = vmatpush1.msra.mxu0 0.0
          %3560 = vmatprep.subr.mxu0 0.0
          %3561 = vmatpush1.msra.mxu0 0.0
          %3562 = vmatprep.subr.mxu0 0.0
          %3563 = vmatpush1.msra.mxu0 0.0
          %3564 = vmatprep.subr.mxu0 0.0
          %3565 = vmatpush1.msra.mxu0 0.0
          %3566 = vmatprep.subr.mxu0 0.0
          %3567 = vmatpush1.msra.mxu0 0.0
          %3568 = vmatprep.subr.mxu0 0.0
          %3569 = vmatpush1.msra.mxu0 0.0
          %3570 = vmatprep.subr.mxu0 0.0
          %3571 = vmatpush1.msra.mxu0 0.0
          %3572 = vmatprep.subr.mxu0 0.0
          %3573 = vmatpush1.msra.mxu0 0.0
          %3574 = vmatprep.subr.mxu0 0.0
          %3575 = vmatpush1.msra.mxu0 0.0
          %3576 = vmatprep.subr.mxu0 0.0
          %3577 = vmatpush1.msra.mxu0 0.0
          %3578 = vmatprep.subr.mxu0 0.0
          %3579 = vmatpush1.msra.mxu0 0.0
          %3580 = vmatprep.subr.mxu0 0.0
          %3581 = vmatpush1.msra.mxu0 0.0
          %3582 = vmatprep.subr.mxu0 0.0
          %3583 = vmatpush1.msra.mxu0 0.0
          %3584 = vmatprep.subr.mxu0 0.0
          %3585 = vmatpush1.msra.mxu0 0.0
          %3586 = vmatprep.subr.mxu0 0.0
          %3587 = vmatpush1.msra.mxu0 0.0
          %3588 = vmatprep.subr.mxu0 0.0
          %3589 = vmatpush1.msra.mxu0 0.0
          %3590 = vmatprep.subr.mxu0 0.0
          %3591 = vmatpush1.msra.mxu0 0.0
          %3592 = vmatprep.mubr.f32.mxu0 0.0
          %3593 = vmatmul.mubr.f32.gmra.mrb[0].mxu0 %v3526
          %v3594 = vpop.f32.mrb[0].mxu0
          %v3595 = vadd.f32 0.0, %v3594
          %v3596 = vpop.f32.mrb[0].mxu0
          %3597 = vdwg.mxu0
          %v3598 = vlog2.pop %v3595
          %v3599 = vmul.f32 %v3598, 0.6931472
          %v3600 = vadd.f32 %v3599, %v3517
          %v3601 = vadd.f32 %v3600, %v3502
          %3602 = vst.msk [vmem:[#allocation2] sm:$0xff] %vm3514, %v3601
        $region284: #{hmm_forward_pallas.1} parent=275 // pred_fallthru
          _
        %p3603 = scmp.eq.s32.totalorder %s3413, 19
        // Predicated region
        $region285: #{hmm_forward_pallas.1} parent=275 // pred_check
          %p3604 = pneg %p3603
        $region286: #{hmm_forward_pallas.1} parent=275 // pred_check_branch
          %3606 = sbr.rel (%p3604) target = $region288
        $region287: #{hmm_forward_pallas.1} parent=275 // pred_region
          %v3607 = vld [vmem:[#allocation2] sm:$0xff]
          %vm3608 = vcmask 261120
          %v3609 = vsel %vm3608, %v3607, -inf
          %3610 = vmax.xlane.f32.xlu0 %v3609
          %v3611 = vpop.xlane.xlu0 %3610
          %v3612 = vsub.f32 %v3607, %v3611
          %v3613 = vmul.f32 %v3612, 1.442695
          %v3614 = vpow.pop %v3613
          %v3615 = vld [vmem:[%s3] sm:$0x1]
          %v3617 = vlaneseq
          %v3618 = vshrl.u32 %v3617, 7
          %v3619 = vsub.s32 0, %v3618
          %v3620 = vrot.slane %v3615, %v3619
          %v3622 = vmul.f32 %v3614, %v3620
          %v3623 = vsel %vm3608, %v3622, 0.0
          %3624 = vadd.xlane.f32.xlu0 %v3623
          %v3625 = vpop.xlane.xlu0 %3624
          %v3626 = vlog2.pop %v3625
          %v3627 = vmul.f32 %v3626, 0.6931472
          %v3628 = vadd.f32 %v3627, %v3611
          %vm3629 = vcmask 7168
          %3630 = vst.msk [vmem:[%s4] sm:$0xff] %vm3629, %v3628
        $region288: #{hmm_forward_pallas.1} parent=275 // pred_fallthru
          _
      $region276: #{hmm_forward_pallas.1} parent=31 // pred_fallthru
        _
      // Predicated region
      $region289: #{hmm_forward_pallas.1} parent=31 // pred_check
        %p3631 = pneg %p97
      $region290: #{hmm_forward_pallas.1} parent=31 // pred_check_branch
        %3633 = sbr.rel (%p3631) target = $region292
      $region291: #{hmm_forward_pallas.1} parent=31 // pred_region
        _
      $region292: #{hmm_forward_pallas.1} parent=31 // pred_fallthru
        _
      // Predicated region
      $region293: #{hmm_forward_pallas.1} parent=31 // pred_check
        %p3634 = pneg %p97
      $region294: #{hmm_forward_pallas.1} parent=31 // pred_check_branch
        %3636 = sbr.rel (%p3634) target = $region296
      $region295: #{hmm_forward_pallas.1} parent=31 // pred_region
        _
      $region296: #{hmm_forward_pallas.1} parent=31 // pred_fallthru
        _
    $region32: #{hmm_forward_pallas.1} parent=5 // pred_fallthru
      _
    %p3637 = scmp.le.s32.totalorder 2, %s16
    // Predicated region
    $region297: #{hmm_forward_pallas.1} parent=5 // pred_check
      %p3638 = pneg %p3637
    $region298: #{hmm_forward_pallas.1} parent=5 // pred_check_branch
      %3640 = sbr.rel (%p3638) target = $region300
    $region299: #{hmm_forward_pallas.1} parent=5 // pred_region
      %s3641 = ssub.s32 %s16, 2
    $region300: #{hmm_forward_pallas.1} parent=5 // pred_fallthru
      _
  $region6: #{hmm_forward_pallas.1} parent=0 // loop_footer
    %s20 = sadd.s32 1, %s16
  $region7: #{hmm_forward_pallas.1} parent=0 // loop_footer_branch
    %15 = sbr.rel target = $region3
  $region8: #{hmm_forward_pallas.1} parent=0 // loop_exit
    _

</llo_original>
